<compile_context>
chip_gen: v5e
topology: v5e:2x2
jax: 0.10.0
libtpu: 0.0.40
codegen_flags: <defaults>
</compile_context>

<pallas_src>
import functools

import jax
import jax.numpy as jnp
from jax.experimental import pallas as pl
from jax.experimental.pallas import tpu as pltpu

NUM_LAYERS = 6
LEAKY_SLOPE = 0.2
BN_EPS = 1e-5
LANE = 128
BF16_SUBLANE = 16                  # bf16 packed vreg is (16, 128): 16-row granularity
MAX_TB = 512                       # batch tile: amortizes per-step overhead on all gens
VMEM_LIMIT = 64 * 1024 * 1024      # lift v5e's 16 MiB scoped default; fits every gen


def _round_up(x, m):
    return (x + m - 1) // m * m


def _pad2(a, rows, cols):
    return jnp.pad(a, ((0, rows - a.shape[0]), (0, cols - a.shape[1])))


def _classifier_kernel(x_ref, *refs):
    """refs = [w1, s1, ..., w6, s6, wfc, bfc, out_ref] (bf16 weights, f32 shifts)."""
    out_ref = refs[-1]
    wfc_ref, bfc_ref = refs[-3], refs[-2]
    layer_refs = refs[: 2 * NUM_LAYERS]

    h = x_ref[...]  # bf16 (TB, in_pad)
    for i in range(NUM_LAYERS):
        w_ref = layer_refs[2 * i]
        shift_ref = layer_refs[2 * i + 1]
        # conv(3x3, pad=1) on 1x1 spatial == center-tap matmul; eval-mode BN
        # scale folded into weight columns -> dot (MXU) + shift (VPU).
        y = jnp.dot(h, w_ref[...], preferred_element_type=jnp.float32)
        y = y + shift_ref[...]
        # LeakyReLU(0.2): mul + max instead of cmp + mul + select.
        h = jnp.maximum(y, LEAKY_SLOPE * y).astype(jnp.bfloat16)

    out_ref[...] = (
        jnp.dot(h, wfc_ref[...], preferred_element_type=jnp.float32) + bfc_ref[...]
    )


def make_params(key, in_dim, source_cam, target_cam):
    """Deterministically build parameters matching CameraClassifier.__init__."""
    dims = [in_dim, 1024, 512, 256, 128, 64, 32]
    num_classes = source_cam + target_cam + 1
    params = {"layers": [], "fc": None}
    for i in range(NUM_LAYERS):
        key, kw, kb, kg, kbe, km, kv = jax.random.split(key, 7)
        c_in, c_out = dims[i], dims[i + 1]
        conv_w = 0.05 * jax.random.normal(kw, (c_out, c_in, 3, 3), jnp.float32)
        conv_b = 0.05 * jax.random.normal(kb, (c_out,), jnp.float32)
        gamma = 1.0 + 0.1 * jax.random.normal(kg, (c_out,), jnp.float32)
        beta = 0.1 * jax.random.normal(kbe, (c_out,), jnp.float32)
        run_mean = 0.1 * jax.random.normal(km, (c_out,), jnp.float32)
        run_var = jnp.abs(jax.random.normal(kv, (c_out,), jnp.float32)) + 0.5
        params["layers"].append(
            dict(conv_w=conv_w, conv_b=conv_b, gamma=gamma, beta=beta,
                 mean=run_mean, var=run_var)
        )
    key, kfw, kfb = jax.random.split(key, 3)
    fc_w = 0.05 * jax.random.normal(kfw, (num_classes, 32), jnp.float32)
    fc_b = 0.05 * jax.random.normal(kfb, (num_classes,), jnp.float32)
    params["fc"] = (fc_w, fc_b)
    return params


def _fold_layer(layer):
    """Fold conv-bias + eval-mode BatchNorm into (W_with_scale, shift)."""
    w_center = layer["conv_w"][:, :, 1, 1]                    # (c_out, c_in)
    scale = layer["gamma"] / jnp.sqrt(layer["var"] + BN_EPS)  # (c_out,)
    w = jnp.transpose(w_center) * scale[None, :]              # (c_in, c_out), BN folded
    shift = (layer["conv_b"] - layer["mean"]) * scale + layer["beta"]
    return w, shift[None, :]


def prepare_weights(params, in_dim):
    """One-time weight prep (fold BN, pad to 128-lane widths, cast to bf16).

    Hoisted out of the per-call jit so inference calls do no HBM->HBM weight
    reformatting (perf-review item).
    """
    fc_w, fc_b = params["fc"]
    num_classes = fc_w.shape[0]
    in_pad = _round_up(in_dim, LANE)
    out_pad = _round_up(num_classes, LANE)

    flat = []
    d_prev = in_pad
    for layer in params["layers"]:
        w_l, shift_l = _fold_layer(layer)
        d_out = _round_up(w_l.shape[1], LANE)
        flat.append(_pad2(w_l, d_prev, d_out).astype(jnp.bfloat16))
        flat.append(_pad2(shift_l, 1, d_out))                  # f32 shift
        d_prev = d_out
    flat.append(_pad2(jnp.transpose(fc_w), d_prev, out_pad).astype(jnp.bfloat16))
    flat.append(_pad2(fc_b[None, :], 1, out_pad))              # f32 bias
    return tuple(jax.block_until_ready(a) for a in flat), num_classes


@functools.partial(jax.jit, static_argnames=("num_classes", "interpret"))
def camera_classifier_forward(x_nchw, flat, num_classes, interpret=False):
    n, c, h, w = x_nchw.shape
    assert h == 1 and w == 1, "fc(32 -> ...) after squeeze requires 1x1 spatial"

    in_pad = flat[0].shape[0]
    out_pad = flat[-1].shape[1]

    # Batch tiling: 16-row (bf16 packed sublane) granularity, capped at MAX_TB,
    # and always >= 2 grid steps so the "parallel" axis shards across both
    # TensorCores on v7x even for small/medium batches.
    if n <= MAX_TB:
        tb = max(BF16_SUBLANE, _round_up(pl.cdiv(n, 2), BF16_SUBLANE))
        n_pad = 2 * tb
    else:
        tb = MAX_TB
        n_pad = _round_up(n, tb)
    grid = (n_pad // tb,)

    x = x_nchw.reshape(n, c).astype(jnp.bfloat16)  # features -> lanes, bf16 DMA
    x = _pad2(x, n_pad, in_pad)

    # Cost hint for XLA scheduling around the custom call.
    flops = 0
    for i in range(NUM_LAYERS + 1):
        w_i = flat[2 * i]
        flops += 2 * n_pad * w_i.shape[0] * w_i.shape[1]
    bytes_accessed = sum(int(a.size * a.dtype.itemsize) for a in flat)
    bytes_accessed += int(x.size * x.dtype.itemsize) + n_pad * out_pad * 4

    # Weights/shifts use a constant block index -> stay VMEM-resident across
    # batch tiles (Pallas skips re-copying an unchanged block).
    resident = lambda i: (0, 0)
    in_specs = [pl.BlockSpec((tb, in_pad), lambda i: (i, 0))]
    in_specs += [pl.BlockSpec(a.shape, resident) for a in flat]

    out = pl.pallas_call(
        _classifier_kernel,
        out_shape=jax.ShapeDtypeStruct((n_pad, out_pad), jnp.float32),
        grid=grid,
        in_specs=in_specs,
        out_specs=pl.BlockSpec((tb, out_pad), lambda i: (i, 0)),
        compiler_params=pltpu.CompilerParams(
            dimension_semantics=("parallel",),   # megacore split on v7x
            vmem_limit_bytes=VMEM_LIMIT),        # headroom at TB=512 on v5e
        cost_estimate=pl.CostEstimate(
            flops=flops, transcendentals=0, bytes_accessed=bytes_accessed),
        interpret=interpret,
    )(x, *flat)
    return out[:n, :num_classes]


def _reference_forward(x_nchw, params):
    """Pure-JAX reference mirroring the kernel's folded bf16-matmul math."""
    n, c, _, _ = x_nchw.shape
    h = x_nchw.reshape(n, c)
    for layer in params["layers"]:
        w_l, shift_l = _fold_layer(layer)
        y = jnp.dot(h.astype(jnp.bfloat16), w_l.astype(jnp.bfloat16),
                    preferred_element_type=jnp.float32) + shift_l
        h = jnp.maximum(y, LEAKY_SLOPE * y)
    fc_w, fc_b = params["fc"]
    return jnp.dot(h.astype(jnp.bfloat16), jnp.transpose(fc_w).astype(jnp.bfloat16),
                   preferred_element_type=jnp.float32) + fc_b[None, :]


if __name__ == "__main__":
    key = jax.random.PRNGKey(0)
    key, kx, kp = jax.random.split(key, 3)

    # Small, module-consistent shapes: batch=2, in_dim=64, spatial=1x1,
    # source_cam=3, target_cam=4  ->  num_classes = 8.
    batch, in_dim, source_cam, target_cam = 2, 64, 3, 4
    x = jax.random.normal(kx, (batch, in_dim, 1, 1), jnp.float32)  # NCHW
    params = make_params(kp, in_dim, source_cam, target_cam)

    # One-time weight prep (folded / padded / bf16), reused across calls.
    flat, num_classes = prepare_weights(params, in_dim)

    out = camera_classifier_forward(x, flat, num_classes)
    out = jax.block_until_ready(out)

    ref = _reference_forward(x, params)
    assert out.shape == (batch, num_classes)
    assert jnp.allclose(out, ref, atol=1e-2, rtol=1e-2), (
        float(jnp.max(jnp.abs(out - ref))))

    print("KERNEL_OK")
</pallas_src>

<mosaic_0001>
module attributes {stable_mosaic.version = 11 : i64} {
  func.func @_classifier_kernel(%arg0: i32, %arg1: memref<16x128xbf16, #tpu.memory_space<vmem>>, %arg2: memref<128x1024xbf16, #tpu.memory_space<vmem>>, %arg3: memref<1x1024xf32, #tpu.memory_space<vmem>>, %arg4: memref<1024x512xbf16, #tpu.memory_space<vmem>>, %arg5: memref<1x512xf32, #tpu.memory_space<vmem>>, %arg6: memref<512x256xbf16, #tpu.memory_space<vmem>>, %arg7: memref<1x256xf32, #tpu.memory_space<vmem>>, %arg8: memref<256x128xbf16, #tpu.memory_space<vmem>>, %arg9: memref<1x128xf32, #tpu.memory_space<vmem>>, %arg10: memref<128x128xbf16, #tpu.memory_space<vmem>>, %arg11: memref<1x128xf32, #tpu.memory_space<vmem>>, %arg12: memref<128x128xbf16, #tpu.memory_space<vmem>>, %arg13: memref<1x128xf32, #tpu.memory_space<vmem>>, %arg14: memref<128x128xbf16, #tpu.memory_space<vmem>>, %arg15: memref<1x128xf32, #tpu.memory_space<vmem>>, %arg16: memref<16x128xf32, #tpu.memory_space<vmem>>) attributes {dimension_semantics = [#tpu.dimension_semantics<parallel>], iteration_bounds = array<i64: 2>, scalar_prefetch = 0 : i64, scratch_operands = 0 : i64, tpu.core_type = #tpu.core_type<tc>, window_params = [{transform_indices = @transform_0, window_bounds = array<i64: 16, 128>}, {pipeline_mode = #tpu.pipeline_mode<synchronous>, transform_indices = @transform_1, window_bounds = array<i64: 128, 1024>}, {pipeline_mode = #tpu.pipeline_mode<synchronous>, transform_indices = @transform_2, window_bounds = array<i64: 1, 1024>}, {pipeline_mode = #tpu.pipeline_mode<synchronous>, transform_indices = @transform_3, window_bounds = array<i64: 1024, 512>}, {pipeline_mode = #tpu.pipeline_mode<synchronous>, transform_indices = @transform_4, window_bounds = array<i64: 1, 512>}, {pipeline_mode = #tpu.pipeline_mode<synchronous>, transform_indices = @transform_5, window_bounds = array<i64: 512, 256>}, {pipeline_mode = #tpu.pipeline_mode<synchronous>, transform_indices = @transform_6, window_bounds = array<i64: 1, 256>}, {pipeline_mode = #tpu.pipeline_mode<synchronous>, transform_indices = @transform_7, window_bounds = array<i64: 256, 128>}, {pipeline_mode = #tpu.pipeline_mode<synchronous>, transform_indices = @transform_8, window_bounds = array<i64: 1, 128>}, {pipeline_mode = #tpu.pipeline_mode<synchronous>, transform_indices = @transform_9, window_bounds = array<i64: 128, 128>}, {pipeline_mode = #tpu.pipeline_mode<synchronous>, transform_indices = @transform_10, window_bounds = array<i64: 1, 128>}, {pipeline_mode = #tpu.pipeline_mode<synchronous>, transform_indices = @transform_11, window_bounds = array<i64: 128, 128>}, {pipeline_mode = #tpu.pipeline_mode<synchronous>, transform_indices = @transform_12, window_bounds = array<i64: 1, 128>}, {pipeline_mode = #tpu.pipeline_mode<synchronous>, transform_indices = @transform_13, window_bounds = array<i64: 128, 128>}, {pipeline_mode = #tpu.pipeline_mode<synchronous>, transform_indices = @transform_14, window_bounds = array<i64: 1, 128>}, {transform_indices = @transform_15, window_bounds = array<i64: 16, 128>}]} {
    %c0 = arith.constant 0 : index
    %c0_0 = arith.constant 0 : index
    %0 = vector.load %arg1[%c0, %c0_0] : memref<16x128xbf16, #tpu.memory_space<vmem>>, vector<16x128xbf16>
    %c0_1 = arith.constant 0 : index
    %c0_2 = arith.constant 0 : index
    %1 = vector.load %arg2[%c0_1, %c0_2] : memref<128x1024xbf16, #tpu.memory_space<vmem>>, vector<128x1024xbf16>
    %cst = arith.constant dense<0.000000e+00> : vector<16x1024xf32>
    %2 = tpu.matmul %0, %1, %cst {dimension_numbers = #tpu.dot_dimension_numbers<[1], [0], [0], [1], [0, 0, 1, 1], [], []>} : vector<16x128xbf16>, vector<128x1024xbf16>, vector<16x1024xf32> -> vector<16x1024xf32>
    %c0_3 = arith.constant 0 : index
    %c0_4 = arith.constant 0 : index
    %3 = vector.load %arg3[%c0_3, %c0_4] : memref<1x1024xf32, #tpu.memory_space<vmem>>, vector<1x1024xf32>
    %4 = vector.broadcast %3 : vector<1x1024xf32> to vector<16x1024xf32>
    %5 = arith.addf %2, %4 : vector<16x1024xf32>
    %cst_5 = arith.constant 2.000000e-01 : f32
    %6 = vector.broadcast %cst_5 : f32 to vector<16x1024xf32>
    %7 = arith.mulf %6, %5 : vector<16x1024xf32>
    %8 = arith.maximumf %5, %7 : vector<16x1024xf32>
    %9 = arith.truncf %8 : vector<16x1024xf32> to vector<16x1024xbf16>
    %c0_6 = arith.constant 0 : index
    %c0_7 = arith.constant 0 : index
    %10 = vector.load %arg4[%c0_6, %c0_7] : memref<1024x512xbf16, #tpu.memory_space<vmem>>, vector<1024x512xbf16>
    %cst_8 = arith.constant dense<0.000000e+00> : vector<16x512xf32>
    %11 = tpu.matmul %9, %10, %cst_8 {dimension_numbers = #tpu.dot_dimension_numbers<[1], [0], [0], [1], [0, 0, 1, 1], [], []>} : vector<16x1024xbf16>, vector<1024x512xbf16>, vector<16x512xf32> -> vector<16x512xf32>
    %c0_9 = arith.constant 0 : index
    %c0_10 = arith.constant 0 : index
    %12 = vector.load %arg5[%c0_9, %c0_10] : memref<1x512xf32, #tpu.memory_space<vmem>>, vector<1x512xf32>
    %13 = vector.broadcast %12 : vector<1x512xf32> to vector<16x512xf32>
    %14 = arith.addf %11, %13 : vector<16x512xf32>
    %cst_11 = arith.constant 2.000000e-01 : f32
    %15 = vector.broadcast %cst_11 : f32 to vector<16x512xf32>
    %16 = arith.mulf %15, %14 : vector<16x512xf32>
    %17 = arith.maximumf %14, %16 : vector<16x512xf32>
    %18 = arith.truncf %17 : vector<16x512xf32> to vector<16x512xbf16>
    %c0_12 = arith.constant 0 : index
    %c0_13 = arith.constant 0 : index
    %19 = vector.load %arg6[%c0_12, %c0_13] : memref<512x256xbf16, #tpu.memory_space<vmem>>, vector<512x256xbf16>
    %cst_14 = arith.constant dense<0.000000e+00> : vector<16x256xf32>
    %20 = tpu.matmul %18, %19, %cst_14 {dimension_numbers = #tpu.dot_dimension_numbers<[1], [0], [0], [1], [0, 0, 1, 1], [], []>} : vector<16x512xbf16>, vector<512x256xbf16>, vector<16x256xf32> -> vector<16x256xf32>
    %c0_15 = arith.constant 0 : index
    %c0_16 = arith.constant 0 : index
    %21 = vector.load %arg7[%c0_15, %c0_16] : memref<1x256xf32, #tpu.memory_space<vmem>>, vector<1x256xf32>
    %22 = vector.broadcast %21 : vector<1x256xf32> to vector<16x256xf32>
    %23 = arith.addf %20, %22 : vector<16x256xf32>
    %cst_17 = arith.constant 2.000000e-01 : f32
    %24 = vector.broadcast %cst_17 : f32 to vector<16x256xf32>
    %25 = arith.mulf %24, %23 : vector<16x256xf32>
    %26 = arith.maximumf %23, %25 : vector<16x256xf32>
    %27 = arith.truncf %26 : vector<16x256xf32> to vector<16x256xbf16>
    %c0_18 = arith.constant 0 : index
    %c0_19 = arith.constant 0 : index
    %28 = vector.load %arg8[%c0_18, %c0_19] : memref<256x128xbf16, #tpu.memory_space<vmem>>, vector<256x128xbf16>
    %cst_20 = arith.constant dense<0.000000e+00> : vector<16x128xf32>
    %29 = tpu.matmul %27, %28, %cst_20 {dimension_numbers = #tpu.dot_dimension_numbers<[1], [0], [0], [1], [0, 0, 1, 1], [], []>} : vector<16x256xbf16>, vector<256x128xbf16>, vector<16x128xf32> -> vector<16x128xf32>
    %c0_21 = arith.constant 0 : index
    %c0_22 = arith.constant 0 : index
    %30 = vector.load %arg9[%c0_21, %c0_22] : memref<1x128xf32, #tpu.memory_space<vmem>>, vector<1x128xf32>
    %31 = vector.broadcast %30 : vector<1x128xf32> to vector<16x128xf32>
    %32 = arith.addf %29, %31 : vector<16x128xf32>
    %cst_23 = arith.constant 2.000000e-01 : f32
    %33 = vector.broadcast %cst_23 : f32 to vector<16x128xf32>
    %34 = arith.mulf %33, %32 : vector<16x128xf32>
    %35 = arith.maximumf %32, %34 : vector<16x128xf32>
    %36 = arith.truncf %35 : vector<16x128xf32> to vector<16x128xbf16>
    %c0_24 = arith.constant 0 : index
    %c0_25 = arith.constant 0 : index
    %37 = vector.load %arg10[%c0_24, %c0_25] : memref<128x128xbf16, #tpu.memory_space<vmem>>, vector<128x128xbf16>
    %cst_26 = arith.constant dense<0.000000e+00> : vector<16x128xf32>
    %38 = tpu.matmul %36, %37, %cst_26 {dimension_numbers = #tpu.dot_dimension_numbers<[1], [0], [0], [1], [0, 0, 1, 1], [], []>} : vector<16x128xbf16>, vector<128x128xbf16>, vector<16x128xf32> -> vector<16x128xf32>
    %c0_27 = arith.constant 0 : index
    %c0_28 = arith.constant 0 : index
    %39 = vector.load %arg11[%c0_27, %c0_28] : memref<1x128xf32, #tpu.memory_space<vmem>>, vector<1x128xf32>
    %40 = vector.broadcast %39 : vector<1x128xf32> to vector<16x128xf32>
    %41 = arith.addf %38, %40 : vector<16x128xf32>
    %cst_29 = arith.constant 2.000000e-01 : f32
    %42 = vector.broadcast %cst_29 : f32 to vector<16x128xf32>
    %43 = arith.mulf %42, %41 : vector<16x128xf32>
    %44 = arith.maximumf %41, %43 : vector<16x128xf32>
    %45 = arith.truncf %44 : vector<16x128xf32> to vector<16x128xbf16>
    %c0_30 = arith.constant 0 : index
    %c0_31 = arith.constant 0 : index
    %46 = vector.load %arg12[%c0_30, %c0_31] : memref<128x128xbf16, #tpu.memory_space<vmem>>, vector<128x128xbf16>
    %cst_32 = arith.constant dense<0.000000e+00> : vector<16x128xf32>
    %47 = tpu.matmul %45, %46, %cst_32 {dimension_numbers = #tpu.dot_dimension_numbers<[1], [0], [0], [1], [0, 0, 1, 1], [], []>} : vector<16x128xbf16>, vector<128x128xbf16>, vector<16x128xf32> -> vector<16x128xf32>
    %c0_33 = arith.constant 0 : index
    %c0_34 = arith.constant 0 : index
    %48 = vector.load %arg13[%c0_33, %c0_34] : memref<1x128xf32, #tpu.memory_space<vmem>>, vector<1x128xf32>
    %49 = vector.broadcast %48 : vector<1x128xf32> to vector<16x128xf32>
    %50 = arith.addf %47, %49 : vector<16x128xf32>
    %cst_35 = arith.constant 2.000000e-01 : f32
    %51 = vector.broadcast %cst_35 : f32 to vector<16x128xf32>
    %52 = arith.mulf %51, %50 : vector<16x128xf32>
    %53 = arith.maximumf %50, %52 : vector<16x128xf32>
    %54 = arith.truncf %53 : vector<16x128xf32> to vector<16x128xbf16>
    %c0_36 = arith.constant 0 : index
    %c0_37 = arith.constant 0 : index
    %55 = vector.load %arg14[%c0_36, %c0_37] : memref<128x128xbf16, #tpu.memory_space<vmem>>, vector<128x128xbf16>
    %cst_38 = arith.constant dense<0.000000e+00> : vector<16x128xf32>
    %56 = tpu.matmul %54, %55, %cst_38 {dimension_numbers = #tpu.dot_dimension_numbers<[1], [0], [0], [1], [0, 0, 1, 1], [], []>} : vector<16x128xbf16>, vector<128x128xbf16>, vector<16x128xf32> -> vector<16x128xf32>
    %c0_39 = arith.constant 0 : index
    %c0_40 = arith.constant 0 : index
    %57 = vector.load %arg15[%c0_39, %c0_40] : memref<1x128xf32, #tpu.memory_space<vmem>>, vector<1x128xf32>
    %58 = vector.broadcast %57 : vector<1x128xf32> to vector<16x128xf32>
    %59 = arith.addf %56, %58 : vector<16x128xf32>
    %c0_41 = arith.constant 0 : index
    %c0_42 = arith.constant 0 : index
    %60 = vector.load %arg16[%c0_41, %c0_42] : memref<16x128xf32, #tpu.memory_space<vmem>>, vector<16x128xf32>
    tpu.vector_store %arg16[%c0_41, %c0_42], %59 {strides = array<i32>} : memref<16x128xf32, #tpu.memory_space<vmem>>, vector<16x128xf32>,
    return
  }
  func.func @transform_0(%arg0: i32) -> (i32, i32) {
    %c0_i32 = arith.constant 0 : i32
    %c0_i32_0 = arith.constant 0 : i32
    return %arg0, %c0_i32 : i32, i32
  }
  func.func @transform_1(%arg0: i32) -> (i32, i32) {
    %c0_i32 = arith.constant 0 : i32
    %c0_i32_0 = arith.constant 0 : i32
    %c0_i32_1 = arith.constant 0 : i32
    return %c0_i32, %c0_i32_0 : i32, i32
  }
  func.func @transform_2(%arg0: i32) -> (i32, i32) {
    %c0_i32 = arith.constant 0 : i32
    %c0_i32_0 = arith.constant 0 : i32
    %c0_i32_1 = arith.constant 0 : i32
    return %c0_i32, %c0_i32_0 : i32, i32
  }
  func.func @transform_3(%arg0: i32) -> (i32, i32) {
    %c0_i32 = arith.constant 0 : i32
    %c0_i32_0 = arith.constant 0 : i32
    %c0_i32_1 = arith.constant 0 : i32
    return %c0_i32, %c0_i32_0 : i32, i32
  }
  func.func @transform_4(%arg0: i32) -> (i32, i32) {
    %c0_i32 = arith.constant 0 : i32
    %c0_i32_0 = arith.constant 0 : i32
    %c0_i32_1 = arith.constant 0 : i32
    return %c0_i32, %c0_i32_0 : i32, i32
  }
  func.func @transform_5(%arg0: i32) -> (i32, i32) {
    %c0_i32 = arith.constant 0 : i32
    %c0_i32_0 = arith.constant 0 : i32
    %c0_i32_1 = arith.constant 0 : i32
    return %c0_i32, %c0_i32_0 : i32, i32
  }
  func.func @transform_6(%arg0: i32) -> (i32, i32) {
    %c0_i32 = arith.constant 0 : i32
    %c0_i32_0 = arith.constant 0 : i32
    %c0_i32_1 = arith.constant 0 : i32
    return %c0_i32, %c0_i32_0 : i32, i32
  }
  func.func @transform_7(%arg0: i32) -> (i32, i32) {
    %c0_i32 = arith.constant 0 : i32
    %c0_i32_0 = arith.constant 0 : i32
    %c0_i32_1 = arith.constant 0 : i32
    return %c0_i32, %c0_i32_0 : i32, i32
  }
  func.func @transform_8(%arg0: i32) -> (i32, i32) {
    %c0_i32 = arith.constant 0 : i32
    %c0_i32_0 = arith.constant 0 : i32
    %c0_i32_1 = arith.constant 0 : i32
    return %c0_i32, %c0_i32_0 : i32, i32
  }
  func.func @transform_9(%arg0: i32) -> (i32, i32) {
    %c0_i32 = arith.constant 0 : i32
    %c0_i32_0 = arith.constant 0 : i32
    %c0_i32_1 = arith.constant 0 : i32
    return %c0_i32, %c0_i32_0 : i32, i32
  }
  func.func @transform_10(%arg0: i32) -> (i32, i32) {
    %c0_i32 = arith.constant 0 : i32
    %c0_i32_0 = arith.constant 0 : i32
    %c0_i32_1 = arith.constant 0 : i32
    return %c0_i32, %c0_i32_0 : i32, i32
  }
  func.func @transform_11(%arg0: i32) -> (i32, i32) {
    %c0_i32 = arith.constant 0 : i32
    %c0_i32_0 = arith.constant 0 : i32
    %c0_i32_1 = arith.constant 0 : i32
    return %c0_i32, %c0_i32_0 : i32, i32
  }
  func.func @transform_12(%arg0: i32) -> (i32, i32) {
    %c0_i32 = arith.constant 0 : i32
    %c0_i32_0 = arith.constant 0 : i32
    %c0_i32_1 = arith.constant 0 : i32
    return %c0_i32, %c0_i32_0 : i32, i32
  }
  func.func @transform_13(%arg0: i32) -> (i32, i32) {
    %c0_i32 = arith.constant 0 : i32
    %c0_i32_0 = arith.constant 0 : i32
    %c0_i32_1 = arith.constant 0 : i32
    return %c0_i32, %c0_i32_0 : i32, i32
  }
  func.func @transform_14(%arg0: i32) -> (i32, i32) {
    %c0_i32 = arith.constant 0 : i32
    %c0_i32_0 = arith.constant 0 : i32
    %c0_i32_1 = arith.constant 0 : i32
    return %c0_i32, %c0_i32_0 : i32, i32
  }
  func.func @transform_15(%arg0: i32) -> (i32, i32) {
    %c0_i32 = arith.constant 0 : i32
    %c0_i32_0 = arith.constant 0 : i32
    return %arg0, %c0_i32 : i32, i32
  }
}

</mosaic_0001>

<llo_original>
// kernel: camera_classifier_forward.1
$region0: #{camera_classifier_forward.1}
  #allocation0 [shape = 'u32[]', space=smem, size = 0x4, offset = 0x4, fixed_abs, tag = 'smem constant byte address 0x4 - core index']
  #allocation1 [shape = 'u32[72,128]{1,0:T(1,128)}', space=vmem, size = 0x9000, scoped, tag = 'internal scratch']
  %s0 = inlined_call_operand.vmem [shape: bf16[32,128], index: 0, kind: input, shape index: {}]
  %s1 = inlined_call_operand.hbm [shape: bf16[128,1024], index: 1, kind: input, shape index: {}]
  %s2 = inlined_call_operand.vmem [shape: f32[1,1024], index: 2, kind: input, shape index: {}]
  %s3 = inlined_call_operand.hbm [shape: bf16[1024,512], index: 3, kind: input, shape index: {}]
  %s4 = inlined_call_operand.vmem [shape: f32[1,512], index: 4, kind: input, shape index: {}]
  %s5 = inlined_call_operand.hbm [shape: bf16[512,256], index: 5, kind: input, shape index: {}]
  %s6 = inlined_call_operand.vmem [shape: f32[1,256], index: 6, kind: input, shape index: {}]
  %s7 = inlined_call_operand.hbm [shape: bf16[256,128], index: 7, kind: input, shape index: {}]
  %s8 = inlined_call_operand.vmem [shape: f32[1,128], index: 8, kind: input, shape index: {}]
  %s9 = inlined_call_operand.hbm [shape: bf16[128,128], index: 9, kind: input, shape index: {}]
  %s10 = inlined_call_operand.vmem [shape: f32[1,128], index: 10, kind: input, shape index: {}]
  %s11 = inlined_call_operand.hbm [shape: bf16[128,128], index: 11, kind: input, shape index: {}]
  %s12 = inlined_call_operand.vmem [shape: f32[1,128], index: 12, kind: input, shape index: {}]
  %s13 = inlined_call_operand.hbm [shape: bf16[128,128], index: 13, kind: input, shape index: {}]
  %s14 = inlined_call_operand.vmem [shape: f32[1,128], index: 14, kind: input, shape index: {}]
  %s15 = inlined_call_operand.vmem [shape: f32[32,128], index: 15, kind: output, shape index: {}]
  %s16 = sld [smem:[#allocation0]]
  $region121: #{camera_classifier_forward.1} parent=0
    _
  %s18 = ssub.s32 1, %s16
  %s19 = scalar_select 0, %s18, %s16
  $region1: #{camera_classifier_forward.1} parent=0
    #allocation2 [shape = 'u8[262144]{0}', space=vmem, size = 0x40000, scoped, tag = 'input window, operand 1, single buffered']
    #allocation3 [shape = 's32[2]{0}', space=sflag, size = 0x8, scoped, tag = 'scoped memory for camera_classifier_forward.1']
    #allocation4 [shape = 'u8[1048576]{0}', space=vmem, size = 0x100000, scoped, tag = 'input window, operand 3, single buffered']
    #allocation5 [shape = 's32[1]{0}', space=sflag, size = 0x4, scoped, tag = 'scoped memory for camera_classifier_forward.1']
    #allocation6 [shape = 'u8[262144]{0}', space=vmem, size = 0x40000, scoped, tag = 'input window, operand 5, single buffered']
    #allocation7 [shape = 'u8[65536]{0}', space=vmem, size = 0x10000, scoped, tag = 'input window, operand 7, single buffered']
    #allocation8 [shape = 's32[1]{0}', space=sflag, size = 0x4, scoped, tag = 'scoped memory for camera_classifier_forward.1']
    #allocation9 [shape = 'u8[32768]{0}', space=vmem, size = 0x8000, scoped, tag = 'input window, operand 9, single buffered']
    #allocation10 [shape = 'u8[32768]{0}', space=vmem, size = 0x8000, scoped, tag = 'input window, operand 11, single buffered']
    #allocation11 [shape = 's32[1]{0}', space=sflag, size = 0x4, scoped, tag = 'scoped memory for camera_classifier_forward.1']
    #allocation12 [shape = 'u8[32768]{0}', space=vmem, size = 0x8000, scoped, tag = 'input window, operand 13, single buffered']
    %20 = vsyncpa [#allocation3], 0
    %21 = vsyncpa [#allocation5], 0
    %22 = vsyncpa [#allocation8], 0
    %23 = vsyncpa [#allocation11], 0
    loop: start=0, step=1, limit=4
    $region2: #{camera_classifier_forward.1} parent=1 // loop_pre_header
      _
    $region3: #{camera_classifier_forward.1} parent=1 // loop_header
      %s25 = sphi 0, %s29
      %p26 = scmp.ge.s32.totalorder %s25, 4
      %s35 = sphi 0, %s37
      %s38 = sphi 0, %s35
      %s39 = sphi 0, %s38
      %s55 = sphi 0, %s39
      %s59 = sphi 0, %s59
      %s61 = sphi 0, %s59
      %s62 = sphi 0, %s61
      %s76 = sphi 0, %s62
      %s80 = sphi 0, %s80
      %s82 = sphi 0, %s80
      %s83 = sphi 0, %s82
      %s97 = sphi 0, %s83
      %s101 = sphi 0, %s101
      %s103 = sphi 0, %s101
      %s104 = sphi 0, %s103
      %s118 = sphi 0, %s104
      %s122 = sphi 0, %s122
      %s124 = sphi 0, %s122
      %s125 = sphi 0, %s124
      %s139 = sphi 0, %s125
      %s143 = sphi 0, %s143
      %s145 = sphi 0, %s143
      %s146 = sphi 0, %s145
      %s160 = sphi 0, %s146
      %s164 = sphi 0, %s164
      %s166 = sphi 0, %s164
      %s167 = sphi 0, %s166
      %s181 = sphi 0, %s167
      %s185 = sphi 0, %s185
      %s187 = sphi 0, %s185
      %s188 = sphi 0, %s187
      %s202 = sphi 0, %s188
      %s206 = sphi 0, %s206
      %s208 = sphi 0, %s206
      %s209 = sphi 0, %s208
      %s223 = sphi 0, %s209
      %s227 = sphi 0, %s227
      %s229 = sphi 0, %s227
      %s230 = sphi 0, %s229
      %s244 = sphi 0, %s230
      %s248 = sphi 0, %s248
      %s250 = sphi 0, %s248
      %s251 = sphi 0, %s250
      %s265 = sphi 0, %s251
      %s269 = sphi 0, %s269
      %s271 = sphi 0, %s269
      %s272 = sphi 0, %s271
      %s286 = sphi 0, %s272
      %s290 = sphi 0, %s290
      %s292 = sphi 0, %s290
      %s293 = sphi 0, %s292
      %s307 = sphi 0, %s293
      %s311 = sphi 0, %s311
      %s313 = sphi 0, %s311
      %s314 = sphi 0, %s313
      %s328 = sphi 0, %s314
      %s332 = sphi 0, %s332
      %s334 = sphi 0, %s332
      %s335 = sphi 0, %s334
      %s349 = sphi 0, %s335
      %s355 = sphi 0, %s357
      %s358 = sphi 0, %s355
      %s359 = sphi 0, %s358
      %s375 = sphi 0, %s359
    $region4: #{camera_classifier_forward.1} parent=1 // loop_header_branch
      %28 = sbr.rel (%p26) target = $region8
    $region5: #{camera_classifier_forward.1} parent=1 // loop_body
      %s30 = ssub.s32 %s25, 1
      %s31 = ssub.s32 %s25, 2
      %s32 = sadd.s32 %s25, 1
      %s33 = ssub.s32 %s25, %s32
      %p34 = scmp.eq.s32.totalorder %s33, 0
      %s36 = sadd.s32 %s35, 1
      %s37 = scalar_select %p34, %s35, %s36
      %p40 = pneg %p34
      %p41 = scmp.eq.s32.totalorder %s25, 1
      %p42 = por %p40, %p41
      %p43 = scmp.ne.s32.totalorder %s35, %s38
      %p44 = scmp.eq.s32.totalorder %s25, 0
      %p45 = por %p43, %p44
      %p46 = scmp.ne.s32.totalorder %s35, %s38
      %p47 = scmp.eq.s32.totalorder %s30, 1
      %p48 = por %p46, %p47
      %p49 = scmp.ne.s32.totalorder %s38, %s39
      %p50 = scmp.eq.s32.totalorder %s30, 0
      %p51 = por %p49, %p50
      %p52 = scmp.ne.s32.totalorder %s38, %s39
      %p53 = scmp.eq.s32.totalorder %s31, 1
      %p54 = por %p52, %p53
      %p56 = scmp.ne.s32.totalorder %s39, %s55
      %p57 = scmp.eq.s32.totalorder %s31, 0
      %p58 = por %p56, %p57
      %s60 = sadd.s32 %s59, 1
      %p63 = scmp.eq.s32.totalorder %s25, 1
      %p64 = scmp.ne.s32.totalorder %s59, %s61
      %p65 = scmp.eq.s32.totalorder %s25, 0
      %p66 = por %p64, %p65
      %p67 = scmp.ne.s32.totalorder %s59, %s61
      %p68 = scmp.eq.s32.totalorder %s30, 1
      %p69 = por %p67, %p68
      %p70 = scmp.ne.s32.totalorder %s61, %s62
      %p71 = scmp.eq.s32.totalorder %s30, 0
      %p72 = por %p70, %p71
      %p73 = scmp.ne.s32.totalorder %s61, %s62
      %p74 = scmp.eq.s32.totalorder %s31, 1
      %p75 = por %p73, %p74
      %p77 = scmp.ne.s32.totalorder %s62, %s76
      %p78 = scmp.eq.s32.totalorder %s31, 0
      %p79 = por %p77, %p78
      %s81 = sadd.s32 %s80, 1
      %p84 = scmp.eq.s32.totalorder %s25, 1
      %p85 = scmp.ne.s32.totalorder %s80, %s82
      %p86 = scmp.eq.s32.totalorder %s25, 0
      %p87 = por %p85, %p86
      %p88 = scmp.ne.s32.totalorder %s80, %s82
      %p89 = scmp.eq.s32.totalorder %s30, 1
      %p90 = por %p88, %p89
      %p91 = scmp.ne.s32.totalorder %s82, %s83
      %p92 = scmp.eq.s32.totalorder %s30, 0
      %p93 = por %p91, %p92
      %p94 = scmp.ne.s32.totalorder %s82, %s83
      %p95 = scmp.eq.s32.totalorder %s31, 1
      %p96 = por %p94, %p95
      %p98 = scmp.ne.s32.totalorder %s83, %s97
      %p99 = scmp.eq.s32.totalorder %s31, 0
      %p100 = por %p98, %p99
      %s102 = sadd.s32 %s101, 1
      %p105 = scmp.eq.s32.totalorder %s25, 1
      %p106 = scmp.ne.s32.totalorder %s101, %s103
      %p107 = scmp.eq.s32.totalorder %s25, 0
      %p108 = por %p106, %p107
      %p109 = scmp.ne.s32.totalorder %s101, %s103
      %p110 = scmp.eq.s32.totalorder %s30, 1
      %p111 = por %p109, %p110
      %p112 = scmp.ne.s32.totalorder %s103, %s104
      %p113 = scmp.eq.s32.totalorder %s30, 0
      %p114 = por %p112, %p113
      %p115 = scmp.ne.s32.totalorder %s103, %s104
      %p116 = scmp.eq.s32.totalorder %s31, 1
      %p117 = por %p115, %p116
      %p119 = scmp.ne.s32.totalorder %s104, %s118
      %p120 = scmp.eq.s32.totalorder %s31, 0
      %p121 = por %p119, %p120
      %s123 = sadd.s32 %s122, 1
      %p126 = scmp.eq.s32.totalorder %s25, 1
      %p127 = scmp.ne.s32.totalorder %s122, %s124
      %p128 = scmp.eq.s32.totalorder %s25, 0
      %p129 = por %p127, %p128
      %p130 = scmp.ne.s32.totalorder %s122, %s124
      %p131 = scmp.eq.s32.totalorder %s30, 1
      %p132 = por %p130, %p131
      %p133 = scmp.ne.s32.totalorder %s124, %s125
      %p134 = scmp.eq.s32.totalorder %s30, 0
      %p135 = por %p133, %p134
      %p136 = scmp.ne.s32.totalorder %s124, %s125
      %p137 = scmp.eq.s32.totalorder %s31, 1
      %p138 = por %p136, %p137
      %p140 = scmp.ne.s32.totalorder %s125, %s139
      %p141 = scmp.eq.s32.totalorder %s31, 0
      %p142 = por %p140, %p141
      %s144 = sadd.s32 %s143, 1
      %p147 = scmp.eq.s32.totalorder %s25, 1
      %p148 = scmp.ne.s32.totalorder %s143, %s145
      %p149 = scmp.eq.s32.totalorder %s25, 0
      %p150 = por %p148, %p149
      %p151 = scmp.ne.s32.totalorder %s143, %s145
      %p152 = scmp.eq.s32.totalorder %s30, 1
      %p153 = por %p151, %p152
      %p154 = scmp.ne.s32.totalorder %s145, %s146
      %p155 = scmp.eq.s32.totalorder %s30, 0
      %p156 = por %p154, %p155
      %p157 = scmp.ne.s32.totalorder %s145, %s146
      %p158 = scmp.eq.s32.totalorder %s31, 1
      %p159 = por %p157, %p158
      %p161 = scmp.ne.s32.totalorder %s146, %s160
      %p162 = scmp.eq.s32.totalorder %s31, 0
      %p163 = por %p161, %p162
      %s165 = sadd.s32 %s164, 1
      %p168 = scmp.eq.s32.totalorder %s25, 1
      %p169 = scmp.ne.s32.totalorder %s164, %s166
      %p170 = scmp.eq.s32.totalorder %s25, 0
      %p171 = por %p169, %p170
      %p172 = scmp.ne.s32.totalorder %s164, %s166
      %p173 = scmp.eq.s32.totalorder %s30, 1
      %p174 = por %p172, %p173
      %p175 = scmp.ne.s32.totalorder %s166, %s167
      %p176 = scmp.eq.s32.totalorder %s30, 0
      %p177 = por %p175, %p176
      %p178 = scmp.ne.s32.totalorder %s166, %s167
      %p179 = scmp.eq.s32.totalorder %s31, 1
      %p180 = por %p178, %p179
      %p182 = scmp.ne.s32.totalorder %s167, %s181
      %p183 = scmp.eq.s32.totalorder %s31, 0
      %p184 = por %p182, %p183
      %s186 = sadd.s32 %s185, 1
      %p189 = scmp.eq.s32.totalorder %s25, 1
      %p190 = scmp.ne.s32.totalorder %s185, %s187
      %p191 = scmp.eq.s32.totalorder %s25, 0
      %p192 = por %p190, %p191
      %p193 = scmp.ne.s32.totalorder %s185, %s187
      %p194 = scmp.eq.s32.totalorder %s30, 1
      %p195 = por %p193, %p194
      %p196 = scmp.ne.s32.totalorder %s187, %s188
      %p197 = scmp.eq.s32.totalorder %s30, 0
      %p198 = por %p196, %p197
      %p199 = scmp.ne.s32.totalorder %s187, %s188
      %p200 = scmp.eq.s32.totalorder %s31, 1
      %p201 = por %p199, %p200
      %p203 = scmp.ne.s32.totalorder %s188, %s202
      %p204 = scmp.eq.s32.totalorder %s31, 0
      %p205 = por %p203, %p204
      %s207 = sadd.s32 %s206, 1
      %p210 = scmp.eq.s32.totalorder %s25, 1
      %p211 = scmp.ne.s32.totalorder %s206, %s208
      %p212 = scmp.eq.s32.totalorder %s25, 0
      %p213 = por %p211, %p212
      %p214 = scmp.ne.s32.totalorder %s206, %s208
      %p215 = scmp.eq.s32.totalorder %s30, 1
      %p216 = por %p214, %p215
      %p217 = scmp.ne.s32.totalorder %s208, %s209
      %p218 = scmp.eq.s32.totalorder %s30, 0
      %p219 = por %p217, %p218
      %p220 = scmp.ne.s32.totalorder %s208, %s209
      %p221 = scmp.eq.s32.totalorder %s31, 1
      %p222 = por %p220, %p221
      %p224 = scmp.ne.s32.totalorder %s209, %s223
      %p225 = scmp.eq.s32.totalorder %s31, 0
      %p226 = por %p224, %p225
      %s228 = sadd.s32 %s227, 1
      %p231 = scmp.eq.s32.totalorder %s25, 1
      %p232 = scmp.ne.s32.totalorder %s227, %s229
      %p233 = scmp.eq.s32.totalorder %s25, 0
      %p234 = por %p232, %p233
      %p235 = scmp.ne.s32.totalorder %s227, %s229
      %p236 = scmp.eq.s32.totalorder %s30, 1
      %p237 = por %p235, %p236
      %p238 = scmp.ne.s32.totalorder %s229, %s230
      %p239 = scmp.eq.s32.totalorder %s30, 0
      %p240 = por %p238, %p239
      %p241 = scmp.ne.s32.totalorder %s229, %s230
      %p242 = scmp.eq.s32.totalorder %s31, 1
      %p243 = por %p241, %p242
      %p245 = scmp.ne.s32.totalorder %s230, %s244
      %p246 = scmp.eq.s32.totalorder %s31, 0
      %p247 = por %p245, %p246
      %s249 = sadd.s32 %s248, 1
      %p252 = scmp.eq.s32.totalorder %s25, 1
      %p253 = scmp.ne.s32.totalorder %s248, %s250
      %p254 = scmp.eq.s32.totalorder %s25, 0
      %p255 = por %p253, %p254
      %p256 = scmp.ne.s32.totalorder %s248, %s250
      %p257 = scmp.eq.s32.totalorder %s30, 1
      %p258 = por %p256, %p257
      %p259 = scmp.ne.s32.totalorder %s250, %s251
      %p260 = scmp.eq.s32.totalorder %s30, 0
      %p261 = por %p259, %p260
      %p262 = scmp.ne.s32.totalorder %s250, %s251
      %p263 = scmp.eq.s32.totalorder %s31, 1
      %p264 = por %p262, %p263
      %p266 = scmp.ne.s32.totalorder %s251, %s265
      %p267 = scmp.eq.s32.totalorder %s31, 0
      %p268 = por %p266, %p267
      %s270 = sadd.s32 %s269, 1
      %p273 = scmp.eq.s32.totalorder %s25, 1
      %p274 = scmp.ne.s32.totalorder %s269, %s271
      %p275 = scmp.eq.s32.totalorder %s25, 0
      %p276 = por %p274, %p275
      %p277 = scmp.ne.s32.totalorder %s269, %s271
      %p278 = scmp.eq.s32.totalorder %s30, 1
      %p279 = por %p277, %p278
      %p280 = scmp.ne.s32.totalorder %s271, %s272
      %p281 = scmp.eq.s32.totalorder %s30, 0
      %p282 = por %p280, %p281
      %p283 = scmp.ne.s32.totalorder %s271, %s272
      %p284 = scmp.eq.s32.totalorder %s31, 1
      %p285 = por %p283, %p284
      %p287 = scmp.ne.s32.totalorder %s272, %s286
      %p288 = scmp.eq.s32.totalorder %s31, 0
      %p289 = por %p287, %p288
      %s291 = sadd.s32 %s290, 1
      %p294 = scmp.eq.s32.totalorder %s25, 1
      %p295 = scmp.ne.s32.totalorder %s290, %s292
      %p296 = scmp.eq.s32.totalorder %s25, 0
      %p297 = por %p295, %p296
      %p298 = scmp.ne.s32.totalorder %s290, %s292
      %p299 = scmp.eq.s32.totalorder %s30, 1
      %p300 = por %p298, %p299
      %p301 = scmp.ne.s32.totalorder %s292, %s293
      %p302 = scmp.eq.s32.totalorder %s30, 0
      %p303 = por %p301, %p302
      %p304 = scmp.ne.s32.totalorder %s292, %s293
      %p305 = scmp.eq.s32.totalorder %s31, 1
      %p306 = por %p304, %p305
      %p308 = scmp.ne.s32.totalorder %s293, %s307
      %p309 = scmp.eq.s32.totalorder %s31, 0
      %p310 = por %p308, %p309
      %s312 = sadd.s32 %s311, 1
      %p315 = scmp.eq.s32.totalorder %s25, 1
      %p316 = scmp.ne.s32.totalorder %s311, %s313
      %p317 = scmp.eq.s32.totalorder %s25, 0
      %p318 = por %p316, %p317
      %p319 = scmp.ne.s32.totalorder %s311, %s313
      %p320 = scmp.eq.s32.totalorder %s30, 1
      %p321 = por %p319, %p320
      %p322 = scmp.ne.s32.totalorder %s313, %s314
      %p323 = scmp.eq.s32.totalorder %s30, 0
      %p324 = por %p322, %p323
      %p325 = scmp.ne.s32.totalorder %s313, %s314
      %p326 = scmp.eq.s32.totalorder %s31, 1
      %p327 = por %p325, %p326
      %p329 = scmp.ne.s32.totalorder %s314, %s328
      %p330 = scmp.eq.s32.totalorder %s31, 0
      %p331 = por %p329, %p330
      %s333 = sadd.s32 %s332, 1
      %p336 = scmp.eq.s32.totalorder %s25, 1
      %p337 = scmp.ne.s32.totalorder %s332, %s334
      %p338 = scmp.eq.s32.totalorder %s25, 0
      %p339 = por %p337, %p338
      %p340 = scmp.ne.s32.totalorder %s332, %s334
      %p341 = scmp.eq.s32.totalorder %s30, 1
      %p342 = por %p340, %p341
      %p343 = scmp.ne.s32.totalorder %s334, %s335
      %p344 = scmp.eq.s32.totalorder %s30, 0
      %p345 = por %p343, %p344
      %p346 = scmp.ne.s32.totalorder %s334, %s335
      %p347 = scmp.eq.s32.totalorder %s31, 1
      %p348 = por %p346, %p347
      %p350 = scmp.ne.s32.totalorder %s335, %s349
      %p351 = scmp.eq.s32.totalorder %s31, 0
      %p352 = por %p350, %p351
      %s353 = ssub.s32 %s25, %s32
      %p354 = scmp.eq.s32.totalorder %s353, 0
      %s356 = sadd.s32 %s355, 1
      %s357 = scalar_select %p354, %s355, %s356
      %p360 = pneg %p354
      %p361 = scmp.eq.s32.totalorder %s25, 1
      %p362 = por %p360, %p361
      %p363 = scmp.ne.s32.totalorder %s355, %s358
      %p364 = scmp.eq.s32.totalorder %s25, 0
      %p365 = por %p363, %p364
      %p366 = scmp.ne.s32.totalorder %s355, %s358
      %p367 = scmp.eq.s32.totalorder %s30, 1
      %p368 = por %p366, %p367
      %p369 = scmp.ne.s32.totalorder %s358, %s359
      %p370 = scmp.eq.s32.totalorder %s30, 0
      %p371 = por %p369, %p370
      %p372 = scmp.ne.s32.totalorder %s358, %s359
      %p373 = scmp.eq.s32.totalorder %s31, 1
      %p374 = por %p372, %p373
      %p376 = scmp.ne.s32.totalorder %s359, %s375
      %p377 = scmp.eq.s32.totalorder %s31, 0
      %p378 = por %p376, %p377
      %p379 = scmp.le.s32.totalorder 1, %s25
      %p380 = scmp.lt.s32.totalorder %s25, 3
      %p381 = pnand %p379, %p380
      %p382 = pneg %p381
      // Predicated region
      $region9: #{camera_classifier_forward.1} parent=5 // pred_check
        _
      $region10: #{camera_classifier_forward.1} parent=5 // pred_check_branch
        %384 = sbr.rel (%p381) target = $region12
      $region11: #{camera_classifier_forward.1} parent=5 // pred_region
        %s385 = ssub.s32 %s25, 1
        // Predicated region
        $region13: #{camera_classifier_forward.1} parent=11 // pred_check
          %p386 = pneg %p72
        $region14: #{camera_classifier_forward.1} parent=11 // pred_check_branch
          %388 = sbr.rel (%p386) target = $region16
        $region15: #{camera_classifier_forward.1} parent=11 // pred_region
          %390 = vsyncadd [#allocation3], 0
          %s391 = sshll.u32 %s1, 4
          %s392 = int_to_ptr.hbm [resolvable:$true] %s391
          %s393 = sshll.u32 [#allocation2], 4
          %s394 = int_to_ptr.vmem [resolvable:$true] %s393
          %399 = dma.hbm_to_vmem [thread:$0]  %s392, 8192, %s394, [#allocation3], 512, 512, 32
        $region16: #{camera_classifier_forward.1} parent=11 // pred_fallthru
          _
        // Predicated region
        $region17: #{camera_classifier_forward.1} parent=11 // pred_check
          %p400 = pneg %p93
        $region18: #{camera_classifier_forward.1} parent=11 // pred_check_branch
          %402 = sbr.rel (%p400) target = $region20
        $region19: #{camera_classifier_forward.1} parent=11 // pred_region
          _
        $region20: #{camera_classifier_forward.1} parent=11 // pred_fallthru
          _
        // Predicated region
        $region21: #{camera_classifier_forward.1} parent=11 // pred_check
          %p403 = pneg %p114
        $region22: #{camera_classifier_forward.1} parent=11 // pred_check_branch
          %405 = sbr.rel (%p403) target = $region24
        $region23: #{camera_classifier_forward.1} parent=11 // pred_region
          %407 = vsyncadd [#allocation5], 0
          %s408 = sshll.u32 %s3, 4
          %s409 = int_to_ptr.hbm [resolvable:$true] %s408
          %s410 = sshll.u32 [#allocation4], 4
          %s411 = int_to_ptr.vmem [resolvable:$true] %s410
          %416 = dma.hbm_to_vmem [thread:$0]  %s409, 32768, %s411, [#allocation5], 256, 256, 16
        $region24: #{camera_classifier_forward.1} parent=11 // pred_fallthru
          _
        // Predicated region
        $region25: #{camera_classifier_forward.1} parent=11 // pred_check
          %p417 = pneg %p135
        $region26: #{camera_classifier_forward.1} parent=11 // pred_check_branch
          %419 = sbr.rel (%p417) target = $region28
        $region27: #{camera_classifier_forward.1} parent=11 // pred_region
          _
        $region28: #{camera_classifier_forward.1} parent=11 // pred_fallthru
          _
        // Predicated region
        $region29: #{camera_classifier_forward.1} parent=11 // pred_check
          %p420 = pneg %p156
        $region30: #{camera_classifier_forward.1} parent=11 // pred_check_branch
          %422 = sbr.rel (%p420) target = $region32
        $region31: #{camera_classifier_forward.1} parent=11 // pred_region
          %424 = vsyncadd [#allocation5], 0
          %s425 = sshll.u32 %s5, 4
          %s426 = int_to_ptr.hbm [resolvable:$true] %s425
          %s427 = sshll.u32 [#allocation6], 4
          %s428 = int_to_ptr.vmem [resolvable:$true] %s427
          %433 = dma.hbm_to_vmem [thread:$0]  %s426, 8192, %s428, [#allocation5], 128, 128, 8
        $region32: #{camera_classifier_forward.1} parent=11 // pred_fallthru
          _
        // Predicated region
        $region33: #{camera_classifier_forward.1} parent=11 // pred_check
          %p434 = pneg %p177
        $region34: #{camera_classifier_forward.1} parent=11 // pred_check_branch
          %436 = sbr.rel (%p434) target = $region36
        $region35: #{camera_classifier_forward.1} parent=11 // pred_region
          _
        $region36: #{camera_classifier_forward.1} parent=11 // pred_fallthru
          _
        // Predicated region
        $region37: #{camera_classifier_forward.1} parent=11 // pred_check
          %p437 = pneg %p198
        $region38: #{camera_classifier_forward.1} parent=11 // pred_check_branch
          %439 = sbr.rel (%p437) target = $region40
        $region39: #{camera_classifier_forward.1} parent=11 // pred_region
          %441 = vsyncadd [#allocation8], 0
          %s442 = sshll.u32 %s7, 4
          %s443 = int_to_ptr.hbm [resolvable:$true] %s442
          %s444 = sshll.u32 [#allocation7], 4
          %s445 = int_to_ptr.vmem [resolvable:$true] %s444
          %450 = dma.hbm_to_vmem [thread:$0]  %s443, 2048, %s445, [#allocation8], 64, 64, 4
        $region40: #{camera_classifier_forward.1} parent=11 // pred_fallthru
          _
        // Predicated region
        $region41: #{camera_classifier_forward.1} parent=11 // pred_check
          %p451 = pneg %p219
        $region42: #{camera_classifier_forward.1} parent=11 // pred_check_branch
          %453 = sbr.rel (%p451) target = $region44
        $region43: #{camera_classifier_forward.1} parent=11 // pred_region
          _
        $region44: #{camera_classifier_forward.1} parent=11 // pred_fallthru
          _
        // Predicated region
        $region45: #{camera_classifier_forward.1} parent=11 // pred_check
          %p454 = pneg %p240
        $region46: #{camera_classifier_forward.1} parent=11 // pred_check_branch
          %456 = sbr.rel (%p454) target = $region48
        $region47: #{camera_classifier_forward.1} parent=11 // pred_region
          %458 = vsyncadd [#allocation8], 0
          %s459 = sshll.u32 %s9, 4
          %s460 = int_to_ptr.hbm [resolvable:$true] %s459
          %s461 = sshll.u32 [#allocation9], 4
          %s462 = int_to_ptr.vmem [resolvable:$true] %s461
          %467 = dma.hbm_to_vmem [thread:$0]  %s460, 1024, %s462, [#allocation8], 64, 64, 4
        $region48: #{camera_classifier_forward.1} parent=11 // pred_fallthru
          _
        // Predicated region
        $region49: #{camera_classifier_forward.1} parent=11 // pred_check
          %p468 = pneg %p261
        $region50: #{camera_classifier_forward.1} parent=11 // pred_check_branch
          %470 = sbr.rel (%p468) target = $region52
        $region51: #{camera_classifier_forward.1} parent=11 // pred_region
          _
        $region52: #{camera_classifier_forward.1} parent=11 // pred_fallthru
          _
        // Predicated region
        $region53: #{camera_classifier_forward.1} parent=11 // pred_check
          %p471 = pneg %p282
        $region54: #{camera_classifier_forward.1} parent=11 // pred_check_branch
          %473 = sbr.rel (%p471) target = $region56
        $region55: #{camera_classifier_forward.1} parent=11 // pred_region
          %475 = vsyncadd [#allocation11], 0
          %s476 = sshll.u32 %s11, 4
          %s477 = int_to_ptr.hbm [resolvable:$true] %s476
          %s478 = sshll.u32 [#allocation10], 4
          %s479 = int_to_ptr.vmem [resolvable:$true] %s478
          %484 = dma.hbm_to_vmem [thread:$0]  %s477, 1024, %s479, [#allocation11], 64, 64, 4
        $region56: #{camera_classifier_forward.1} parent=11 // pred_fallthru
          _
        // Predicated region
        $region57: #{camera_classifier_forward.1} parent=11 // pred_check
          %p485 = pneg %p303
        $region58: #{camera_classifier_forward.1} parent=11 // pred_check_branch
          %487 = sbr.rel (%p485) target = $region60
        $region59: #{camera_classifier_forward.1} parent=11 // pred_region
          _
        $region60: #{camera_classifier_forward.1} parent=11 // pred_fallthru
          _
        // Predicated region
        $region61: #{camera_classifier_forward.1} parent=11 // pred_check
          %p488 = pneg %p324
        $region62: #{camera_classifier_forward.1} parent=11 // pred_check_branch
          %490 = sbr.rel (%p488) target = $region64
        $region63: #{camera_classifier_forward.1} parent=11 // pred_region
          %492 = vsyncadd [#allocation11], 0
          %s493 = sshll.u32 %s13, 4
          %s494 = int_to_ptr.hbm [resolvable:$true] %s493
          %s495 = sshll.u32 [#allocation12], 4
          %s496 = int_to_ptr.vmem [resolvable:$true] %s495
          %501 = dma.hbm_to_vmem [thread:$0]  %s494, 1024, %s496, [#allocation11], 64, 64, 4
        $region64: #{camera_classifier_forward.1} parent=11 // pred_fallthru
          _
        // Predicated region
        $region65: #{camera_classifier_forward.1} parent=11 // pred_check
          %p502 = pneg %p345
        $region66: #{camera_classifier_forward.1} parent=11 // pred_check_branch
          %504 = sbr.rel (%p502) target = $region68
        $region67: #{camera_classifier_forward.1} parent=11 // pred_region
          _
        $region68: #{camera_classifier_forward.1} parent=11 // pred_fallthru
          _
      $region12: #{camera_classifier_forward.1} parent=5 // pred_fallthru
        _
      %p505 = scmp.lt.s32.totalorder %s25, 2
      // Predicated region
      $region69: #{camera_classifier_forward.1} parent=5 // pred_check
        %p506 = pneg %p505
      $region70: #{camera_classifier_forward.1} parent=5 // pred_check_branch
        %508 = sbr.rel (%p506) target = $region72
      $region71: #{camera_classifier_forward.1} parent=5 // pred_region
        // Predicated region
        $region73: #{camera_classifier_forward.1} parent=71 // pred_check
          %p509 = pneg %p45
        $region74: #{camera_classifier_forward.1} parent=71 // pred_check_branch
          %511 = sbr.rel (%p509) target = $region76
        $region75: #{camera_classifier_forward.1} parent=71 // pred_region
          %s512 = smul.u32 2, %s25
          %p513 = scmp.lt.s32.totalorder %s512, 3
          %s514 = scalar_select %p513, %s512, 3
          %s515 = smul.addr %s514, 4
          %s516 = scalar_lea.vmem %s0, %s515
          %s517 = smul.u32 2, %s25
        $region76: #{camera_classifier_forward.1} parent=71 // pred_fallthru
          _
      $region72: #{camera_classifier_forward.1} parent=5 // pred_fallthru
        _
      %p518 = scmp.le.s32.totalorder 1, %s25
      %p519 = scmp.lt.s32.totalorder %s25, 3
      %p520 = pnand %p518, %p519
      %p521 = pneg %p520
      // Predicated region
      $region77: #{camera_classifier_forward.1} parent=5 // pred_check
        _
      $region78: #{camera_classifier_forward.1} parent=5 // pred_check_branch
        %523 = sbr.rel (%p520) target = $region80
      $region79: #{camera_classifier_forward.1} parent=5 // pred_region
        %s524 = ssub.s32 %s25, 1
        // Predicated region
        $region81: #{camera_classifier_forward.1} parent=79 // pred_check
          %p525 = pneg %p72
        $region82: #{camera_classifier_forward.1} parent=79 // pred_check_branch
          %527 = sbr.rel (%p525) target = $region84
        $region83: #{camera_classifier_forward.1} parent=79 // pred_region
          %529 = dma.done [#allocation3], 8192
        $region84: #{camera_classifier_forward.1} parent=79 // pred_fallthru
          _
        // Predicated region
        $region85: #{camera_classifier_forward.1} parent=79 // pred_check
          %p530 = pneg %p114
        $region86: #{camera_classifier_forward.1} parent=79 // pred_check_branch
          %532 = sbr.rel (%p530) target = $region88
        $region87: #{camera_classifier_forward.1} parent=79 // pred_region
          %534 = dma.done [#allocation5], 32768
        $region88: #{camera_classifier_forward.1} parent=79 // pred_fallthru
          _
        // Predicated region
        $region89: #{camera_classifier_forward.1} parent=79 // pred_check
          %p535 = pneg %p156
        $region90: #{camera_classifier_forward.1} parent=79 // pred_check_branch
          %537 = sbr.rel (%p535) target = $region92
        $region91: #{camera_classifier_forward.1} parent=79 // pred_region
          %539 = dma.done [#allocation5], 8192
        $region92: #{camera_classifier_forward.1} parent=79 // pred_fallthru
          _
        // Predicated region
        $region93: #{camera_classifier_forward.1} parent=79 // pred_check
          %p540 = pneg %p198
        $region94: #{camera_classifier_forward.1} parent=79 // pred_check_branch
          %542 = sbr.rel (%p540) target = $region96
        $region95: #{camera_classifier_forward.1} parent=79 // pred_region
          %544 = dma.done [#allocation8], 2048
        $region96: #{camera_classifier_forward.1} parent=79 // pred_fallthru
          _
        // Predicated region
        $region97: #{camera_classifier_forward.1} parent=79 // pred_check
          %p545 = pneg %p240
        $region98: #{camera_classifier_forward.1} parent=79 // pred_check_branch
          %547 = sbr.rel (%p545) target = $region100
        $region99: #{camera_classifier_forward.1} parent=79 // pred_region
          %549 = dma.done [#allocation8], 1024
        $region100: #{camera_classifier_forward.1} parent=79 // pred_fallthru
          _
        // Predicated region
        $region101: #{camera_classifier_forward.1} parent=79 // pred_check
          %p550 = pneg %p282
        $region102: #{camera_classifier_forward.1} parent=79 // pred_check_branch
          %552 = sbr.rel (%p550) target = $region104
        $region103: #{camera_classifier_forward.1} parent=79 // pred_region
          %554 = dma.done [#allocation11], 1024
        $region104: #{camera_classifier_forward.1} parent=79 // pred_fallthru
          _
        // Predicated region
        $region105: #{camera_classifier_forward.1} parent=79 // pred_check
          %p555 = pneg %p324
        $region106: #{camera_classifier_forward.1} parent=79 // pred_check_branch
          %557 = sbr.rel (%p555) target = $region108
        $region107: #{camera_classifier_forward.1} parent=79 // pred_region
          %559 = dma.done [#allocation11], 1024
        $region108: #{camera_classifier_forward.1} parent=79 // pred_fallthru
          _
        %s560 = smul.u32 2, %s30
        %p561 = scmp.lt.s32.totalorder %s560, 3
        %s562 = scalar_select %p561, %s560, 3
        %s563 = smul.addr %s562, 4
        %s564 = scalar_lea.vmem %s0, %s563
        %p565 = pneg %p51
        %p566 = pneg %p48
        %p567 = pneg %p72
        %p568 = pneg %p69
        %p569 = pneg %p93
        %p570 = pneg %p90
        %p571 = pneg %p114
        %p572 = pneg %p111
        %p573 = pneg %p135
        %p574 = pneg %p132
        %p575 = pneg %p156
        %p576 = pneg %p153
        %p577 = pneg %p177
        %p578 = pneg %p174
        %p579 = pneg %p198
        %p580 = pneg %p195
        %p581 = pneg %p219
        %p582 = pneg %p216
        %p583 = pneg %p240
        %p584 = pneg %p237
        %p585 = pneg %p261
        %p586 = pneg %p258
        %p587 = pneg %p282
        %p588 = pneg %p279
        %p589 = pneg %p303
        %p590 = pneg %p300
        %p591 = pneg %p324
        %p592 = pneg %p321
        %p593 = pneg %p345
        %p594 = pneg %p342
        %p595 = pneg %p371
        %p596 = pneg %p368
        %s597 = smul.u32 2, %s30
        %p598 = scmp.lt.s32.totalorder %s597, 3
        %s599 = scalar_select %p598, %s597, 3
        %s600 = smul.addr %s599, 8
        %s601 = scalar_lea.vmem %s15, %s600
        %s602 = smul.u32 2, %s30
        %p603 = scmp.lt.s32.totalorder %s602, 3
        %s604 = scalar_select %p603, %s602, 3
        %s605 = smul.addr %s604, 4
        %s606 = scalar_lea.vmem %s0, %s605
        %s607 = smul.u32 2, %s30
        %s608 = smul.u32 2, %s30
        %p609 = scmp.lt.s32.totalorder %s608, 3
        %s610 = scalar_select %p609, %s608, 3
        %s611 = smul.addr %s610, 8
        %s612 = scalar_lea.vmem %s15, %s611
        %s613 = smul.u32 2, %s30
        %v614 = vld [vmem:[%s606] sm:$0xf]
        %v615 = vld [vmem:[%s606 + $0x4] sm:$0xf]
        %v616 = vld [vmem:[#allocation2] sm:$0xff]
        %v617 = vld [vmem:[#allocation2 + $0x8] sm:$0xff]
        %v618 = vld [vmem:[#allocation2 + $0x10] sm:$0xff]
        %v619 = vld [vmem:[#allocation2 + $0x18] sm:$0xff]
        %v620 = vld [vmem:[#allocation2 + $0x20] sm:$0xff]
        %v621 = vld [vmem:[#allocation2 + $0x28] sm:$0xff]
        %v622 = vld [vmem:[#allocation2 + $0x30] sm:$0xff]
        %v623 = vld [vmem:[#allocation2 + $0x38] sm:$0xff]
        %v624 = vld [vmem:[#allocation2 + $0x40] sm:$0xff]
        %v625 = vld [vmem:[#allocation2 + $0x48] sm:$0xff]
        %v626 = vld [vmem:[#allocation2 + $0x50] sm:$0xff]
        %v627 = vld [vmem:[#allocation2 + $0x58] sm:$0xff]
        %v628 = vld [vmem:[#allocation2 + $0x60] sm:$0xff]
        %v629 = vld [vmem:[#allocation2 + $0x68] sm:$0xff]
        %v630 = vld [vmem:[#allocation2 + $0x70] sm:$0xff]
        %v631 = vld [vmem:[#allocation2 + $0x78] sm:$0xff]
        %v632 = vld [vmem:[#allocation2 + $0x80] sm:$0xff]
        %v633 = vld [vmem:[#allocation2 + $0x88] sm:$0xff]
        %v634 = vld [vmem:[#allocation2 + $0x90] sm:$0xff]
        %v635 = vld [vmem:[#allocation2 + $0x98] sm:$0xff]
        %v636 = vld [vmem:[#allocation2 + $0xa0] sm:$0xff]
        %v637 = vld [vmem:[#allocation2 + $0xa8] sm:$0xff]
        %v638 = vld [vmem:[#allocation2 + $0xb0] sm:$0xff]
        %v639 = vld [vmem:[#allocation2 + $0xb8] sm:$0xff]
        %v640 = vld [vmem:[#allocation2 + $0xc0] sm:$0xff]
        %v641 = vld [vmem:[#allocation2 + $0xc8] sm:$0xff]
        %v642 = vld [vmem:[#allocation2 + $0xd0] sm:$0xff]
        %v643 = vld [vmem:[#allocation2 + $0xd8] sm:$0xff]
        %v644 = vld [vmem:[#allocation2 + $0xe0] sm:$0xff]
        %v645 = vld [vmem:[#allocation2 + $0xe8] sm:$0xff]
        %v646 = vld [vmem:[#allocation2 + $0xf0] sm:$0xff]
        %v647 = vld [vmem:[#allocation2 + $0xf8] sm:$0xff]
        %v648 = vld [vmem:[#allocation2 + $0x100] sm:$0xff]
        %v649 = vld [vmem:[#allocation2 + $0x108] sm:$0xff]
        %v650 = vld [vmem:[#allocation2 + $0x110] sm:$0xff]
        %v651 = vld [vmem:[#allocation2 + $0x118] sm:$0xff]
        %v652 = vld [vmem:[#allocation2 + $0x120] sm:$0xff]
        %v653 = vld [vmem:[#allocation2 + $0x128] sm:$0xff]
        %v654 = vld [vmem:[#allocation2 + $0x130] sm:$0xff]
        %v655 = vld [vmem:[#allocation2 + $0x138] sm:$0xff]
        %v656 = vld [vmem:[#allocation2 + $0x140] sm:$0xff]
        %v657 = vld [vmem:[#allocation2 + $0x148] sm:$0xff]
        %v658 = vld [vmem:[#allocation2 + $0x150] sm:$0xff]
        %v659 = vld [vmem:[#allocation2 + $0x158] sm:$0xff]
        %v660 = vld [vmem:[#allocation2 + $0x160] sm:$0xff]
        %v661 = vld [vmem:[#allocation2 + $0x168] sm:$0xff]
        %v662 = vld [vmem:[#allocation2 + $0x170] sm:$0xff]
        %v663 = vld [vmem:[#allocation2 + $0x178] sm:$0xff]
        %v664 = vld [vmem:[#allocation2 + $0x180] sm:$0xff]
        %v665 = vld [vmem:[#allocation2 + $0x188] sm:$0xff]
        %v666 = vld [vmem:[#allocation2 + $0x190] sm:$0xff]
        %v667 = vld [vmem:[#allocation2 + $0x198] sm:$0xff]
        %v668 = vld [vmem:[#allocation2 + $0x1a0] sm:$0xff]
        %v669 = vld [vmem:[#allocation2 + $0x1a8] sm:$0xff]
        %v670 = vld [vmem:[#allocation2 + $0x1b0] sm:$0xff]
        %v671 = vld [vmem:[#allocation2 + $0x1b8] sm:$0xff]
        %v672 = vld [vmem:[#allocation2 + $0x1c0] sm:$0xff]
        %v673 = vld [vmem:[#allocation2 + $0x1c8] sm:$0xff]
        %v674 = vld [vmem:[#allocation2 + $0x1d0] sm:$0xff]
        %v675 = vld [vmem:[#allocation2 + $0x1d8] sm:$0xff]
        %v676 = vld [vmem:[#allocation2 + $0x1e0] sm:$0xff]
        %v677 = vld [vmem:[#allocation2 + $0x1e8] sm:$0xff]
        %v678 = vld [vmem:[#allocation2 + $0x1f0] sm:$0xff]
        %v679 = vld [vmem:[#allocation2 + $0x1f8] sm:$0xff]
        %v680 = vld [vmem:[%s2] sm:$0xff]
        %v682 = vperm.slane %v680, 0
        %v683 = vperm.slane %v680, 1
        %v684 = vperm.slane %v680, 2
        %v685 = vperm.slane %v680, 3
        %v686 = vperm.slane %v680, 4
        %v687 = vperm.slane %v680, 5
        %v688 = vperm.slane %v680, 6
        %v689 = vperm.slane %v680, 7
        %v700 = vunpack.c.l.b16 %v614
        %v701 = vunpack.c.l.b16 %v615
        %v702 = vpack.c.b16 %v701, %v700
        %v768 = vunpack.c.l.b16 %v616
        %v769 = vunpack.c.h.b16 %v616
        %v770 = vunpack.c.l.b16 %v617
        %v771 = vunpack.c.h.b16 %v617
        %v772 = vunpack.c.l.b16 %v618
        %v773 = vunpack.c.h.b16 %v618
        %v774 = vunpack.c.l.b16 %v619
        %v775 = vunpack.c.h.b16 %v619
        %v776 = vunpack.c.l.b16 %v620
        %v777 = vunpack.c.h.b16 %v620
        %v778 = vunpack.c.l.b16 %v621
        %v779 = vunpack.c.h.b16 %v621
        %v780 = vunpack.c.l.b16 %v622
        %v781 = vunpack.c.h.b16 %v622
        %v782 = vunpack.c.l.b16 %v623
        %v783 = vunpack.c.h.b16 %v623
        %v784 = vunpack.c.l.b16 %v624
        %v785 = vunpack.c.h.b16 %v624
        %v786 = vunpack.c.l.b16 %v625
        %v787 = vunpack.c.h.b16 %v625
        %v788 = vunpack.c.l.b16 %v626
        %v789 = vunpack.c.h.b16 %v626
        %v790 = vunpack.c.l.b16 %v627
        %v791 = vunpack.c.h.b16 %v627
        %v792 = vunpack.c.l.b16 %v628
        %v793 = vunpack.c.h.b16 %v628
        %v794 = vunpack.c.l.b16 %v629
        %v795 = vunpack.c.h.b16 %v629
        %v796 = vunpack.c.l.b16 %v630
        %v797 = vunpack.c.h.b16 %v630
        %v798 = vunpack.c.l.b16 %v631
        %v799 = vunpack.c.h.b16 %v631
        %v800 = vunpack.c.l.b16 %v632
        %v801 = vunpack.c.h.b16 %v632
        %v802 = vunpack.c.l.b16 %v633
        %v803 = vunpack.c.h.b16 %v633
        %v804 = vunpack.c.l.b16 %v634
        %v805 = vunpack.c.h.b16 %v634
        %v806 = vunpack.c.l.b16 %v635
        %v807 = vunpack.c.h.b16 %v635
        %v808 = vunpack.c.l.b16 %v636
        %v809 = vunpack.c.h.b16 %v636
        %v810 = vunpack.c.l.b16 %v637
        %v811 = vunpack.c.h.b16 %v637
        %v812 = vunpack.c.l.b16 %v638
        %v813 = vunpack.c.h.b16 %v638
        %v814 = vunpack.c.l.b16 %v639
        %v815 = vunpack.c.h.b16 %v639
        %v816 = vunpack.c.l.b16 %v640
        %v817 = vunpack.c.h.b16 %v640
        %v818 = vunpack.c.l.b16 %v641
        %v819 = vunpack.c.h.b16 %v641
        %v820 = vunpack.c.l.b16 %v642
        %v821 = vunpack.c.h.b16 %v642
        %v822 = vunpack.c.l.b16 %v643
        %v823 = vunpack.c.h.b16 %v643
        %v824 = vunpack.c.l.b16 %v644
        %v825 = vunpack.c.h.b16 %v644
        %v826 = vunpack.c.l.b16 %v645
        %v827 = vunpack.c.h.b16 %v645
        %v828 = vunpack.c.l.b16 %v646
        %v829 = vunpack.c.h.b16 %v646
        %v830 = vunpack.c.l.b16 %v647
        %v831 = vunpack.c.h.b16 %v647
        %v832 = vunpack.c.l.b16 %v648
        %v833 = vunpack.c.h.b16 %v648
        %v834 = vunpack.c.l.b16 %v649
        %v835 = vunpack.c.h.b16 %v649
        %v836 = vunpack.c.l.b16 %v650
        %v837 = vunpack.c.h.b16 %v650
        %v838 = vunpack.c.l.b16 %v651
        %v839 = vunpack.c.h.b16 %v651
        %v840 = vunpack.c.l.b16 %v652
        %v841 = vunpack.c.h.b16 %v652
        %v842 = vunpack.c.l.b16 %v653
        %v843 = vunpack.c.h.b16 %v653
        %v844 = vunpack.c.l.b16 %v654
        %v845 = vunpack.c.h.b16 %v654
        %v846 = vunpack.c.l.b16 %v655
        %v847 = vunpack.c.h.b16 %v655
        %v848 = vunpack.c.l.b16 %v656
        %v849 = vunpack.c.h.b16 %v656
        %v850 = vunpack.c.l.b16 %v657
        %v851 = vunpack.c.h.b16 %v657
        %v852 = vunpack.c.l.b16 %v658
        %v853 = vunpack.c.h.b16 %v658
        %v854 = vunpack.c.l.b16 %v659
        %v855 = vunpack.c.h.b16 %v659
        %v856 = vunpack.c.l.b16 %v660
        %v857 = vunpack.c.h.b16 %v660
        %v858 = vunpack.c.l.b16 %v661
        %v859 = vunpack.c.h.b16 %v661
        %v860 = vunpack.c.l.b16 %v662
        %v861 = vunpack.c.h.b16 %v662
        %v862 = vunpack.c.l.b16 %v663
        %v863 = vunpack.c.h.b16 %v663
        %v864 = vunpack.c.l.b16 %v664
        %v865 = vunpack.c.h.b16 %v664
        %v866 = vunpack.c.l.b16 %v665
        %v867 = vunpack.c.h.b16 %v665
        %v868 = vunpack.c.l.b16 %v666
        %v869 = vunpack.c.h.b16 %v666
        %v870 = vunpack.c.l.b16 %v667
        %v871 = vunpack.c.h.b16 %v667
        %v872 = vunpack.c.l.b16 %v668
        %v873 = vunpack.c.h.b16 %v668
        %v874 = vunpack.c.l.b16 %v669
        %v875 = vunpack.c.h.b16 %v669
        %v876 = vunpack.c.l.b16 %v670
        %v877 = vunpack.c.h.b16 %v670
        %v878 = vunpack.c.l.b16 %v671
        %v879 = vunpack.c.h.b16 %v671
        %v880 = vunpack.c.l.b16 %v672
        %v881 = vunpack.c.h.b16 %v672
        %v882 = vunpack.c.l.b16 %v673
        %v883 = vunpack.c.h.b16 %v673
        %v884 = vunpack.c.l.b16 %v674
        %v885 = vunpack.c.h.b16 %v674
        %v886 = vunpack.c.l.b16 %v675
        %v887 = vunpack.c.h.b16 %v675
        %v888 = vunpack.c.l.b16 %v676
        %v889 = vunpack.c.h.b16 %v676
        %v890 = vunpack.c.l.b16 %v677
        %v891 = vunpack.c.h.b16 %v677
        %v892 = vunpack.c.l.b16 %v678
        %v893 = vunpack.c.h.b16 %v678
        %v894 = vunpack.c.l.b16 %v679
        %v895 = vunpack.c.h.b16 %v679
        %v896 = vpack.c.b16 %v776, %v768
        %v897 = vpack.c.b16 %v777, %v769
        %v898 = vpack.c.b16 %v778, %v770
        %v899 = vpack.c.b16 %v779, %v771
        %v900 = vpack.c.b16 %v780, %v772
        %v901 = vpack.c.b16 %v781, %v773
        %v902 = vpack.c.b16 %v782, %v774
        %v903 = vpack.c.b16 %v783, %v775
        %v904 = vpack.c.b16 %v792, %v784
        %v905 = vpack.c.b16 %v793, %v785
        %v906 = vpack.c.b16 %v794, %v786
        %v907 = vpack.c.b16 %v795, %v787
        %v908 = vpack.c.b16 %v796, %v788
        %v909 = vpack.c.b16 %v797, %v789
        %v910 = vpack.c.b16 %v798, %v790
        %v911 = vpack.c.b16 %v799, %v791
        %v912 = vpack.c.b16 %v808, %v800
        %v913 = vpack.c.b16 %v809, %v801
        %v914 = vpack.c.b16 %v810, %v802
        %v915 = vpack.c.b16 %v811, %v803
        %v916 = vpack.c.b16 %v812, %v804
        %v917 = vpack.c.b16 %v813, %v805
        %v918 = vpack.c.b16 %v814, %v806
        %v919 = vpack.c.b16 %v815, %v807
        %v920 = vpack.c.b16 %v824, %v816
        %v921 = vpack.c.b16 %v825, %v817
        %v922 = vpack.c.b16 %v826, %v818
        %v923 = vpack.c.b16 %v827, %v819
        %v924 = vpack.c.b16 %v828, %v820
        %v925 = vpack.c.b16 %v829, %v821
        %v926 = vpack.c.b16 %v830, %v822
        %v927 = vpack.c.b16 %v831, %v823
        %v928 = vpack.c.b16 %v840, %v832
        %v929 = vpack.c.b16 %v841, %v833
        %v930 = vpack.c.b16 %v842, %v834
        %v931 = vpack.c.b16 %v843, %v835
        %v932 = vpack.c.b16 %v844, %v836
        %v933 = vpack.c.b16 %v845, %v837
        %v934 = vpack.c.b16 %v846, %v838
        %v935 = vpack.c.b16 %v847, %v839
        %v936 = vpack.c.b16 %v856, %v848
        %v937 = vpack.c.b16 %v857, %v849
        %v938 = vpack.c.b16 %v858, %v850
        %v939 = vpack.c.b16 %v859, %v851
        %v940 = vpack.c.b16 %v860, %v852
        %v941 = vpack.c.b16 %v861, %v853
        %v942 = vpack.c.b16 %v862, %v854
        %v943 = vpack.c.b16 %v863, %v855
        %v944 = vpack.c.b16 %v872, %v864
        %v945 = vpack.c.b16 %v873, %v865
        %v946 = vpack.c.b16 %v874, %v866
        %v947 = vpack.c.b16 %v875, %v867
        %v948 = vpack.c.b16 %v876, %v868
        %v949 = vpack.c.b16 %v877, %v869
        %v950 = vpack.c.b16 %v878, %v870
        %v951 = vpack.c.b16 %v879, %v871
        %v952 = vpack.c.b16 %v888, %v880
        %v953 = vpack.c.b16 %v889, %v881
        %v954 = vpack.c.b16 %v890, %v882
        %v955 = vpack.c.b16 %v891, %v883
        %v956 = vpack.c.b16 %v892, %v884
        %v957 = vpack.c.b16 %v893, %v885
        %v958 = vpack.c.b16 %v894, %v886
        %v959 = vpack.c.b16 %v895, %v887
        %1024 = vmatpush.bf16.msra.mxu0 %v952
        %1025 = vmatpush.bf16.msra.mxu0 %v944
        %1026 = vmatpush.bf16.msra.mxu0 %v936
        %1027 = vmatpush.bf16.msra.mxu0 %v928
        %1028 = vmatpush.bf16.msra.mxu0 %v920
        %1029 = vmatpush.bf16.msra.mxu0 %v912
        %1030 = vmatpush.bf16.msra.mxu0 %v904
        %1031 = vmatpush.bf16.msra.mxu0 %v896
        %1032 = vmatmul.bf16.gmra.mxu0 %v702
        %v1033 = vpop.f32.mrf.mxu0
        %v1034 = vadd.f32 %v682, %v1033
        %v1035 = vpop.f32.mrf.mxu0
        %v1036 = vadd.f32 %v682, %v1035
        %1037 = vdwg.mxu0
        %1038 = vmatpush.bf16.msra.mxu0 %v953
        %1039 = vmatpush.bf16.msra.mxu0 %v945
        %1040 = vmatpush.bf16.msra.mxu0 %v937
        %1041 = vmatpush.bf16.msra.mxu0 %v929
        %1042 = vmatpush.bf16.msra.mxu0 %v921
        %1043 = vmatpush.bf16.msra.mxu0 %v913
        %1044 = vmatpush.bf16.msra.mxu0 %v905
        %1045 = vmatpush.bf16.msra.mxu0 %v897
        %1046 = vmatmul.bf16.gmra.mxu0 %v702
        %v1047 = vpop.f32.mrf.mxu0
        %v1048 = vadd.f32 %v683, %v1047
        %v1049 = vpop.f32.mrf.mxu0
        %v1050 = vadd.f32 %v683, %v1049
        %1051 = vdwg.mxu0
        %1052 = vmatpush.bf16.msra.mxu0 %v954
        %1053 = vmatpush.bf16.msra.mxu0 %v946
        %1054 = vmatpush.bf16.msra.mxu0 %v938
        %1055 = vmatpush.bf16.msra.mxu0 %v930
        %1056 = vmatpush.bf16.msra.mxu0 %v922
        %1057 = vmatpush.bf16.msra.mxu0 %v914
        %1058 = vmatpush.bf16.msra.mxu0 %v906
        %1059 = vmatpush.bf16.msra.mxu0 %v898
        %1060 = vmatmul.bf16.gmra.mxu0 %v702
        %v1061 = vpop.f32.mrf.mxu0
        %v1062 = vadd.f32 %v684, %v1061
        %v1063 = vpop.f32.mrf.mxu0
        %v1064 = vadd.f32 %v684, %v1063
        %1065 = vdwg.mxu0
        %1066 = vmatpush.bf16.msra.mxu0 %v955
        %1067 = vmatpush.bf16.msra.mxu0 %v947
        %1068 = vmatpush.bf16.msra.mxu0 %v939
        %1069 = vmatpush.bf16.msra.mxu0 %v931
        %1070 = vmatpush.bf16.msra.mxu0 %v923
        %1071 = vmatpush.bf16.msra.mxu0 %v915
        %1072 = vmatpush.bf16.msra.mxu0 %v907
        %1073 = vmatpush.bf16.msra.mxu0 %v899
        %1074 = vmatmul.bf16.gmra.mxu0 %v702
        %v1075 = vpop.f32.mrf.mxu0
        %v1076 = vadd.f32 %v685, %v1075
        %v1077 = vpop.f32.mrf.mxu0
        %v1078 = vadd.f32 %v685, %v1077
        %1079 = vdwg.mxu0
        %1080 = vmatpush.bf16.msra.mxu0 %v956
        %1081 = vmatpush.bf16.msra.mxu0 %v948
        %1082 = vmatpush.bf16.msra.mxu0 %v940
        %1083 = vmatpush.bf16.msra.mxu0 %v932
        %1084 = vmatpush.bf16.msra.mxu0 %v924
        %1085 = vmatpush.bf16.msra.mxu0 %v916
        %1086 = vmatpush.bf16.msra.mxu0 %v908
        %1087 = vmatpush.bf16.msra.mxu0 %v900
        %1088 = vmatmul.bf16.gmra.mxu0 %v702
        %v1089 = vpop.f32.mrf.mxu0
        %v1090 = vadd.f32 %v686, %v1089
        %v1091 = vpop.f32.mrf.mxu0
        %v1092 = vadd.f32 %v686, %v1091
        %1093 = vdwg.mxu0
        %1094 = vmatpush.bf16.msra.mxu0 %v957
        %1095 = vmatpush.bf16.msra.mxu0 %v949
        %1096 = vmatpush.bf16.msra.mxu0 %v941
        %1097 = vmatpush.bf16.msra.mxu0 %v933
        %1098 = vmatpush.bf16.msra.mxu0 %v925
        %1099 = vmatpush.bf16.msra.mxu0 %v917
        %1100 = vmatpush.bf16.msra.mxu0 %v909
        %1101 = vmatpush.bf16.msra.mxu0 %v901
        %1102 = vmatmul.bf16.gmra.mxu0 %v702
        %v1103 = vpop.f32.mrf.mxu0
        %v1104 = vadd.f32 %v687, %v1103
        %v1105 = vpop.f32.mrf.mxu0
        %v1106 = vadd.f32 %v687, %v1105
        %1107 = vdwg.mxu0
        %1108 = vmatpush.bf16.msra.mxu0 %v958
        %1109 = vmatpush.bf16.msra.mxu0 %v950
        %1110 = vmatpush.bf16.msra.mxu0 %v942
        %1111 = vmatpush.bf16.msra.mxu0 %v934
        %1112 = vmatpush.bf16.msra.mxu0 %v926
        %1113 = vmatpush.bf16.msra.mxu0 %v918
        %1114 = vmatpush.bf16.msra.mxu0 %v910
        %1115 = vmatpush.bf16.msra.mxu0 %v902
        %1116 = vmatmul.bf16.gmra.mxu0 %v702
        %v1117 = vpop.f32.mrf.mxu0
        %v1118 = vadd.f32 %v688, %v1117
        %v1119 = vpop.f32.mrf.mxu0
        %v1120 = vadd.f32 %v688, %v1119
        %1121 = vdwg.mxu0
        %1122 = vmatpush.bf16.msra.mxu0 %v959
        %1123 = vmatpush.bf16.msra.mxu0 %v951
        %1124 = vmatpush.bf16.msra.mxu0 %v943
        %1125 = vmatpush.bf16.msra.mxu0 %v935
        %1126 = vmatpush.bf16.msra.mxu0 %v927
        %1127 = vmatpush.bf16.msra.mxu0 %v919
        %1128 = vmatpush.bf16.msra.mxu0 %v911
        %1129 = vmatpush.bf16.msra.mxu0 %v903
        %1130 = vmatmul.bf16.gmra.mxu0 %v702
        %v1131 = vpop.f32.mrf.mxu0
        %v1132 = vadd.f32 %v689, %v1131
        %v1133 = vpop.f32.mrf.mxu0
        %v1134 = vadd.f32 %v689, %v1133
        %1135 = vdwg.mxu0
        %v1136 = vmul.f32 %v1034, 0.2
        %v1137 = vmul.f32 %v1048, 0.2
        %v1138 = vmul.f32 %v1062, 0.2
        %v1139 = vmul.f32 %v1076, 0.2
        %v1140 = vmul.f32 %v1090, 0.2
        %v1141 = vmul.f32 %v1104, 0.2
        %v1142 = vmul.f32 %v1118, 0.2
        %v1143 = vmul.f32 %v1132, 0.2
        %v1144 = vmul.f32 %v1036, 0.2
        %v1145 = vmul.f32 %v1050, 0.2
        %v1146 = vmul.f32 %v1064, 0.2
        %v1147 = vmul.f32 %v1078, 0.2
        %v1148 = vmul.f32 %v1092, 0.2
        %v1149 = vmul.f32 %v1106, 0.2
        %v1150 = vmul.f32 %v1120, 0.2
        %v1151 = vmul.f32 %v1134, 0.2
        %v1152 = vmax.f32 %v1034, %v1136
        %v1153 = vmax.f32 %v1048, %v1137
        %v1154 = vmax.f32 %v1062, %v1138
        %v1155 = vmax.f32 %v1076, %v1139
        %v1156 = vmax.f32 %v1090, %v1140
        %v1157 = vmax.f32 %v1104, %v1141
        %v1158 = vmax.f32 %v1118, %v1142
        %v1159 = vmax.f32 %v1132, %v1143
        %v1160 = vmax.f32 %v1036, %v1144
        %v1161 = vmax.f32 %v1050, %v1145
        %v1162 = vmax.f32 %v1064, %v1146
        %v1163 = vmax.f32 %v1078, %v1147
        %v1164 = vmax.f32 %v1092, %v1148
        %v1165 = vmax.f32 %v1106, %v1149
        %v1166 = vmax.f32 %v1120, %v1150
        %v1167 = vmax.f32 %v1134, %v1151
        %v1168 = vpack.c.bf16 %v1160, %v1152
        %v1169 = vpack.c.bf16 %v1161, %v1153
        %v1170 = vpack.c.bf16 %v1162, %v1154
        %v1171 = vpack.c.bf16 %v1163, %v1155
        %v1172 = vpack.c.bf16 %v1164, %v1156
        %v1173 = vpack.c.bf16 %v1165, %v1157
        %v1174 = vpack.c.bf16 %v1166, %v1158
        %v1175 = vpack.c.bf16 %v1167, %v1159
        %v1176 = vld [vmem:[#allocation4] sm:$0xff]
        %v1177 = vld [vmem:[#allocation4 + $0x8] sm:$0xff]
        %v1178 = vld [vmem:[#allocation4 + $0x10] sm:$0xff]
        %v1179 = vld [vmem:[#allocation4 + $0x18] sm:$0xff]
        %v1180 = vld [vmem:[#allocation4 + $0x20] sm:$0xff]
        %v1181 = vld [vmem:[#allocation4 + $0x28] sm:$0xff]
        %v1182 = vld [vmem:[#allocation4 + $0x30] sm:$0xff]
        %v1183 = vld [vmem:[#allocation4 + $0x38] sm:$0xff]
        %v1184 = vld [vmem:[#allocation4 + $0x40] sm:$0xff]
        %v1185 = vld [vmem:[#allocation4 + $0x48] sm:$0xff]
        %v1186 = vld [vmem:[#allocation4 + $0x50] sm:$0xff]
        %v1187 = vld [vmem:[#allocation4 + $0x58] sm:$0xff]
        %v1188 = vld [vmem:[#allocation4 + $0x60] sm:$0xff]
        %v1189 = vld [vmem:[#allocation4 + $0x68] sm:$0xff]
        %v1190 = vld [vmem:[#allocation4 + $0x70] sm:$0xff]
        %v1191 = vld [vmem:[#allocation4 + $0x78] sm:$0xff]
        %v1192 = vld [vmem:[#allocation4 + $0x80] sm:$0xff]
        %v1193 = vld [vmem:[#allocation4 + $0x88] sm:$0xff]
        %v1194 = vld [vmem:[#allocation4 + $0x90] sm:$0xff]
        %v1195 = vld [vmem:[#allocation4 + $0x98] sm:$0xff]
        %v1196 = vld [vmem:[#allocation4 + $0xa0] sm:$0xff]
        %v1197 = vld [vmem:[#allocation4 + $0xa8] sm:$0xff]
        %v1198 = vld [vmem:[#allocation4 + $0xb0] sm:$0xff]
        %v1199 = vld [vmem:[#allocation4 + $0xb8] sm:$0xff]
        %v1200 = vld [vmem:[#allocation4 + $0xc0] sm:$0xff]
        %v1201 = vld [vmem:[#allocation4 + $0xc8] sm:$0xff]
        %v1202 = vld [vmem:[#allocation4 + $0xd0] sm:$0xff]
        %v1203 = vld [vmem:[#allocation4 + $0xd8] sm:$0xff]
        %v1204 = vld [vmem:[#allocation4 + $0xe0] sm:$0xff]
        %v1205 = vld [vmem:[#allocation4 + $0xe8] sm:$0xff]
        %v1206 = vld [vmem:[#allocation4 + $0xf0] sm:$0xff]
        %v1207 = vld [vmem:[#allocation4 + $0xf8] sm:$0xff]
        %v1208 = vld [vmem:[#allocation4 + $0x100] sm:$0xff]
        %v1209 = vld [vmem:[#allocation4 + $0x108] sm:$0xff]
        %v1210 = vld [vmem:[#allocation4 + $0x110] sm:$0xff]
        %v1211 = vld [vmem:[#allocation4 + $0x118] sm:$0xff]
        %v1212 = vld [vmem:[#allocation4 + $0x120] sm:$0xff]
        %v1213 = vld [vmem:[#allocation4 + $0x128] sm:$0xff]
        %v1214 = vld [vmem:[#allocation4 + $0x130] sm:$0xff]
        %v1215 = vld [vmem:[#allocation4 + $0x138] sm:$0xff]
        %v1216 = vld [vmem:[#allocation4 + $0x140] sm:$0xff]
        %v1217 = vld [vmem:[#allocation4 + $0x148] sm:$0xff]
        %v1218 = vld [vmem:[#allocation4 + $0x150] sm:$0xff]
        %v1219 = vld [vmem:[#allocation4 + $0x158] sm:$0xff]
        %v1220 = vld [vmem:[#allocation4 + $0x160] sm:$0xff]
        %v1221 = vld [vmem:[#allocation4 + $0x168] sm:$0xff]
        %v1222 = vld [vmem:[#allocation4 + $0x170] sm:$0xff]
        %v1223 = vld [vmem:[#allocation4 + $0x178] sm:$0xff]
        %v1224 = vld [vmem:[#allocation4 + $0x180] sm:$0xff]
        %v1225 = vld [vmem:[#allocation4 + $0x188] sm:$0xff]
        %v1226 = vld [vmem:[#allocation4 + $0x190] sm:$0xff]
        %v1227 = vld [vmem:[#allocation4 + $0x198] sm:$0xff]
        %v1228 = vld [vmem:[#allocation4 + $0x1a0] sm:$0xff]
        %v1229 = vld [vmem:[#allocation4 + $0x1a8] sm:$0xff]
        %v1230 = vld [vmem:[#allocation4 + $0x1b0] sm:$0xff]
        %v1231 = vld [vmem:[#allocation4 + $0x1b8] sm:$0xff]
        %v1232 = vld [vmem:[#allocation4 + $0x1c0] sm:$0xff]
        %v1233 = vld [vmem:[#allocation4 + $0x1c8] sm:$0xff]
        %v1234 = vld [vmem:[#allocation4 + $0x1d0] sm:$0xff]
        %v1235 = vld [vmem:[#allocation4 + $0x1d8] sm:$0xff]
        %v1236 = vld [vmem:[#allocation4 + $0x1e0] sm:$0xff]
        %v1237 = vld [vmem:[#allocation4 + $0x1e8] sm:$0xff]
        %v1238 = vld [vmem:[#allocation4 + $0x1f0] sm:$0xff]
        %v1239 = vld [vmem:[#allocation4 + $0x1f8] sm:$0xff]
        %v1240 = vld [vmem:[#allocation4 + $0x200] sm:$0xff]
        %v1241 = vld [vmem:[#allocation4 + $0x208] sm:$0xff]
        %v1242 = vld [vmem:[#allocation4 + $0x210] sm:$0xff]
        %v1243 = vld [vmem:[#allocation4 + $0x218] sm:$0xff]
        %v1244 = vld [vmem:[#allocation4 + $0x220] sm:$0xff]
        %v1245 = vld [vmem:[#allocation4 + $0x228] sm:$0xff]
        %v1246 = vld [vmem:[#allocation4 + $0x230] sm:$0xff]
        %v1247 = vld [vmem:[#allocation4 + $0x238] sm:$0xff]
        %v1248 = vld [vmem:[#allocation4 + $0x240] sm:$0xff]
        %v1249 = vld [vmem:[#allocation4 + $0x248] sm:$0xff]
        %v1250 = vld [vmem:[#allocation4 + $0x250] sm:$0xff]
        %v1251 = vld [vmem:[#allocation4 + $0x258] sm:$0xff]
        %v1252 = vld [vmem:[#allocation4 + $0x260] sm:$0xff]
        %v1253 = vld [vmem:[#allocation4 + $0x268] sm:$0xff]
        %v1254 = vld [vmem:[#allocation4 + $0x270] sm:$0xff]
        %v1255 = vld [vmem:[#allocation4 + $0x278] sm:$0xff]
        %v1256 = vld [vmem:[#allocation4 + $0x280] sm:$0xff]
        %v1257 = vld [vmem:[#allocation4 + $0x288] sm:$0xff]
        %v1258 = vld [vmem:[#allocation4 + $0x290] sm:$0xff]
        %v1259 = vld [vmem:[#allocation4 + $0x298] sm:$0xff]
        %v1260 = vld [vmem:[#allocation4 + $0x2a0] sm:$0xff]
        %v1261 = vld [vmem:[#allocation4 + $0x2a8] sm:$0xff]
        %v1262 = vld [vmem:[#allocation4 + $0x2b0] sm:$0xff]
        %v1263 = vld [vmem:[#allocation4 + $0x2b8] sm:$0xff]
        %v1264 = vld [vmem:[#allocation4 + $0x2c0] sm:$0xff]
        %v1265 = vld [vmem:[#allocation4 + $0x2c8] sm:$0xff]
        %v1266 = vld [vmem:[#allocation4 + $0x2d0] sm:$0xff]
        %v1267 = vld [vmem:[#allocation4 + $0x2d8] sm:$0xff]
        %v1268 = vld [vmem:[#allocation4 + $0x2e0] sm:$0xff]
        %v1269 = vld [vmem:[#allocation4 + $0x2e8] sm:$0xff]
        %v1270 = vld [vmem:[#allocation4 + $0x2f0] sm:$0xff]
        %v1271 = vld [vmem:[#allocation4 + $0x2f8] sm:$0xff]
        %v1272 = vld [vmem:[#allocation4 + $0x300] sm:$0xff]
        %v1273 = vld [vmem:[#allocation4 + $0x308] sm:$0xff]
        %v1274 = vld [vmem:[#allocation4 + $0x310] sm:$0xff]
        %v1275 = vld [vmem:[#allocation4 + $0x318] sm:$0xff]
        %v1276 = vld [vmem:[#allocation4 + $0x320] sm:$0xff]
        %v1277 = vld [vmem:[#allocation4 + $0x328] sm:$0xff]
        %v1278 = vld [vmem:[#allocation4 + $0x330] sm:$0xff]
        %v1279 = vld [vmem:[#allocation4 + $0x338] sm:$0xff]
        %v1280 = vld [vmem:[#allocation4 + $0x340] sm:$0xff]
        %v1281 = vld [vmem:[#allocation4 + $0x348] sm:$0xff]
        %v1282 = vld [vmem:[#allocation4 + $0x350] sm:$0xff]
        %v1283 = vld [vmem:[#allocation4 + $0x358] sm:$0xff]
        %v1284 = vld [vmem:[#allocation4 + $0x360] sm:$0xff]
        %v1285 = vld [vmem:[#allocation4 + $0x368] sm:$0xff]
        %v1286 = vld [vmem:[#allocation4 + $0x370] sm:$0xff]
        %v1287 = vld [vmem:[#allocation4 + $0x378] sm:$0xff]
        %v1288 = vld [vmem:[#allocation4 + $0x380] sm:$0xff]
        %v1289 = vld [vmem:[#allocation4 + $0x388] sm:$0xff]
        %v1290 = vld [vmem:[#allocation4 + $0x390] sm:$0xff]
        %v1291 = vld [vmem:[#allocation4 + $0x398] sm:$0xff]
        %v1292 = vld [vmem:[#allocation4 + $0x3a0] sm:$0xff]
        %v1293 = vld [vmem:[#allocation4 + $0x3a8] sm:$0xff]
        %v1294 = vld [vmem:[#allocation4 + $0x3b0] sm:$0xff]
        %v1295 = vld [vmem:[#allocation4 + $0x3b8] sm:$0xff]
        %v1296 = vld [vmem:[#allocation4 + $0x3c0] sm:$0xff]
        %v1297 = vld [vmem:[#allocation4 + $0x3c8] sm:$0xff]
        %v1298 = vld [vmem:[#allocation4 + $0x3d0] sm:$0xff]
        %v1299 = vld [vmem:[#allocation4 + $0x3d8] sm:$0xff]
        %v1300 = vld [vmem:[#allocation4 + $0x3e0] sm:$0xff]
        %v1301 = vld [vmem:[#allocation4 + $0x3e8] sm:$0xff]
        %v1302 = vld [vmem:[#allocation4 + $0x3f0] sm:$0xff]
        %v1303 = vld [vmem:[#allocation4 + $0x3f8] sm:$0xff]
        %v1304 = vld [vmem:[#allocation4 + $0x400] sm:$0xff]
        %v1305 = vld [vmem:[#allocation4 + $0x408] sm:$0xff]
        %v1306 = vld [vmem:[#allocation4 + $0x410] sm:$0xff]
        %v1307 = vld [vmem:[#allocation4 + $0x418] sm:$0xff]
        %v1308 = vld [vmem:[#allocation4 + $0x420] sm:$0xff]
        %v1309 = vld [vmem:[#allocation4 + $0x428] sm:$0xff]
        %v1310 = vld [vmem:[#allocation4 + $0x430] sm:$0xff]
        %v1311 = vld [vmem:[#allocation4 + $0x438] sm:$0xff]
        %v1312 = vld [vmem:[#allocation4 + $0x440] sm:$0xff]
        %v1313 = vld [vmem:[#allocation4 + $0x448] sm:$0xff]
        %v1314 = vld [vmem:[#allocation4 + $0x450] sm:$0xff]
        %v1315 = vld [vmem:[#allocation4 + $0x458] sm:$0xff]
        %v1316 = vld [vmem:[#allocation4 + $0x460] sm:$0xff]
        %v1317 = vld [vmem:[#allocation4 + $0x468] sm:$0xff]
        %v1318 = vld [vmem:[#allocation4 + $0x470] sm:$0xff]
        %v1319 = vld [vmem:[#allocation4 + $0x478] sm:$0xff]
        %v1320 = vld [vmem:[#allocation4 + $0x480] sm:$0xff]
        %v1321 = vld [vmem:[#allocation4 + $0x488] sm:$0xff]
        %v1322 = vld [vmem:[#allocation4 + $0x490] sm:$0xff]
        %v1323 = vld [vmem:[#allocation4 + $0x498] sm:$0xff]
        %v1324 = vld [vmem:[#allocation4 + $0x4a0] sm:$0xff]
        %v1325 = vld [vmem:[#allocation4 + $0x4a8] sm:$0xff]
        %v1326 = vld [vmem:[#allocation4 + $0x4b0] sm:$0xff]
        %v1327 = vld [vmem:[#allocation4 + $0x4b8] sm:$0xff]
        %v1328 = vld [vmem:[#allocation4 + $0x4c0] sm:$0xff]
        %v1329 = vld [vmem:[#allocation4 + $0x4c8] sm:$0xff]
        %v1330 = vld [vmem:[#allocation4 + $0x4d0] sm:$0xff]
        %v1331 = vld [vmem:[#allocation4 + $0x4d8] sm:$0xff]
        %v1332 = vld [vmem:[#allocation4 + $0x4e0] sm:$0xff]
        %v1333 = vld [vmem:[#allocation4 + $0x4e8] sm:$0xff]
        %v1334 = vld [vmem:[#allocation4 + $0x4f0] sm:$0xff]
        %v1335 = vld [vmem:[#allocation4 + $0x4f8] sm:$0xff]
        %v1336 = vld [vmem:[#allocation4 + $0x500] sm:$0xff]
        %v1337 = vld [vmem:[#allocation4 + $0x508] sm:$0xff]
        %v1338 = vld [vmem:[#allocation4 + $0x510] sm:$0xff]
        %v1339 = vld [vmem:[#allocation4 + $0x518] sm:$0xff]
        %v1340 = vld [vmem:[#allocation4 + $0x520] sm:$0xff]
        %v1341 = vld [vmem:[#allocation4 + $0x528] sm:$0xff]
        %v1342 = vld [vmem:[#allocation4 + $0x530] sm:$0xff]
        %v1343 = vld [vmem:[#allocation4 + $0x538] sm:$0xff]
        %v1344 = vld [vmem:[#allocation4 + $0x540] sm:$0xff]
        %v1345 = vld [vmem:[#allocation4 + $0x548] sm:$0xff]
        %v1346 = vld [vmem:[#allocation4 + $0x550] sm:$0xff]
        %v1347 = vld [vmem:[#allocation4 + $0x558] sm:$0xff]
        %v1348 = vld [vmem:[#allocation4 + $0x560] sm:$0xff]
        %v1349 = vld [vmem:[#allocation4 + $0x568] sm:$0xff]
        %v1350 = vld [vmem:[#allocation4 + $0x570] sm:$0xff]
        %v1351 = vld [vmem:[#allocation4 + $0x578] sm:$0xff]
        %v1352 = vld [vmem:[#allocation4 + $0x580] sm:$0xff]
        %v1353 = vld [vmem:[#allocation4 + $0x588] sm:$0xff]
        %v1354 = vld [vmem:[#allocation4 + $0x590] sm:$0xff]
        %v1355 = vld [vmem:[#allocation4 + $0x598] sm:$0xff]
        %v1356 = vld [vmem:[#allocation4 + $0x5a0] sm:$0xff]
        %v1357 = vld [vmem:[#allocation4 + $0x5a8] sm:$0xff]
        %v1358 = vld [vmem:[#allocation4 + $0x5b0] sm:$0xff]
        %v1359 = vld [vmem:[#allocation4 + $0x5b8] sm:$0xff]
        %v1360 = vld [vmem:[#allocation4 + $0x5c0] sm:$0xff]
        %v1361 = vld [vmem:[#allocation4 + $0x5c8] sm:$0xff]
        %v1362 = vld [vmem:[#allocation4 + $0x5d0] sm:$0xff]
        %v1363 = vld [vmem:[#allocation4 + $0x5d8] sm:$0xff]
        %v1364 = vld [vmem:[#allocation4 + $0x5e0] sm:$0xff]
        %v1365 = vld [vmem:[#allocation4 + $0x5e8] sm:$0xff]
        %v1366 = vld [vmem:[#allocation4 + $0x5f0] sm:$0xff]
        %v1367 = vld [vmem:[#allocation4 + $0x5f8] sm:$0xff]
        %v1368 = vld [vmem:[#allocation4 + $0x600] sm:$0xff]
        %v1369 = vld [vmem:[#allocation4 + $0x608] sm:$0xff]
        %v1370 = vld [vmem:[#allocation4 + $0x610] sm:$0xff]
        %v1371 = vld [vmem:[#allocation4 + $0x618] sm:$0xff]
        %v1372 = vld [vmem:[#allocation4 + $0x620] sm:$0xff]
        %v1373 = vld [vmem:[#allocation4 + $0x628] sm:$0xff]
        %v1374 = vld [vmem:[#allocation4 + $0x630] sm:$0xff]
        %v1375 = vld [vmem:[#allocation4 + $0x638] sm:$0xff]
        %v1376 = vld [vmem:[#allocation4 + $0x640] sm:$0xff]
        %v1377 = vld [vmem:[#allocation4 + $0x648] sm:$0xff]
        %v1378 = vld [vmem:[#allocation4 + $0x650] sm:$0xff]
        %v1379 = vld [vmem:[#allocation4 + $0x658] sm:$0xff]
        %v1380 = vld [vmem:[#allocation4 + $0x660] sm:$0xff]
        %v1381 = vld [vmem:[#allocation4 + $0x668] sm:$0xff]
        %v1382 = vld [vmem:[#allocation4 + $0x670] sm:$0xff]
        %v1383 = vld [vmem:[#allocation4 + $0x678] sm:$0xff]
        %v1384 = vld [vmem:[#allocation4 + $0x680] sm:$0xff]
        %v1385 = vld [vmem:[#allocation4 + $0x688] sm:$0xff]
        %v1386 = vld [vmem:[#allocation4 + $0x690] sm:$0xff]
        %v1387 = vld [vmem:[#allocation4 + $0x698] sm:$0xff]
        %v1388 = vld [vmem:[#allocation4 + $0x6a0] sm:$0xff]
        %v1389 = vld [vmem:[#allocation4 + $0x6a8] sm:$0xff]
        %v1390 = vld [vmem:[#allocation4 + $0x6b0] sm:$0xff]
        %v1391 = vld [vmem:[#allocation4 + $0x6b8] sm:$0xff]
        %v1392 = vld [vmem:[#allocation4 + $0x6c0] sm:$0xff]
        %v1393 = vld [vmem:[#allocation4 + $0x6c8] sm:$0xff]
        %v1394 = vld [vmem:[#allocation4 + $0x6d0] sm:$0xff]
        %v1395 = vld [vmem:[#allocation4 + $0x6d8] sm:$0xff]
        %v1396 = vld [vmem:[#allocation4 + $0x6e0] sm:$0xff]
        %v1397 = vld [vmem:[#allocation4 + $0x6e8] sm:$0xff]
        %v1398 = vld [vmem:[#allocation4 + $0x6f0] sm:$0xff]
        %v1399 = vld [vmem:[#allocation4 + $0x6f8] sm:$0xff]
        %v1400 = vld [vmem:[#allocation4 + $0x700] sm:$0xff]
        %v1401 = vld [vmem:[#allocation4 + $0x708] sm:$0xff]
        %v1402 = vld [vmem:[#allocation4 + $0x710] sm:$0xff]
        %v1403 = vld [vmem:[#allocation4 + $0x718] sm:$0xff]
        %v1404 = vld [vmem:[#allocation4 + $0x720] sm:$0xff]
        %v1405 = vld [vmem:[#allocation4 + $0x728] sm:$0xff]
        %v1406 = vld [vmem:[#allocation4 + $0x730] sm:$0xff]
        %v1407 = vld [vmem:[#allocation4 + $0x738] sm:$0xff]
        %v1408 = vld [vmem:[#allocation4 + $0x740] sm:$0xff]
        %v1409 = vld [vmem:[#allocation4 + $0x748] sm:$0xff]
        %v1410 = vld [vmem:[#allocation4 + $0x750] sm:$0xff]
        %v1411 = vld [vmem:[#allocation4 + $0x758] sm:$0xff]
        %v1412 = vld [vmem:[#allocation4 + $0x760] sm:$0xff]
        %v1413 = vld [vmem:[#allocation4 + $0x768] sm:$0xff]
        %v1414 = vld [vmem:[#allocation4 + $0x770] sm:$0xff]
        %v1415 = vld [vmem:[#allocation4 + $0x778] sm:$0xff]
        %v1416 = vld [vmem:[#allocation4 + $0x780] sm:$0xff]
        %v1417 = vld [vmem:[#allocation4 + $0x788] sm:$0xff]
        %v1418 = vld [vmem:[#allocation4 + $0x790] sm:$0xff]
        %v1419 = vld [vmem:[#allocation4 + $0x798] sm:$0xff]
        %v1420 = vld [vmem:[#allocation4 + $0x7a0] sm:$0xff]
        %v1421 = vld [vmem:[#allocation4 + $0x7a8] sm:$0xff]
        %v1422 = vld [vmem:[#allocation4 + $0x7b0] sm:$0xff]
        %v1423 = vld [vmem:[#allocation4 + $0x7b8] sm:$0xff]
        %v1424 = vld [vmem:[#allocation4 + $0x7c0] sm:$0xff]
        %v1425 = vld [vmem:[#allocation4 + $0x7c8] sm:$0xff]
        %v1426 = vld [vmem:[#allocation4 + $0x7d0] sm:$0xff]
        %v1427 = vld [vmem:[#allocation4 + $0x7d8] sm:$0xff]
        %v1428 = vld [vmem:[#allocation4 + $0x7e0] sm:$0xff]
        %v1429 = vld [vmem:[#allocation4 + $0x7e8] sm:$0xff]
        %v1430 = vld [vmem:[#allocation4 + $0x7f0] sm:$0xff]
        %v1431 = vld [vmem:[#allocation4 + $0x7f8] sm:$0xff]
        %v1432 = vld [vmem:[%s4] sm:$0xf]
        %v1434 = vperm.slane %v1432, 0
        %v1435 = vperm.slane %v1432, 1
        %v1436 = vperm.slane %v1432, 2
        %v1437 = vperm.slane %v1432, 3
        %v1698 = vunpack.c.l.b16 %v1176
        %v1699 = vunpack.c.h.b16 %v1176
        %v1700 = vunpack.c.l.b16 %v1177
        %v1701 = vunpack.c.h.b16 %v1177
        %v1702 = vunpack.c.l.b16 %v1178
        %v1703 = vunpack.c.h.b16 %v1178
        %v1704 = vunpack.c.l.b16 %v1179
        %v1705 = vunpack.c.h.b16 %v1179
        %v1706 = vunpack.c.l.b16 %v1180
        %v1707 = vunpack.c.h.b16 %v1180
        %v1708 = vunpack.c.l.b16 %v1181
        %v1709 = vunpack.c.h.b16 %v1181
        %v1710 = vunpack.c.l.b16 %v1182
        %v1711 = vunpack.c.h.b16 %v1182
        %v1712 = vunpack.c.l.b16 %v1183
        %v1713 = vunpack.c.h.b16 %v1183
        %v1714 = vunpack.c.l.b16 %v1184
        %v1715 = vunpack.c.h.b16 %v1184
        %v1716 = vunpack.c.l.b16 %v1185
        %v1717 = vunpack.c.h.b16 %v1185
        %v1718 = vunpack.c.l.b16 %v1186
        %v1719 = vunpack.c.h.b16 %v1186
        %v1720 = vunpack.c.l.b16 %v1187
        %v1721 = vunpack.c.h.b16 %v1187
        %v1722 = vunpack.c.l.b16 %v1188
        %v1723 = vunpack.c.h.b16 %v1188
        %v1724 = vunpack.c.l.b16 %v1189
        %v1725 = vunpack.c.h.b16 %v1189
        %v1726 = vunpack.c.l.b16 %v1190
        %v1727 = vunpack.c.h.b16 %v1190
        %v1728 = vunpack.c.l.b16 %v1191
        %v1729 = vunpack.c.h.b16 %v1191
        %v1730 = vunpack.c.l.b16 %v1192
        %v1731 = vunpack.c.h.b16 %v1192
        %v1732 = vunpack.c.l.b16 %v1193
        %v1733 = vunpack.c.h.b16 %v1193
        %v1734 = vunpack.c.l.b16 %v1194
        %v1735 = vunpack.c.h.b16 %v1194
        %v1736 = vunpack.c.l.b16 %v1195
        %v1737 = vunpack.c.h.b16 %v1195
        %v1738 = vunpack.c.l.b16 %v1196
        %v1739 = vunpack.c.h.b16 %v1196
        %v1740 = vunpack.c.l.b16 %v1197
        %v1741 = vunpack.c.h.b16 %v1197
        %v1742 = vunpack.c.l.b16 %v1198
        %v1743 = vunpack.c.h.b16 %v1198
        %v1744 = vunpack.c.l.b16 %v1199
        %v1745 = vunpack.c.h.b16 %v1199
        %v1746 = vunpack.c.l.b16 %v1200
        %v1747 = vunpack.c.h.b16 %v1200
        %v1748 = vunpack.c.l.b16 %v1201
        %v1749 = vunpack.c.h.b16 %v1201
        %v1750 = vunpack.c.l.b16 %v1202
        %v1751 = vunpack.c.h.b16 %v1202
        %v1752 = vunpack.c.l.b16 %v1203
        %v1753 = vunpack.c.h.b16 %v1203
        %v1754 = vunpack.c.l.b16 %v1204
        %v1755 = vunpack.c.h.b16 %v1204
        %v1756 = vunpack.c.l.b16 %v1205
        %v1757 = vunpack.c.h.b16 %v1205
        %v1758 = vunpack.c.l.b16 %v1206
        %v1759 = vunpack.c.h.b16 %v1206
        %v1760 = vunpack.c.l.b16 %v1207
        %v1761 = vunpack.c.h.b16 %v1207
        %v1762 = vunpack.c.l.b16 %v1208
        %v1763 = vunpack.c.h.b16 %v1208
        %v1764 = vunpack.c.l.b16 %v1209
        %v1765 = vunpack.c.h.b16 %v1209
        %v1766 = vunpack.c.l.b16 %v1210
        %v1767 = vunpack.c.h.b16 %v1210
        %v1768 = vunpack.c.l.b16 %v1211
        %v1769 = vunpack.c.h.b16 %v1211
        %v1770 = vunpack.c.l.b16 %v1212
        %v1771 = vunpack.c.h.b16 %v1212
        %v1772 = vunpack.c.l.b16 %v1213
        %v1773 = vunpack.c.h.b16 %v1213
        %v1774 = vunpack.c.l.b16 %v1214
        %v1775 = vunpack.c.h.b16 %v1214
        %v1776 = vunpack.c.l.b16 %v1215
        %v1777 = vunpack.c.h.b16 %v1215
        %v1778 = vunpack.c.l.b16 %v1216
        %v1779 = vunpack.c.h.b16 %v1216
        %v1780 = vunpack.c.l.b16 %v1217
        %v1781 = vunpack.c.h.b16 %v1217
        %v1782 = vunpack.c.l.b16 %v1218
        %v1783 = vunpack.c.h.b16 %v1218
        %v1784 = vunpack.c.l.b16 %v1219
        %v1785 = vunpack.c.h.b16 %v1219
        %v1786 = vunpack.c.l.b16 %v1220
        %v1787 = vunpack.c.h.b16 %v1220
        %v1788 = vunpack.c.l.b16 %v1221
        %v1789 = vunpack.c.h.b16 %v1221
        %v1790 = vunpack.c.l.b16 %v1222
        %v1791 = vunpack.c.h.b16 %v1222
        %v1792 = vunpack.c.l.b16 %v1223
        %v1793 = vunpack.c.h.b16 %v1223
        %v1794 = vunpack.c.l.b16 %v1224
        %v1795 = vunpack.c.h.b16 %v1224
        %v1796 = vunpack.c.l.b16 %v1225
        %v1797 = vunpack.c.h.b16 %v1225
        %v1798 = vunpack.c.l.b16 %v1226
        %v1799 = vunpack.c.h.b16 %v1226
        %v1800 = vunpack.c.l.b16 %v1227
        %v1801 = vunpack.c.h.b16 %v1227
        %v1802 = vunpack.c.l.b16 %v1228
        %v1803 = vunpack.c.h.b16 %v1228
        %v1804 = vunpack.c.l.b16 %v1229
        %v1805 = vunpack.c.h.b16 %v1229
        %v1806 = vunpack.c.l.b16 %v1230
        %v1807 = vunpack.c.h.b16 %v1230
        %v1808 = vunpack.c.l.b16 %v1231
        %v1809 = vunpack.c.h.b16 %v1231
        %v1810 = vunpack.c.l.b16 %v1232
        %v1811 = vunpack.c.h.b16 %v1232
        %v1812 = vunpack.c.l.b16 %v1233
        %v1813 = vunpack.c.h.b16 %v1233
        %v1814 = vunpack.c.l.b16 %v1234
        %v1815 = vunpack.c.h.b16 %v1234
        %v1816 = vunpack.c.l.b16 %v1235
        %v1817 = vunpack.c.h.b16 %v1235
        %v1818 = vunpack.c.l.b16 %v1236
        %v1819 = vunpack.c.h.b16 %v1236
        %v1820 = vunpack.c.l.b16 %v1237
        %v1821 = vunpack.c.h.b16 %v1237
        %v1822 = vunpack.c.l.b16 %v1238
        %v1823 = vunpack.c.h.b16 %v1238
        %v1824 = vunpack.c.l.b16 %v1239
        %v1825 = vunpack.c.h.b16 %v1239
        %v1826 = vunpack.c.l.b16 %v1240
        %v1827 = vunpack.c.h.b16 %v1240
        %v1828 = vunpack.c.l.b16 %v1241
        %v1829 = vunpack.c.h.b16 %v1241
        %v1830 = vunpack.c.l.b16 %v1242
        %v1831 = vunpack.c.h.b16 %v1242
        %v1832 = vunpack.c.l.b16 %v1243
        %v1833 = vunpack.c.h.b16 %v1243
        %v1834 = vunpack.c.l.b16 %v1244
        %v1835 = vunpack.c.h.b16 %v1244
        %v1836 = vunpack.c.l.b16 %v1245
        %v1837 = vunpack.c.h.b16 %v1245
        %v1838 = vunpack.c.l.b16 %v1246
        %v1839 = vunpack.c.h.b16 %v1246
        %v1840 = vunpack.c.l.b16 %v1247
        %v1841 = vunpack.c.h.b16 %v1247
        %v1842 = vunpack.c.l.b16 %v1248
        %v1843 = vunpack.c.h.b16 %v1248
        %v1844 = vunpack.c.l.b16 %v1249
        %v1845 = vunpack.c.h.b16 %v1249
        %v1846 = vunpack.c.l.b16 %v1250
        %v1847 = vunpack.c.h.b16 %v1250
        %v1848 = vunpack.c.l.b16 %v1251
        %v1849 = vunpack.c.h.b16 %v1251
        %v1850 = vunpack.c.l.b16 %v1252
        %v1851 = vunpack.c.h.b16 %v1252
        %v1852 = vunpack.c.l.b16 %v1253
        %v1853 = vunpack.c.h.b16 %v1253
        %v1854 = vunpack.c.l.b16 %v1254
        %v1855 = vunpack.c.h.b16 %v1254
        %v1856 = vunpack.c.l.b16 %v1255
        %v1857 = vunpack.c.h.b16 %v1255
        %v1858 = vunpack.c.l.b16 %v1256
        %v1859 = vunpack.c.h.b16 %v1256
        %v1860 = vunpack.c.l.b16 %v1257
        %v1861 = vunpack.c.h.b16 %v1257
        %v1862 = vunpack.c.l.b16 %v1258
        %v1863 = vunpack.c.h.b16 %v1258
        %v1864 = vunpack.c.l.b16 %v1259
        %v1865 = vunpack.c.h.b16 %v1259
        %v1866 = vunpack.c.l.b16 %v1260
        %v1867 = vunpack.c.h.b16 %v1260
        %v1868 = vunpack.c.l.b16 %v1261
        %v1869 = vunpack.c.h.b16 %v1261
        %v1870 = vunpack.c.l.b16 %v1262
        %v1871 = vunpack.c.h.b16 %v1262
        %v1872 = vunpack.c.l.b16 %v1263
        %v1873 = vunpack.c.h.b16 %v1263
        %v1874 = vunpack.c.l.b16 %v1264
        %v1875 = vunpack.c.h.b16 %v1264
        %v1876 = vunpack.c.l.b16 %v1265
        %v1877 = vunpack.c.h.b16 %v1265
        %v1878 = vunpack.c.l.b16 %v1266
        %v1879 = vunpack.c.h.b16 %v1266
        %v1880 = vunpack.c.l.b16 %v1267
        %v1881 = vunpack.c.h.b16 %v1267
        %v1882 = vunpack.c.l.b16 %v1268
        %v1883 = vunpack.c.h.b16 %v1268
        %v1884 = vunpack.c.l.b16 %v1269
        %v1885 = vunpack.c.h.b16 %v1269
        %v1886 = vunpack.c.l.b16 %v1270
        %v1887 = vunpack.c.h.b16 %v1270
        %v1888 = vunpack.c.l.b16 %v1271
        %v1889 = vunpack.c.h.b16 %v1271
        %v1890 = vunpack.c.l.b16 %v1272
        %v1891 = vunpack.c.h.b16 %v1272
        %v1892 = vunpack.c.l.b16 %v1273
        %v1893 = vunpack.c.h.b16 %v1273
        %v1894 = vunpack.c.l.b16 %v1274
        %v1895 = vunpack.c.h.b16 %v1274
        %v1896 = vunpack.c.l.b16 %v1275
        %v1897 = vunpack.c.h.b16 %v1275
        %v1898 = vunpack.c.l.b16 %v1276
        %v1899 = vunpack.c.h.b16 %v1276
        %v1900 = vunpack.c.l.b16 %v1277
        %v1901 = vunpack.c.h.b16 %v1277
        %v1902 = vunpack.c.l.b16 %v1278
        %v1903 = vunpack.c.h.b16 %v1278
        %v1904 = vunpack.c.l.b16 %v1279
        %v1905 = vunpack.c.h.b16 %v1279
        %v1906 = vunpack.c.l.b16 %v1280
        %v1907 = vunpack.c.h.b16 %v1280
        %v1908 = vunpack.c.l.b16 %v1281
        %v1909 = vunpack.c.h.b16 %v1281
        %v1910 = vunpack.c.l.b16 %v1282
        %v1911 = vunpack.c.h.b16 %v1282
        %v1912 = vunpack.c.l.b16 %v1283
        %v1913 = vunpack.c.h.b16 %v1283
        %v1914 = vunpack.c.l.b16 %v1284
        %v1915 = vunpack.c.h.b16 %v1284
        %v1916 = vunpack.c.l.b16 %v1285
        %v1917 = vunpack.c.h.b16 %v1285
        %v1918 = vunpack.c.l.b16 %v1286
        %v1919 = vunpack.c.h.b16 %v1286
        %v1920 = vunpack.c.l.b16 %v1287
        %v1921 = vunpack.c.h.b16 %v1287
        %v1922 = vunpack.c.l.b16 %v1288
        %v1923 = vunpack.c.h.b16 %v1288
        %v1924 = vunpack.c.l.b16 %v1289
        %v1925 = vunpack.c.h.b16 %v1289
        %v1926 = vunpack.c.l.b16 %v1290
        %v1927 = vunpack.c.h.b16 %v1290
        %v1928 = vunpack.c.l.b16 %v1291
        %v1929 = vunpack.c.h.b16 %v1291
        %v1930 = vunpack.c.l.b16 %v1292
        %v1931 = vunpack.c.h.b16 %v1292
        %v1932 = vunpack.c.l.b16 %v1293
        %v1933 = vunpack.c.h.b16 %v1293
        %v1934 = vunpack.c.l.b16 %v1294
        %v1935 = vunpack.c.h.b16 %v1294
        %v1936 = vunpack.c.l.b16 %v1295
        %v1937 = vunpack.c.h.b16 %v1295
        %v1938 = vunpack.c.l.b16 %v1296
        %v1939 = vunpack.c.h.b16 %v1296
        %v1940 = vunpack.c.l.b16 %v1297
        %v1941 = vunpack.c.h.b16 %v1297
        %v1942 = vunpack.c.l.b16 %v1298
        %v1943 = vunpack.c.h.b16 %v1298
        %v1944 = vunpack.c.l.b16 %v1299
        %v1945 = vunpack.c.h.b16 %v1299
        %v1946 = vunpack.c.l.b16 %v1300
        %v1947 = vunpack.c.h.b16 %v1300
        %v1948 = vunpack.c.l.b16 %v1301
        %v1949 = vunpack.c.h.b16 %v1301
        %v1950 = vunpack.c.l.b16 %v1302
        %v1951 = vunpack.c.h.b16 %v1302
        %v1952 = vunpack.c.l.b16 %v1303
        %v1953 = vunpack.c.h.b16 %v1303
        %v1954 = vunpack.c.l.b16 %v1304
        %v1955 = vunpack.c.h.b16 %v1304
        %v1956 = vunpack.c.l.b16 %v1305
        %v1957 = vunpack.c.h.b16 %v1305
        %v1958 = vunpack.c.l.b16 %v1306
        %v1959 = vunpack.c.h.b16 %v1306
        %v1960 = vunpack.c.l.b16 %v1307
        %v1961 = vunpack.c.h.b16 %v1307
        %v1962 = vunpack.c.l.b16 %v1308
        %v1963 = vunpack.c.h.b16 %v1308
        %v1964 = vunpack.c.l.b16 %v1309
        %v1965 = vunpack.c.h.b16 %v1309
        %v1966 = vunpack.c.l.b16 %v1310
        %v1967 = vunpack.c.h.b16 %v1310
        %v1968 = vunpack.c.l.b16 %v1311
        %v1969 = vunpack.c.h.b16 %v1311
        %v1970 = vunpack.c.l.b16 %v1312
        %v1971 = vunpack.c.h.b16 %v1312
        %v1972 = vunpack.c.l.b16 %v1313
        %v1973 = vunpack.c.h.b16 %v1313
        %v1974 = vunpack.c.l.b16 %v1314
        %v1975 = vunpack.c.h.b16 %v1314
        %v1976 = vunpack.c.l.b16 %v1315
        %v1977 = vunpack.c.h.b16 %v1315
        %v1978 = vunpack.c.l.b16 %v1316
        %v1979 = vunpack.c.h.b16 %v1316
        %v1980 = vunpack.c.l.b16 %v1317
        %v1981 = vunpack.c.h.b16 %v1317
        %v1982 = vunpack.c.l.b16 %v1318
        %v1983 = vunpack.c.h.b16 %v1318
        %v1984 = vunpack.c.l.b16 %v1319
        %v1985 = vunpack.c.h.b16 %v1319
        %v1986 = vunpack.c.l.b16 %v1320
        %v1987 = vunpack.c.h.b16 %v1320
        %v1988 = vunpack.c.l.b16 %v1321
        %v1989 = vunpack.c.h.b16 %v1321
        %v1990 = vunpack.c.l.b16 %v1322
        %v1991 = vunpack.c.h.b16 %v1322
        %v1992 = vunpack.c.l.b16 %v1323
        %v1993 = vunpack.c.h.b16 %v1323
        %v1994 = vunpack.c.l.b16 %v1324
        %v1995 = vunpack.c.h.b16 %v1324
        %v1996 = vunpack.c.l.b16 %v1325
        %v1997 = vunpack.c.h.b16 %v1325
        %v1998 = vunpack.c.l.b16 %v1326
        %v1999 = vunpack.c.h.b16 %v1326
        %v2000 = vunpack.c.l.b16 %v1327
        %v2001 = vunpack.c.h.b16 %v1327
        %v2002 = vunpack.c.l.b16 %v1328
        %v2003 = vunpack.c.h.b16 %v1328
        %v2004 = vunpack.c.l.b16 %v1329
        %v2005 = vunpack.c.h.b16 %v1329
        %v2006 = vunpack.c.l.b16 %v1330
        %v2007 = vunpack.c.h.b16 %v1330
        %v2008 = vunpack.c.l.b16 %v1331
        %v2009 = vunpack.c.h.b16 %v1331
        %v2010 = vunpack.c.l.b16 %v1332
        %v2011 = vunpack.c.h.b16 %v1332
        %v2012 = vunpack.c.l.b16 %v1333
        %v2013 = vunpack.c.h.b16 %v1333
        %v2014 = vunpack.c.l.b16 %v1334
        %v2015 = vunpack.c.h.b16 %v1334
        %v2016 = vunpack.c.l.b16 %v1335
        %v2017 = vunpack.c.h.b16 %v1335
        %v2018 = vunpack.c.l.b16 %v1336
        %v2019 = vunpack.c.h.b16 %v1336
        %v2020 = vunpack.c.l.b16 %v1337
        %v2021 = vunpack.c.h.b16 %v1337
        %v2022 = vunpack.c.l.b16 %v1338
        %v2023 = vunpack.c.h.b16 %v1338
        %v2024 = vunpack.c.l.b16 %v1339
        %v2025 = vunpack.c.h.b16 %v1339
        %v2026 = vunpack.c.l.b16 %v1340
        %v2027 = vunpack.c.h.b16 %v1340
        %v2028 = vunpack.c.l.b16 %v1341
        %v2029 = vunpack.c.h.b16 %v1341
        %v2030 = vunpack.c.l.b16 %v1342
        %v2031 = vunpack.c.h.b16 %v1342
        %v2032 = vunpack.c.l.b16 %v1343
        %v2033 = vunpack.c.h.b16 %v1343
        %v2034 = vunpack.c.l.b16 %v1344
        %v2035 = vunpack.c.h.b16 %v1344
        %v2036 = vunpack.c.l.b16 %v1345
        %v2037 = vunpack.c.h.b16 %v1345
        %v2038 = vunpack.c.l.b16 %v1346
        %v2039 = vunpack.c.h.b16 %v1346
        %v2040 = vunpack.c.l.b16 %v1347
        %v2041 = vunpack.c.h.b16 %v1347
        %v2042 = vunpack.c.l.b16 %v1348
        %v2043 = vunpack.c.h.b16 %v1348
        %v2044 = vunpack.c.l.b16 %v1349
        %v2045 = vunpack.c.h.b16 %v1349
        %v2046 = vunpack.c.l.b16 %v1350
        %v2047 = vunpack.c.h.b16 %v1350
        %v2048 = vunpack.c.l.b16 %v1351
        %v2049 = vunpack.c.h.b16 %v1351
        %v2050 = vunpack.c.l.b16 %v1352
        %v2051 = vunpack.c.h.b16 %v1352
        %v2052 = vunpack.c.l.b16 %v1353
        %v2053 = vunpack.c.h.b16 %v1353
        %v2054 = vunpack.c.l.b16 %v1354
        %v2055 = vunpack.c.h.b16 %v1354
        %v2056 = vunpack.c.l.b16 %v1355
        %v2057 = vunpack.c.h.b16 %v1355
        %v2058 = vunpack.c.l.b16 %v1356
        %v2059 = vunpack.c.h.b16 %v1356
        %v2060 = vunpack.c.l.b16 %v1357
        %v2061 = vunpack.c.h.b16 %v1357
        %v2062 = vunpack.c.l.b16 %v1358
        %v2063 = vunpack.c.h.b16 %v1358
        %v2064 = vunpack.c.l.b16 %v1359
        %v2065 = vunpack.c.h.b16 %v1359
        %v2066 = vunpack.c.l.b16 %v1360
        %v2067 = vunpack.c.h.b16 %v1360
        %v2068 = vunpack.c.l.b16 %v1361
        %v2069 = vunpack.c.h.b16 %v1361
        %v2070 = vunpack.c.l.b16 %v1362
        %v2071 = vunpack.c.h.b16 %v1362
        %v2072 = vunpack.c.l.b16 %v1363
        %v2073 = vunpack.c.h.b16 %v1363
        %v2074 = vunpack.c.l.b16 %v1364
        %v2075 = vunpack.c.h.b16 %v1364
        %v2076 = vunpack.c.l.b16 %v1365
        %v2077 = vunpack.c.h.b16 %v1365
        %v2078 = vunpack.c.l.b16 %v1366
        %v2079 = vunpack.c.h.b16 %v1366
        %v2080 = vunpack.c.l.b16 %v1367
        %v2081 = vunpack.c.h.b16 %v1367
        %v2082 = vunpack.c.l.b16 %v1368
        %v2083 = vunpack.c.h.b16 %v1368
        %v2084 = vunpack.c.l.b16 %v1369
        %v2085 = vunpack.c.h.b16 %v1369
        %v2086 = vunpack.c.l.b16 %v1370
        %v2087 = vunpack.c.h.b16 %v1370
        %v2088 = vunpack.c.l.b16 %v1371
        %v2089 = vunpack.c.h.b16 %v1371
        %v2090 = vunpack.c.l.b16 %v1372
        %v2091 = vunpack.c.h.b16 %v1372
        %v2092 = vunpack.c.l.b16 %v1373
        %v2093 = vunpack.c.h.b16 %v1373
        %v2094 = vunpack.c.l.b16 %v1374
        %v2095 = vunpack.c.h.b16 %v1374
        %v2096 = vunpack.c.l.b16 %v1375
        %v2097 = vunpack.c.h.b16 %v1375
        %v2098 = vunpack.c.l.b16 %v1376
        %v2099 = vunpack.c.h.b16 %v1376
        %v2100 = vunpack.c.l.b16 %v1377
        %v2101 = vunpack.c.h.b16 %v1377
        %v2102 = vunpack.c.l.b16 %v1378
        %v2103 = vunpack.c.h.b16 %v1378
        %v2104 = vunpack.c.l.b16 %v1379
        %v2105 = vunpack.c.h.b16 %v1379
        %v2106 = vunpack.c.l.b16 %v1380
        %v2107 = vunpack.c.h.b16 %v1380
        %v2108 = vunpack.c.l.b16 %v1381
        %v2109 = vunpack.c.h.b16 %v1381
        %v2110 = vunpack.c.l.b16 %v1382
        %v2111 = vunpack.c.h.b16 %v1382
        %v2112 = vunpack.c.l.b16 %v1383
        %v2113 = vunpack.c.h.b16 %v1383
        %v2114 = vunpack.c.l.b16 %v1384
        %v2115 = vunpack.c.h.b16 %v1384
        %v2116 = vunpack.c.l.b16 %v1385
        %v2117 = vunpack.c.h.b16 %v1385
        %v2118 = vunpack.c.l.b16 %v1386
        %v2119 = vunpack.c.h.b16 %v1386
        %v2120 = vunpack.c.l.b16 %v1387
        %v2121 = vunpack.c.h.b16 %v1387
        %v2122 = vunpack.c.l.b16 %v1388
        %v2123 = vunpack.c.h.b16 %v1388
        %v2124 = vunpack.c.l.b16 %v1389
        %v2125 = vunpack.c.h.b16 %v1389
        %v2126 = vunpack.c.l.b16 %v1390
        %v2127 = vunpack.c.h.b16 %v1390
        %v2128 = vunpack.c.l.b16 %v1391
        %v2129 = vunpack.c.h.b16 %v1391
        %v2130 = vunpack.c.l.b16 %v1392
        %v2131 = vunpack.c.h.b16 %v1392
        %v2132 = vunpack.c.l.b16 %v1393
        %v2133 = vunpack.c.h.b16 %v1393
        %v2134 = vunpack.c.l.b16 %v1394
        %v2135 = vunpack.c.h.b16 %v1394
        %v2136 = vunpack.c.l.b16 %v1395
        %v2137 = vunpack.c.h.b16 %v1395
        %v2138 = vunpack.c.l.b16 %v1396
        %v2139 = vunpack.c.h.b16 %v1396
        %v2140 = vunpack.c.l.b16 %v1397
        %v2141 = vunpack.c.h.b16 %v1397
        %v2142 = vunpack.c.l.b16 %v1398
        %v2143 = vunpack.c.h.b16 %v1398
        %v2144 = vunpack.c.l.b16 %v1399
        %v2145 = vunpack.c.h.b16 %v1399
        %v2146 = vunpack.c.l.b16 %v1400
        %v2147 = vunpack.c.h.b16 %v1400
        %v2148 = vunpack.c.l.b16 %v1401
        %v2149 = vunpack.c.h.b16 %v1401
        %v2150 = vunpack.c.l.b16 %v1402
        %v2151 = vunpack.c.h.b16 %v1402
        %v2152 = vunpack.c.l.b16 %v1403
        %v2153 = vunpack.c.h.b16 %v1403
        %v2154 = vunpack.c.l.b16 %v1404
        %v2155 = vunpack.c.h.b16 %v1404
        %v2156 = vunpack.c.l.b16 %v1405
        %v2157 = vunpack.c.h.b16 %v1405
        %v2158 = vunpack.c.l.b16 %v1406
        %v2159 = vunpack.c.h.b16 %v1406
        %v2160 = vunpack.c.l.b16 %v1407
        %v2161 = vunpack.c.h.b16 %v1407
        %v2162 = vunpack.c.l.b16 %v1408
        %v2163 = vunpack.c.h.b16 %v1408
        %v2164 = vunpack.c.l.b16 %v1409
        %v2165 = vunpack.c.h.b16 %v1409
        %v2166 = vunpack.c.l.b16 %v1410
        %v2167 = vunpack.c.h.b16 %v1410
        %v2168 = vunpack.c.l.b16 %v1411
        %v2169 = vunpack.c.h.b16 %v1411
        %v2170 = vunpack.c.l.b16 %v1412
        %v2171 = vunpack.c.h.b16 %v1412
        %v2172 = vunpack.c.l.b16 %v1413
        %v2173 = vunpack.c.h.b16 %v1413
        %v2174 = vunpack.c.l.b16 %v1414
        %v2175 = vunpack.c.h.b16 %v1414
        %v2176 = vunpack.c.l.b16 %v1415
        %v2177 = vunpack.c.h.b16 %v1415
        %v2178 = vunpack.c.l.b16 %v1416
        %v2179 = vunpack.c.h.b16 %v1416
        %v2180 = vunpack.c.l.b16 %v1417
        %v2181 = vunpack.c.h.b16 %v1417
        %v2182 = vunpack.c.l.b16 %v1418
        %v2183 = vunpack.c.h.b16 %v1418
        %v2184 = vunpack.c.l.b16 %v1419
        %v2185 = vunpack.c.h.b16 %v1419
        %v2186 = vunpack.c.l.b16 %v1420
        %v2187 = vunpack.c.h.b16 %v1420
        %v2188 = vunpack.c.l.b16 %v1421
        %v2189 = vunpack.c.h.b16 %v1421
        %v2190 = vunpack.c.l.b16 %v1422
        %v2191 = vunpack.c.h.b16 %v1422
        %v2192 = vunpack.c.l.b16 %v1423
        %v2193 = vunpack.c.h.b16 %v1423
        %v2194 = vunpack.c.l.b16 %v1424
        %v2195 = vunpack.c.h.b16 %v1424
        %v2196 = vunpack.c.l.b16 %v1425
        %v2197 = vunpack.c.h.b16 %v1425
        %v2198 = vunpack.c.l.b16 %v1426
        %v2199 = vunpack.c.h.b16 %v1426
        %v2200 = vunpack.c.l.b16 %v1427
        %v2201 = vunpack.c.h.b16 %v1427
        %v2202 = vunpack.c.l.b16 %v1428
        %v2203 = vunpack.c.h.b16 %v1428
        %v2204 = vunpack.c.l.b16 %v1429
        %v2205 = vunpack.c.h.b16 %v1429
        %v2206 = vunpack.c.l.b16 %v1430
        %v2207 = vunpack.c.h.b16 %v1430
        %v2208 = vunpack.c.l.b16 %v1431
        %v2209 = vunpack.c.h.b16 %v1431
        %v2210 = vpack.c.b16 %v1702, %v1698
        %v2211 = vpack.c.b16 %v1703, %v1699
        %v2212 = vpack.c.b16 %v1704, %v1700
        %v2213 = vpack.c.b16 %v1705, %v1701
        %v2214 = vpack.c.b16 %v1710, %v1706
        %v2215 = vpack.c.b16 %v1711, %v1707
        %v2216 = vpack.c.b16 %v1712, %v1708
        %v2217 = vpack.c.b16 %v1713, %v1709
        %v2218 = vpack.c.b16 %v1718, %v1714
        %v2219 = vpack.c.b16 %v1719, %v1715
        %v2220 = vpack.c.b16 %v1720, %v1716
        %v2221 = vpack.c.b16 %v1721, %v1717
        %v2222 = vpack.c.b16 %v1726, %v1722
        %v2223 = vpack.c.b16 %v1727, %v1723
        %v2224 = vpack.c.b16 %v1728, %v1724
        %v2225 = vpack.c.b16 %v1729, %v1725
        %v2226 = vpack.c.b16 %v1734, %v1730
        %v2227 = vpack.c.b16 %v1735, %v1731
        %v2228 = vpack.c.b16 %v1736, %v1732
        %v2229 = vpack.c.b16 %v1737, %v1733
        %v2230 = vpack.c.b16 %v1742, %v1738
        %v2231 = vpack.c.b16 %v1743, %v1739
        %v2232 = vpack.c.b16 %v1744, %v1740
        %v2233 = vpack.c.b16 %v1745, %v1741
        %v2234 = vpack.c.b16 %v1750, %v1746
        %v2235 = vpack.c.b16 %v1751, %v1747
        %v2236 = vpack.c.b16 %v1752, %v1748
        %v2237 = vpack.c.b16 %v1753, %v1749
        %v2238 = vpack.c.b16 %v1758, %v1754
        %v2239 = vpack.c.b16 %v1759, %v1755
        %v2240 = vpack.c.b16 %v1760, %v1756
        %v2241 = vpack.c.b16 %v1761, %v1757
        %v2242 = vpack.c.b16 %v1766, %v1762
        %v2243 = vpack.c.b16 %v1767, %v1763
        %v2244 = vpack.c.b16 %v1768, %v1764
        %v2245 = vpack.c.b16 %v1769, %v1765
        %v2246 = vpack.c.b16 %v1774, %v1770
        %v2247 = vpack.c.b16 %v1775, %v1771
        %v2248 = vpack.c.b16 %v1776, %v1772
        %v2249 = vpack.c.b16 %v1777, %v1773
        %v2250 = vpack.c.b16 %v1782, %v1778
        %v2251 = vpack.c.b16 %v1783, %v1779
        %v2252 = vpack.c.b16 %v1784, %v1780
        %v2253 = vpack.c.b16 %v1785, %v1781
        %v2254 = vpack.c.b16 %v1790, %v1786
        %v2255 = vpack.c.b16 %v1791, %v1787
        %v2256 = vpack.c.b16 %v1792, %v1788
        %v2257 = vpack.c.b16 %v1793, %v1789
        %v2258 = vpack.c.b16 %v1798, %v1794
        %v2259 = vpack.c.b16 %v1799, %v1795
        %v2260 = vpack.c.b16 %v1800, %v1796
        %v2261 = vpack.c.b16 %v1801, %v1797
        %v2262 = vpack.c.b16 %v1806, %v1802
        %v2263 = vpack.c.b16 %v1807, %v1803
        %v2264 = vpack.c.b16 %v1808, %v1804
        %v2265 = vpack.c.b16 %v1809, %v1805
        %v2266 = vpack.c.b16 %v1814, %v1810
        %v2267 = vpack.c.b16 %v1815, %v1811
        %v2268 = vpack.c.b16 %v1816, %v1812
        %v2269 = vpack.c.b16 %v1817, %v1813
        %v2270 = vpack.c.b16 %v1822, %v1818
        %v2271 = vpack.c.b16 %v1823, %v1819
        %v2272 = vpack.c.b16 %v1824, %v1820
        %v2273 = vpack.c.b16 %v1825, %v1821
        %v2274 = vpack.c.b16 %v1830, %v1826
        %v2275 = vpack.c.b16 %v1831, %v1827
        %v2276 = vpack.c.b16 %v1832, %v1828
        %v2277 = vpack.c.b16 %v1833, %v1829
        %v2278 = vpack.c.b16 %v1838, %v1834
        %v2279 = vpack.c.b16 %v1839, %v1835
        %v2280 = vpack.c.b16 %v1840, %v1836
        %v2281 = vpack.c.b16 %v1841, %v1837
        %v2282 = vpack.c.b16 %v1846, %v1842
        %v2283 = vpack.c.b16 %v1847, %v1843
        %v2284 = vpack.c.b16 %v1848, %v1844
        %v2285 = vpack.c.b16 %v1849, %v1845
        %v2286 = vpack.c.b16 %v1854, %v1850
        %v2287 = vpack.c.b16 %v1855, %v1851
        %v2288 = vpack.c.b16 %v1856, %v1852
        %v2289 = vpack.c.b16 %v1857, %v1853
        %v2290 = vpack.c.b16 %v1862, %v1858
        %v2291 = vpack.c.b16 %v1863, %v1859
        %v2292 = vpack.c.b16 %v1864, %v1860
        %v2293 = vpack.c.b16 %v1865, %v1861
        %v2294 = vpack.c.b16 %v1870, %v1866
        %v2295 = vpack.c.b16 %v1871, %v1867
        %v2296 = vpack.c.b16 %v1872, %v1868
        %v2297 = vpack.c.b16 %v1873, %v1869
        %v2298 = vpack.c.b16 %v1878, %v1874
        %v2299 = vpack.c.b16 %v1879, %v1875
        %v2300 = vpack.c.b16 %v1880, %v1876
        %v2301 = vpack.c.b16 %v1881, %v1877
        %v2302 = vpack.c.b16 %v1886, %v1882
        %v2303 = vpack.c.b16 %v1887, %v1883
        %v2304 = vpack.c.b16 %v1888, %v1884
        %v2305 = vpack.c.b16 %v1889, %v1885
        %v2306 = vpack.c.b16 %v1894, %v1890
        %v2307 = vpack.c.b16 %v1895, %v1891
        %v2308 = vpack.c.b16 %v1896, %v1892
        %v2309 = vpack.c.b16 %v1897, %v1893
        %v2310 = vpack.c.b16 %v1902, %v1898
        %v2311 = vpack.c.b16 %v1903, %v1899
        %v2312 = vpack.c.b16 %v1904, %v1900
        %v2313 = vpack.c.b16 %v1905, %v1901
        %v2314 = vpack.c.b16 %v1910, %v1906
        %v2315 = vpack.c.b16 %v1911, %v1907
        %v2316 = vpack.c.b16 %v1912, %v1908
        %v2317 = vpack.c.b16 %v1913, %v1909
        %v2318 = vpack.c.b16 %v1918, %v1914
        %v2319 = vpack.c.b16 %v1919, %v1915
        %v2320 = vpack.c.b16 %v1920, %v1916
        %v2321 = vpack.c.b16 %v1921, %v1917
        %v2322 = vpack.c.b16 %v1926, %v1922
        %v2323 = vpack.c.b16 %v1927, %v1923
        %v2324 = vpack.c.b16 %v1928, %v1924
        %v2325 = vpack.c.b16 %v1929, %v1925
        %v2326 = vpack.c.b16 %v1934, %v1930
        %v2327 = vpack.c.b16 %v1935, %v1931
        %v2328 = vpack.c.b16 %v1936, %v1932
        %v2329 = vpack.c.b16 %v1937, %v1933
        %v2330 = vpack.c.b16 %v1942, %v1938
        %v2331 = vpack.c.b16 %v1943, %v1939
        %v2332 = vpack.c.b16 %v1944, %v1940
        %v2333 = vpack.c.b16 %v1945, %v1941
        %v2334 = vpack.c.b16 %v1950, %v1946
        %v2335 = vpack.c.b16 %v1951, %v1947
        %v2336 = vpack.c.b16 %v1952, %v1948
        %v2337 = vpack.c.b16 %v1953, %v1949
        %v2338 = vpack.c.b16 %v1958, %v1954
        %v2339 = vpack.c.b16 %v1959, %v1955
        %v2340 = vpack.c.b16 %v1960, %v1956
        %v2341 = vpack.c.b16 %v1961, %v1957
        %v2342 = vpack.c.b16 %v1966, %v1962
        %v2343 = vpack.c.b16 %v1967, %v1963
        %v2344 = vpack.c.b16 %v1968, %v1964
        %v2345 = vpack.c.b16 %v1969, %v1965
        %v2346 = vpack.c.b16 %v1974, %v1970
        %v2347 = vpack.c.b16 %v1975, %v1971
        %v2348 = vpack.c.b16 %v1976, %v1972
        %v2349 = vpack.c.b16 %v1977, %v1973
        %v2350 = vpack.c.b16 %v1982, %v1978
        %v2351 = vpack.c.b16 %v1983, %v1979
        %v2352 = vpack.c.b16 %v1984, %v1980
        %v2353 = vpack.c.b16 %v1985, %v1981
        %v2354 = vpack.c.b16 %v1990, %v1986
        %v2355 = vpack.c.b16 %v1991, %v1987
        %v2356 = vpack.c.b16 %v1992, %v1988
        %v2357 = vpack.c.b16 %v1993, %v1989
        %v2358 = vpack.c.b16 %v1998, %v1994
        %v2359 = vpack.c.b16 %v1999, %v1995
        %v2360 = vpack.c.b16 %v2000, %v1996
        %v2361 = vpack.c.b16 %v2001, %v1997
        %v2362 = vpack.c.b16 %v2006, %v2002
        %v2363 = vpack.c.b16 %v2007, %v2003
        %v2364 = vpack.c.b16 %v2008, %v2004
        %v2365 = vpack.c.b16 %v2009, %v2005
        %v2366 = vpack.c.b16 %v2014, %v2010
        %v2367 = vpack.c.b16 %v2015, %v2011
        %v2368 = vpack.c.b16 %v2016, %v2012
        %v2369 = vpack.c.b16 %v2017, %v2013
        %v2370 = vpack.c.b16 %v2022, %v2018
        %v2371 = vpack.c.b16 %v2023, %v2019
        %v2372 = vpack.c.b16 %v2024, %v2020
        %v2373 = vpack.c.b16 %v2025, %v2021
        %v2374 = vpack.c.b16 %v2030, %v2026
        %v2375 = vpack.c.b16 %v2031, %v2027
        %v2376 = vpack.c.b16 %v2032, %v2028
        %v2377 = vpack.c.b16 %v2033, %v2029
        %v2378 = vpack.c.b16 %v2038, %v2034
        %v2379 = vpack.c.b16 %v2039, %v2035
        %v2380 = vpack.c.b16 %v2040, %v2036
        %v2381 = vpack.c.b16 %v2041, %v2037
        %v2382 = vpack.c.b16 %v2046, %v2042
        %v2383 = vpack.c.b16 %v2047, %v2043
        %v2384 = vpack.c.b16 %v2048, %v2044
        %v2385 = vpack.c.b16 %v2049, %v2045
        %v2386 = vpack.c.b16 %v2054, %v2050
        %v2387 = vpack.c.b16 %v2055, %v2051
        %v2388 = vpack.c.b16 %v2056, %v2052
        %v2389 = vpack.c.b16 %v2057, %v2053
        %v2390 = vpack.c.b16 %v2062, %v2058
        %v2391 = vpack.c.b16 %v2063, %v2059
        %v2392 = vpack.c.b16 %v2064, %v2060
        %v2393 = vpack.c.b16 %v2065, %v2061
        %v2394 = vpack.c.b16 %v2070, %v2066
        %v2395 = vpack.c.b16 %v2071, %v2067
        %v2396 = vpack.c.b16 %v2072, %v2068
        %v2397 = vpack.c.b16 %v2073, %v2069
        %v2398 = vpack.c.b16 %v2078, %v2074
        %v2399 = vpack.c.b16 %v2079, %v2075
        %v2400 = vpack.c.b16 %v2080, %v2076
        %v2401 = vpack.c.b16 %v2081, %v2077
        %v2402 = vpack.c.b16 %v2086, %v2082
        %v2403 = vpack.c.b16 %v2087, %v2083
        %v2404 = vpack.c.b16 %v2088, %v2084
        %v2405 = vpack.c.b16 %v2089, %v2085
        %v2406 = vpack.c.b16 %v2094, %v2090
        %v2407 = vpack.c.b16 %v2095, %v2091
        %v2408 = vpack.c.b16 %v2096, %v2092
        %v2409 = vpack.c.b16 %v2097, %v2093
        %v2410 = vpack.c.b16 %v2102, %v2098
        %v2411 = vpack.c.b16 %v2103, %v2099
        %v2412 = vpack.c.b16 %v2104, %v2100
        %v2413 = vpack.c.b16 %v2105, %v2101
        %v2414 = vpack.c.b16 %v2110, %v2106
        %v2415 = vpack.c.b16 %v2111, %v2107
        %v2416 = vpack.c.b16 %v2112, %v2108
        %v2417 = vpack.c.b16 %v2113, %v2109
        %v2418 = vpack.c.b16 %v2118, %v2114
        %v2419 = vpack.c.b16 %v2119, %v2115
        %v2420 = vpack.c.b16 %v2120, %v2116
        %v2421 = vpack.c.b16 %v2121, %v2117
        %v2422 = vpack.c.b16 %v2126, %v2122
        %v2423 = vpack.c.b16 %v2127, %v2123
        %v2424 = vpack.c.b16 %v2128, %v2124
        %v2425 = vpack.c.b16 %v2129, %v2125
        %v2426 = vpack.c.b16 %v2134, %v2130
        %v2427 = vpack.c.b16 %v2135, %v2131
        %v2428 = vpack.c.b16 %v2136, %v2132
        %v2429 = vpack.c.b16 %v2137, %v2133
        %v2430 = vpack.c.b16 %v2142, %v2138
        %v2431 = vpack.c.b16 %v2143, %v2139
        %v2432 = vpack.c.b16 %v2144, %v2140
        %v2433 = vpack.c.b16 %v2145, %v2141
        %v2434 = vpack.c.b16 %v2150, %v2146
        %v2435 = vpack.c.b16 %v2151, %v2147
        %v2436 = vpack.c.b16 %v2152, %v2148
        %v2437 = vpack.c.b16 %v2153, %v2149
        %v2438 = vpack.c.b16 %v2158, %v2154
        %v2439 = vpack.c.b16 %v2159, %v2155
        %v2440 = vpack.c.b16 %v2160, %v2156
        %v2441 = vpack.c.b16 %v2161, %v2157
        %v2442 = vpack.c.b16 %v2166, %v2162
        %v2443 = vpack.c.b16 %v2167, %v2163
        %v2444 = vpack.c.b16 %v2168, %v2164
        %v2445 = vpack.c.b16 %v2169, %v2165
        %v2446 = vpack.c.b16 %v2174, %v2170
        %v2447 = vpack.c.b16 %v2175, %v2171
        %v2448 = vpack.c.b16 %v2176, %v2172
        %v2449 = vpack.c.b16 %v2177, %v2173
        %v2450 = vpack.c.b16 %v2182, %v2178
        %v2451 = vpack.c.b16 %v2183, %v2179
        %v2452 = vpack.c.b16 %v2184, %v2180
        %v2453 = vpack.c.b16 %v2185, %v2181
        %v2454 = vpack.c.b16 %v2190, %v2186
        %v2455 = vpack.c.b16 %v2191, %v2187
        %v2456 = vpack.c.b16 %v2192, %v2188
        %v2457 = vpack.c.b16 %v2193, %v2189
        %v2458 = vpack.c.b16 %v2198, %v2194
        %v2459 = vpack.c.b16 %v2199, %v2195
        %v2460 = vpack.c.b16 %v2200, %v2196
        %v2461 = vpack.c.b16 %v2201, %v2197
        %v2462 = vpack.c.b16 %v2206, %v2202
        %v2463 = vpack.c.b16 %v2207, %v2203
        %v2464 = vpack.c.b16 %v2208, %v2204
        %v2465 = vpack.c.b16 %v2209, %v2205
        %2722 = vmatpush.bf16.msra.mxu0 %v2238
        %2723 = vmatpush.bf16.msra.mxu0 %v2234
        %2724 = vmatpush.bf16.msra.mxu0 %v2230
        %2725 = vmatpush.bf16.msra.mxu0 %v2226
        %2726 = vmatpush.bf16.msra.mxu0 %v2222
        %2727 = vmatpush.bf16.msra.mxu0 %v2218
        %2728 = vmatpush.bf16.msra.mxu0 %v2214
        %2729 = vmatpush.bf16.msra.mxu0 %v2210
        %2730 = vmatmul.bf16.gmra.mxu0 %v1168
        %v2731 = vpop.f32.mrf.mxu0
        %v2732 = vadd.f32 %v1434, %v2731
        %v2733 = vpop.f32.mrf.mxu0
        %v2734 = vadd.f32 %v1434, %v2733
        %2735 = vdwg.mxu0
        %2736 = vmatpush.bf16.msra.mxu0 %v2270
        %2737 = vmatpush.bf16.msra.mxu0 %v2266
        %2738 = vmatpush.bf16.msra.mxu0 %v2262
        %2739 = vmatpush.bf16.msra.mxu0 %v2258
        %2740 = vmatpush.bf16.msra.mxu0 %v2254
        %2741 = vmatpush.bf16.msra.mxu0 %v2250
        %2742 = vmatpush.bf16.msra.mxu0 %v2246
        %2743 = vmatpush.bf16.msra.mxu0 %v2242
        %2744 = vmatmul.bf16.gmra.mxu0 %v1169
        %v2745 = vpop.f32.mrf.mxu0
        %v2746 = vadd.f32 %v2732, %v2745
        %v2747 = vpop.f32.mrf.mxu0
        %v2748 = vadd.f32 %v2734, %v2747
        %2749 = vdwg.mxu0
        %2750 = vmatpush.bf16.msra.mxu0 %v2302
        %2751 = vmatpush.bf16.msra.mxu0 %v2298
        %2752 = vmatpush.bf16.msra.mxu0 %v2294
        %2753 = vmatpush.bf16.msra.mxu0 %v2290
        %2754 = vmatpush.bf16.msra.mxu0 %v2286
        %2755 = vmatpush.bf16.msra.mxu0 %v2282
        %2756 = vmatpush.bf16.msra.mxu0 %v2278
        %2757 = vmatpush.bf16.msra.mxu0 %v2274
        %2758 = vmatmul.bf16.gmra.mxu0 %v1170
        %v2759 = vpop.f32.mrf.mxu0
        %v2760 = vadd.f32 %v2746, %v2759
        %v2761 = vpop.f32.mrf.mxu0
        %v2762 = vadd.f32 %v2748, %v2761
        %2763 = vdwg.mxu0
        %2764 = vmatpush.bf16.msra.mxu0 %v2334
        %2765 = vmatpush.bf16.msra.mxu0 %v2330
        %2766 = vmatpush.bf16.msra.mxu0 %v2326
        %2767 = vmatpush.bf16.msra.mxu0 %v2322
        %2768 = vmatpush.bf16.msra.mxu0 %v2318
        %2769 = vmatpush.bf16.msra.mxu0 %v2314
        %2770 = vmatpush.bf16.msra.mxu0 %v2310
        %2771 = vmatpush.bf16.msra.mxu0 %v2306
        %2772 = vmatmul.bf16.gmra.mxu0 %v1171
        %v2773 = vpop.f32.mrf.mxu0
        %v2774 = vadd.f32 %v2760, %v2773
        %v2775 = vpop.f32.mrf.mxu0
        %v2776 = vadd.f32 %v2762, %v2775
        %2777 = vdwg.mxu0
        %2778 = vmatpush.bf16.msra.mxu0 %v2366
        %2779 = vmatpush.bf16.msra.mxu0 %v2362
        %2780 = vmatpush.bf16.msra.mxu0 %v2358
        %2781 = vmatpush.bf16.msra.mxu0 %v2354
        %2782 = vmatpush.bf16.msra.mxu0 %v2350
        %2783 = vmatpush.bf16.msra.mxu0 %v2346
        %2784 = vmatpush.bf16.msra.mxu0 %v2342
        %2785 = vmatpush.bf16.msra.mxu0 %v2338
        %2786 = vmatmul.bf16.gmra.mxu0 %v1172
        %v2787 = vpop.f32.mrf.mxu0
        %v2788 = vadd.f32 %v2774, %v2787
        %v2789 = vpop.f32.mrf.mxu0
        %v2790 = vadd.f32 %v2776, %v2789
        %2791 = vdwg.mxu0
        %2792 = vmatpush.bf16.msra.mxu0 %v2398
        %2793 = vmatpush.bf16.msra.mxu0 %v2394
        %2794 = vmatpush.bf16.msra.mxu0 %v2390
        %2795 = vmatpush.bf16.msra.mxu0 %v2386
        %2796 = vmatpush.bf16.msra.mxu0 %v2382
        %2797 = vmatpush.bf16.msra.mxu0 %v2378
        %2798 = vmatpush.bf16.msra.mxu0 %v2374
        %2799 = vmatpush.bf16.msra.mxu0 %v2370
        %2800 = vmatmul.bf16.gmra.mxu0 %v1173
        %v2801 = vpop.f32.mrf.mxu0
        %v2802 = vadd.f32 %v2788, %v2801
        %v2803 = vpop.f32.mrf.mxu0
        %v2804 = vadd.f32 %v2790, %v2803
        %2805 = vdwg.mxu0
        %2806 = vmatpush.bf16.msra.mxu0 %v2430
        %2807 = vmatpush.bf16.msra.mxu0 %v2426
        %2808 = vmatpush.bf16.msra.mxu0 %v2422
        %2809 = vmatpush.bf16.msra.mxu0 %v2418
        %2810 = vmatpush.bf16.msra.mxu0 %v2414
        %2811 = vmatpush.bf16.msra.mxu0 %v2410
        %2812 = vmatpush.bf16.msra.mxu0 %v2406
        %2813 = vmatpush.bf16.msra.mxu0 %v2402
        %2814 = vmatmul.bf16.gmra.mxu0 %v1174
        %v2815 = vpop.f32.mrf.mxu0
        %v2816 = vadd.f32 %v2802, %v2815
        %v2817 = vpop.f32.mrf.mxu0
        %v2818 = vadd.f32 %v2804, %v2817
        %2819 = vdwg.mxu0
        %2820 = vmatpush.bf16.msra.mxu0 %v2462
        %2821 = vmatpush.bf16.msra.mxu0 %v2458
        %2822 = vmatpush.bf16.msra.mxu0 %v2454
        %2823 = vmatpush.bf16.msra.mxu0 %v2450
        %2824 = vmatpush.bf16.msra.mxu0 %v2446
        %2825 = vmatpush.bf16.msra.mxu0 %v2442
        %2826 = vmatpush.bf16.msra.mxu0 %v2438
        %2827 = vmatpush.bf16.msra.mxu0 %v2434
        %2828 = vmatmul.bf16.gmra.mxu0 %v1175
        %v2829 = vpop.f32.mrf.mxu0
        %v2830 = vadd.f32 %v2816, %v2829
        %v2831 = vpop.f32.mrf.mxu0
        %v2832 = vadd.f32 %v2818, %v2831
        %2833 = vdwg.mxu0
        %2834 = vmatpush.bf16.msra.mxu0 %v2239
        %2835 = vmatpush.bf16.msra.mxu0 %v2235
        %2836 = vmatpush.bf16.msra.mxu0 %v2231
        %2837 = vmatpush.bf16.msra.mxu0 %v2227
        %2838 = vmatpush.bf16.msra.mxu0 %v2223
        %2839 = vmatpush.bf16.msra.mxu0 %v2219
        %2840 = vmatpush.bf16.msra.mxu0 %v2215
        %2841 = vmatpush.bf16.msra.mxu0 %v2211
        %2842 = vmatmul.bf16.gmra.mxu0 %v1168
        %v2843 = vpop.f32.mrf.mxu0
        %v2844 = vadd.f32 %v1435, %v2843
        %v2845 = vpop.f32.mrf.mxu0
        %v2846 = vadd.f32 %v1435, %v2845
        %2847 = vdwg.mxu0
        %2848 = vmatpush.bf16.msra.mxu0 %v2271
        %2849 = vmatpush.bf16.msra.mxu0 %v2267
        %2850 = vmatpush.bf16.msra.mxu0 %v2263
        %2851 = vmatpush.bf16.msra.mxu0 %v2259
        %2852 = vmatpush.bf16.msra.mxu0 %v2255
        %2853 = vmatpush.bf16.msra.mxu0 %v2251
        %2854 = vmatpush.bf16.msra.mxu0 %v2247
        %2855 = vmatpush.bf16.msra.mxu0 %v2243
        %2856 = vmatmul.bf16.gmra.mxu0 %v1169
        %v2857 = vpop.f32.mrf.mxu0
        %v2858 = vadd.f32 %v2844, %v2857
        %v2859 = vpop.f32.mrf.mxu0
        %v2860 = vadd.f32 %v2846, %v2859
        %2861 = vdwg.mxu0
        %2862 = vmatpush.bf16.msra.mxu0 %v2303
        %2863 = vmatpush.bf16.msra.mxu0 %v2299
        %2864 = vmatpush.bf16.msra.mxu0 %v2295
        %2865 = vmatpush.bf16.msra.mxu0 %v2291
        %2866 = vmatpush.bf16.msra.mxu0 %v2287
        %2867 = vmatpush.bf16.msra.mxu0 %v2283
        %2868 = vmatpush.bf16.msra.mxu0 %v2279
        %2869 = vmatpush.bf16.msra.mxu0 %v2275
        %2870 = vmatmul.bf16.gmra.mxu0 %v1170
        %v2871 = vpop.f32.mrf.mxu0
        %v2872 = vadd.f32 %v2858, %v2871
        %v2873 = vpop.f32.mrf.mxu0
        %v2874 = vadd.f32 %v2860, %v2873
        %2875 = vdwg.mxu0
        %2876 = vmatpush.bf16.msra.mxu0 %v2335
        %2877 = vmatpush.bf16.msra.mxu0 %v2331
        %2878 = vmatpush.bf16.msra.mxu0 %v2327
        %2879 = vmatpush.bf16.msra.mxu0 %v2323
        %2880 = vmatpush.bf16.msra.mxu0 %v2319
        %2881 = vmatpush.bf16.msra.mxu0 %v2315
        %2882 = vmatpush.bf16.msra.mxu0 %v2311
        %2883 = vmatpush.bf16.msra.mxu0 %v2307
        %2884 = vmatmul.bf16.gmra.mxu0 %v1171
        %v2885 = vpop.f32.mrf.mxu0
        %v2886 = vadd.f32 %v2872, %v2885
        %v2887 = vpop.f32.mrf.mxu0
        %v2888 = vadd.f32 %v2874, %v2887
        %2889 = vdwg.mxu0
        %2890 = vmatpush.bf16.msra.mxu0 %v2367
        %2891 = vmatpush.bf16.msra.mxu0 %v2363
        %2892 = vmatpush.bf16.msra.mxu0 %v2359
        %2893 = vmatpush.bf16.msra.mxu0 %v2355
        %2894 = vmatpush.bf16.msra.mxu0 %v2351
        %2895 = vmatpush.bf16.msra.mxu0 %v2347
        %2896 = vmatpush.bf16.msra.mxu0 %v2343
        %2897 = vmatpush.bf16.msra.mxu0 %v2339
        %2898 = vmatmul.bf16.gmra.mxu0 %v1172
        %v2899 = vpop.f32.mrf.mxu0
        %v2900 = vadd.f32 %v2886, %v2899
        %v2901 = vpop.f32.mrf.mxu0
        %v2902 = vadd.f32 %v2888, %v2901
        %2903 = vdwg.mxu0
        %2904 = vmatpush.bf16.msra.mxu0 %v2399
        %2905 = vmatpush.bf16.msra.mxu0 %v2395
        %2906 = vmatpush.bf16.msra.mxu0 %v2391
        %2907 = vmatpush.bf16.msra.mxu0 %v2387
        %2908 = vmatpush.bf16.msra.mxu0 %v2383
        %2909 = vmatpush.bf16.msra.mxu0 %v2379
        %2910 = vmatpush.bf16.msra.mxu0 %v2375
        %2911 = vmatpush.bf16.msra.mxu0 %v2371
        %2912 = vmatmul.bf16.gmra.mxu0 %v1173
        %v2913 = vpop.f32.mrf.mxu0
        %v2914 = vadd.f32 %v2900, %v2913
        %v2915 = vpop.f32.mrf.mxu0
        %v2916 = vadd.f32 %v2902, %v2915
        %2917 = vdwg.mxu0
        %2918 = vmatpush.bf16.msra.mxu0 %v2431
        %2919 = vmatpush.bf16.msra.mxu0 %v2427
        %2920 = vmatpush.bf16.msra.mxu0 %v2423
        %2921 = vmatpush.bf16.msra.mxu0 %v2419
        %2922 = vmatpush.bf16.msra.mxu0 %v2415
        %2923 = vmatpush.bf16.msra.mxu0 %v2411
        %2924 = vmatpush.bf16.msra.mxu0 %v2407
        %2925 = vmatpush.bf16.msra.mxu0 %v2403
        %2926 = vmatmul.bf16.gmra.mxu0 %v1174
        %v2927 = vpop.f32.mrf.mxu0
        %v2928 = vadd.f32 %v2914, %v2927
        %v2929 = vpop.f32.mrf.mxu0
        %v2930 = vadd.f32 %v2916, %v2929
        %2931 = vdwg.mxu0
        %2932 = vmatpush.bf16.msra.mxu0 %v2463
        %2933 = vmatpush.bf16.msra.mxu0 %v2459
        %2934 = vmatpush.bf16.msra.mxu0 %v2455
        %2935 = vmatpush.bf16.msra.mxu0 %v2451
        %2936 = vmatpush.bf16.msra.mxu0 %v2447
        %2937 = vmatpush.bf16.msra.mxu0 %v2443
        %2938 = vmatpush.bf16.msra.mxu0 %v2439
        %2939 = vmatpush.bf16.msra.mxu0 %v2435
        %2940 = vmatmul.bf16.gmra.mxu0 %v1175
        %v2941 = vpop.f32.mrf.mxu0
        %v2942 = vadd.f32 %v2928, %v2941
        %v2943 = vpop.f32.mrf.mxu0
        %v2944 = vadd.f32 %v2930, %v2943
        %2945 = vdwg.mxu0
        %2946 = vmatpush.bf16.msra.mxu0 %v2240
        %2947 = vmatpush.bf16.msra.mxu0 %v2236
        %2948 = vmatpush.bf16.msra.mxu0 %v2232
        %2949 = vmatpush.bf16.msra.mxu0 %v2228
        %2950 = vmatpush.bf16.msra.mxu0 %v2224
        %2951 = vmatpush.bf16.msra.mxu0 %v2220
        %2952 = vmatpush.bf16.msra.mxu0 %v2216
        %2953 = vmatpush.bf16.msra.mxu0 %v2212
        %2954 = vmatmul.bf16.gmra.mxu0 %v1168
        %v2955 = vpop.f32.mrf.mxu0
        %v2956 = vadd.f32 %v1436, %v2955
        %v2957 = vpop.f32.mrf.mxu0
        %v2958 = vadd.f32 %v1436, %v2957
        %2959 = vdwg.mxu0
        %2960 = vmatpush.bf16.msra.mxu0 %v2272
        %2961 = vmatpush.bf16.msra.mxu0 %v2268
        %2962 = vmatpush.bf16.msra.mxu0 %v2264
        %2963 = vmatpush.bf16.msra.mxu0 %v2260
        %2964 = vmatpush.bf16.msra.mxu0 %v2256
        %2965 = vmatpush.bf16.msra.mxu0 %v2252
        %2966 = vmatpush.bf16.msra.mxu0 %v2248
        %2967 = vmatpush.bf16.msra.mxu0 %v2244
        %2968 = vmatmul.bf16.gmra.mxu0 %v1169
        %v2969 = vpop.f32.mrf.mxu0
        %v2970 = vadd.f32 %v2956, %v2969
        %v2971 = vpop.f32.mrf.mxu0
        %v2972 = vadd.f32 %v2958, %v2971
        %2973 = vdwg.mxu0
        %2974 = vmatpush.bf16.msra.mxu0 %v2304
        %2975 = vmatpush.bf16.msra.mxu0 %v2300
        %2976 = vmatpush.bf16.msra.mxu0 %v2296
        %2977 = vmatpush.bf16.msra.mxu0 %v2292
        %2978 = vmatpush.bf16.msra.mxu0 %v2288
        %2979 = vmatpush.bf16.msra.mxu0 %v2284
        %2980 = vmatpush.bf16.msra.mxu0 %v2280
        %2981 = vmatpush.bf16.msra.mxu0 %v2276
        %2982 = vmatmul.bf16.gmra.mxu0 %v1170
        %v2983 = vpop.f32.mrf.mxu0
        %v2984 = vadd.f32 %v2970, %v2983
        %v2985 = vpop.f32.mrf.mxu0
        %v2986 = vadd.f32 %v2972, %v2985
        %2987 = vdwg.mxu0
        %2988 = vmatpush.bf16.msra.mxu0 %v2336
        %2989 = vmatpush.bf16.msra.mxu0 %v2332
        %2990 = vmatpush.bf16.msra.mxu0 %v2328
        %2991 = vmatpush.bf16.msra.mxu0 %v2324
        %2992 = vmatpush.bf16.msra.mxu0 %v2320
        %2993 = vmatpush.bf16.msra.mxu0 %v2316
        %2994 = vmatpush.bf16.msra.mxu0 %v2312
        %2995 = vmatpush.bf16.msra.mxu0 %v2308
        %2996 = vmatmul.bf16.gmra.mxu0 %v1171
        %v2997 = vpop.f32.mrf.mxu0
        %v2998 = vadd.f32 %v2984, %v2997
        %v2999 = vpop.f32.mrf.mxu0
        %v3000 = vadd.f32 %v2986, %v2999
        %3001 = vdwg.mxu0
        %3002 = vmatpush.bf16.msra.mxu0 %v2368
        %3003 = vmatpush.bf16.msra.mxu0 %v2364
        %3004 = vmatpush.bf16.msra.mxu0 %v2360
        %3005 = vmatpush.bf16.msra.mxu0 %v2356
        %3006 = vmatpush.bf16.msra.mxu0 %v2352
        %3007 = vmatpush.bf16.msra.mxu0 %v2348
        %3008 = vmatpush.bf16.msra.mxu0 %v2344
        %3009 = vmatpush.bf16.msra.mxu0 %v2340
        %3010 = vmatmul.bf16.gmra.mxu0 %v1172
        %v3011 = vpop.f32.mrf.mxu0
        %v3012 = vadd.f32 %v2998, %v3011
        %v3013 = vpop.f32.mrf.mxu0
        %v3014 = vadd.f32 %v3000, %v3013
        %3015 = vdwg.mxu0
        %3016 = vmatpush.bf16.msra.mxu0 %v2400
        %3017 = vmatpush.bf16.msra.mxu0 %v2396
        %3018 = vmatpush.bf16.msra.mxu0 %v2392
        %3019 = vmatpush.bf16.msra.mxu0 %v2388
        %3020 = vmatpush.bf16.msra.mxu0 %v2384
        %3021 = vmatpush.bf16.msra.mxu0 %v2380
        %3022 = vmatpush.bf16.msra.mxu0 %v2376
        %3023 = vmatpush.bf16.msra.mxu0 %v2372
        %3024 = vmatmul.bf16.gmra.mxu0 %v1173
        %v3025 = vpop.f32.mrf.mxu0
        %v3026 = vadd.f32 %v3012, %v3025
        %v3027 = vpop.f32.mrf.mxu0
        %v3028 = vadd.f32 %v3014, %v3027
        %3029 = vdwg.mxu0
        %3030 = vmatpush.bf16.msra.mxu0 %v2432
        %3031 = vmatpush.bf16.msra.mxu0 %v2428
        %3032 = vmatpush.bf16.msra.mxu0 %v2424
        %3033 = vmatpush.bf16.msra.mxu0 %v2420
        %3034 = vmatpush.bf16.msra.mxu0 %v2416
        %3035 = vmatpush.bf16.msra.mxu0 %v2412
        %3036 = vmatpush.bf16.msra.mxu0 %v2408
        %3037 = vmatpush.bf16.msra.mxu0 %v2404
        %3038 = vmatmul.bf16.gmra.mxu0 %v1174
        %v3039 = vpop.f32.mrf.mxu0
        %v3040 = vadd.f32 %v3026, %v3039
        %v3041 = vpop.f32.mrf.mxu0
        %v3042 = vadd.f32 %v3028, %v3041
        %3043 = vdwg.mxu0
        %3044 = vmatpush.bf16.msra.mxu0 %v2464
        %3045 = vmatpush.bf16.msra.mxu0 %v2460
        %3046 = vmatpush.bf16.msra.mxu0 %v2456
        %3047 = vmatpush.bf16.msra.mxu0 %v2452
        %3048 = vmatpush.bf16.msra.mxu0 %v2448
        %3049 = vmatpush.bf16.msra.mxu0 %v2444
        %3050 = vmatpush.bf16.msra.mxu0 %v2440
        %3051 = vmatpush.bf16.msra.mxu0 %v2436
        %3052 = vmatmul.bf16.gmra.mxu0 %v1175
        %v3053 = vpop.f32.mrf.mxu0
        %v3054 = vadd.f32 %v3040, %v3053
        %v3055 = vpop.f32.mrf.mxu0
        %v3056 = vadd.f32 %v3042, %v3055
        %3057 = vdwg.mxu0
        %3058 = vmatpush.bf16.msra.mxu0 %v2241
        %3059 = vmatpush.bf16.msra.mxu0 %v2237
        %3060 = vmatpush.bf16.msra.mxu0 %v2233
        %3061 = vmatpush.bf16.msra.mxu0 %v2229
        %3062 = vmatpush.bf16.msra.mxu0 %v2225
        %3063 = vmatpush.bf16.msra.mxu0 %v2221
        %3064 = vmatpush.bf16.msra.mxu0 %v2217
        %3065 = vmatpush.bf16.msra.mxu0 %v2213
        %3066 = vmatmul.bf16.gmra.mxu0 %v1168
        %v3067 = vpop.f32.mrf.mxu0
        %v3068 = vadd.f32 %v1437, %v3067
        %v3069 = vpop.f32.mrf.mxu0
        %v3070 = vadd.f32 %v1437, %v3069
        %3071 = vdwg.mxu0
        %3072 = vmatpush.bf16.msra.mxu0 %v2273
        %3073 = vmatpush.bf16.msra.mxu0 %v2269
        %3074 = vmatpush.bf16.msra.mxu0 %v2265
        %3075 = vmatpush.bf16.msra.mxu0 %v2261
        %3076 = vmatpush.bf16.msra.mxu0 %v2257
        %3077 = vmatpush.bf16.msra.mxu0 %v2253
        %3078 = vmatpush.bf16.msra.mxu0 %v2249
        %3079 = vmatpush.bf16.msra.mxu0 %v2245
        %3080 = vmatmul.bf16.gmra.mxu0 %v1169
        %v3081 = vpop.f32.mrf.mxu0
        %v3082 = vadd.f32 %v3068, %v3081
        %v3083 = vpop.f32.mrf.mxu0
        %v3084 = vadd.f32 %v3070, %v3083
        %3085 = vdwg.mxu0
        %3086 = vmatpush.bf16.msra.mxu0 %v2305
        %3087 = vmatpush.bf16.msra.mxu0 %v2301
        %3088 = vmatpush.bf16.msra.mxu0 %v2297
        %3089 = vmatpush.bf16.msra.mxu0 %v2293
        %3090 = vmatpush.bf16.msra.mxu0 %v2289
        %3091 = vmatpush.bf16.msra.mxu0 %v2285
        %3092 = vmatpush.bf16.msra.mxu0 %v2281
        %3093 = vmatpush.bf16.msra.mxu0 %v2277
        %3094 = vmatmul.bf16.gmra.mxu0 %v1170
        %v3095 = vpop.f32.mrf.mxu0
        %v3096 = vadd.f32 %v3082, %v3095
        %v3097 = vpop.f32.mrf.mxu0
        %v3098 = vadd.f32 %v3084, %v3097
        %3099 = vdwg.mxu0
        %3100 = vmatpush.bf16.msra.mxu0 %v2337
        %3101 = vmatpush.bf16.msra.mxu0 %v2333
        %3102 = vmatpush.bf16.msra.mxu0 %v2329
        %3103 = vmatpush.bf16.msra.mxu0 %v2325
        %3104 = vmatpush.bf16.msra.mxu0 %v2321
        %3105 = vmatpush.bf16.msra.mxu0 %v2317
        %3106 = vmatpush.bf16.msra.mxu0 %v2313
        %3107 = vmatpush.bf16.msra.mxu0 %v2309
        %3108 = vmatmul.bf16.gmra.mxu0 %v1171
        %v3109 = vpop.f32.mrf.mxu0
        %v3110 = vadd.f32 %v3096, %v3109
        %v3111 = vpop.f32.mrf.mxu0
        %v3112 = vadd.f32 %v3098, %v3111
        %3113 = vdwg.mxu0
        %3114 = vmatpush.bf16.msra.mxu0 %v2369
        %3115 = vmatpush.bf16.msra.mxu0 %v2365
        %3116 = vmatpush.bf16.msra.mxu0 %v2361
        %3117 = vmatpush.bf16.msra.mxu0 %v2357
        %3118 = vmatpush.bf16.msra.mxu0 %v2353
        %3119 = vmatpush.bf16.msra.mxu0 %v2349
        %3120 = vmatpush.bf16.msra.mxu0 %v2345
        %3121 = vmatpush.bf16.msra.mxu0 %v2341
        %3122 = vmatmul.bf16.gmra.mxu0 %v1172
        %v3123 = vpop.f32.mrf.mxu0
        %v3124 = vadd.f32 %v3110, %v3123
        %v3125 = vpop.f32.mrf.mxu0
        %v3126 = vadd.f32 %v3112, %v3125
        %3127 = vdwg.mxu0
        %3128 = vmatpush.bf16.msra.mxu0 %v2401
        %3129 = vmatpush.bf16.msra.mxu0 %v2397
        %3130 = vmatpush.bf16.msra.mxu0 %v2393
        %3131 = vmatpush.bf16.msra.mxu0 %v2389
        %3132 = vmatpush.bf16.msra.mxu0 %v2385
        %3133 = vmatpush.bf16.msra.mxu0 %v2381
        %3134 = vmatpush.bf16.msra.mxu0 %v2377
        %3135 = vmatpush.bf16.msra.mxu0 %v2373
        %3136 = vmatmul.bf16.gmra.mxu0 %v1173
        %v3137 = vpop.f32.mrf.mxu0
        %v3138 = vadd.f32 %v3124, %v3137
        %v3139 = vpop.f32.mrf.mxu0
        %v3140 = vadd.f32 %v3126, %v3139
        %3141 = vdwg.mxu0
        %3142 = vmatpush.bf16.msra.mxu0 %v2433
        %3143 = vmatpush.bf16.msra.mxu0 %v2429
        %3144 = vmatpush.bf16.msra.mxu0 %v2425
        %3145 = vmatpush.bf16.msra.mxu0 %v2421
        %3146 = vmatpush.bf16.msra.mxu0 %v2417
        %3147 = vmatpush.bf16.msra.mxu0 %v2413
        %3148 = vmatpush.bf16.msra.mxu0 %v2409
        %3149 = vmatpush.bf16.msra.mxu0 %v2405
        %3150 = vmatmul.bf16.gmra.mxu0 %v1174
        %v3151 = vpop.f32.mrf.mxu0
        %v3152 = vadd.f32 %v3138, %v3151
        %v3153 = vpop.f32.mrf.mxu0
        %v3154 = vadd.f32 %v3140, %v3153
        %3155 = vdwg.mxu0
        %3156 = vmatpush.bf16.msra.mxu0 %v2465
        %3157 = vmatpush.bf16.msra.mxu0 %v2461
        %3158 = vmatpush.bf16.msra.mxu0 %v2457
        %3159 = vmatpush.bf16.msra.mxu0 %v2453
        %3160 = vmatpush.bf16.msra.mxu0 %v2449
        %3161 = vmatpush.bf16.msra.mxu0 %v2445
        %3162 = vmatpush.bf16.msra.mxu0 %v2441
        %3163 = vmatpush.bf16.msra.mxu0 %v2437
        %3164 = vmatmul.bf16.gmra.mxu0 %v1175
        %v3165 = vpop.f32.mrf.mxu0
        %v3166 = vadd.f32 %v3152, %v3165
        %v3167 = vpop.f32.mrf.mxu0
        %v3168 = vadd.f32 %v3154, %v3167
        %3169 = vdwg.mxu0
        %v3170 = vmul.f32 %v2830, 0.2
        %v3171 = vmul.f32 %v2942, 0.2
        %v3172 = vmul.f32 %v3054, 0.2
        %v3173 = vmul.f32 %v3166, 0.2
        %v3174 = vmul.f32 %v2832, 0.2
        %v3175 = vmul.f32 %v2944, 0.2
        %v3176 = vmul.f32 %v3056, 0.2
        %v3177 = vmul.f32 %v3168, 0.2
        %v3178 = vmax.f32 %v2830, %v3170
        %v3179 = vmax.f32 %v2942, %v3171
        %v3180 = vmax.f32 %v3054, %v3172
        %v3181 = vmax.f32 %v3166, %v3173
        %v3182 = vmax.f32 %v2832, %v3174
        %v3183 = vmax.f32 %v2944, %v3175
        %v3184 = vmax.f32 %v3056, %v3176
        %v3185 = vmax.f32 %v3168, %v3177
        %v3186 = vpack.c.bf16 %v3182, %v3178
        %v3187 = vpack.c.bf16 %v3183, %v3179
        %v3188 = vpack.c.bf16 %v3184, %v3180
        %v3189 = vpack.c.bf16 %v3185, %v3181
        %v3190 = vld [vmem:[#allocation6] sm:$0xff]
        %v3191 = vld [vmem:[#allocation6 + $0x8] sm:$0xff]
        %v3192 = vld [vmem:[#allocation6 + $0x10] sm:$0xff]
        %v3193 = vld [vmem:[#allocation6 + $0x18] sm:$0xff]
        %v3194 = vld [vmem:[#allocation6 + $0x20] sm:$0xff]
        %v3195 = vld [vmem:[#allocation6 + $0x28] sm:$0xff]
        %v3196 = vld [vmem:[#allocation6 + $0x30] sm:$0xff]
        %v3197 = vld [vmem:[#allocation6 + $0x38] sm:$0xff]
        %v3198 = vld [vmem:[#allocation6 + $0x40] sm:$0xff]
        %v3199 = vld [vmem:[#allocation6 + $0x48] sm:$0xff]
        %v3200 = vld [vmem:[#allocation6 + $0x50] sm:$0xff]
        %v3201 = vld [vmem:[#allocation6 + $0x58] sm:$0xff]
        %v3202 = vld [vmem:[#allocation6 + $0x60] sm:$0xff]
        %v3203 = vld [vmem:[#allocation6 + $0x68] sm:$0xff]
        %v3204 = vld [vmem:[#allocation6 + $0x70] sm:$0xff]
        %v3205 = vld [vmem:[#allocation6 + $0x78] sm:$0xff]
        %v3206 = vld [vmem:[#allocation6 + $0x80] sm:$0xff]
        %v3207 = vld [vmem:[#allocation6 + $0x88] sm:$0xff]
        %v3208 = vld [vmem:[#allocation6 + $0x90] sm:$0xff]
        %v3209 = vld [vmem:[#allocation6 + $0x98] sm:$0xff]
        %v3210 = vld [vmem:[#allocation6 + $0xa0] sm:$0xff]
        %v3211 = vld [vmem:[#allocation6 + $0xa8] sm:$0xff]
        %v3212 = vld [vmem:[#allocation6 + $0xb0] sm:$0xff]
        %v3213 = vld [vmem:[#allocation6 + $0xb8] sm:$0xff]
        %v3214 = vld [vmem:[#allocation6 + $0xc0] sm:$0xff]
        %v3215 = vld [vmem:[#allocation6 + $0xc8] sm:$0xff]
        %v3216 = vld [vmem:[#allocation6 + $0xd0] sm:$0xff]
        %v3217 = vld [vmem:[#allocation6 + $0xd8] sm:$0xff]
        %v3218 = vld [vmem:[#allocation6 + $0xe0] sm:$0xff]
        %v3219 = vld [vmem:[#allocation6 + $0xe8] sm:$0xff]
        %v3220 = vld [vmem:[#allocation6 + $0xf0] sm:$0xff]
        %v3221 = vld [vmem:[#allocation6 + $0xf8] sm:$0xff]
        %v3222 = vld [vmem:[#allocation6 + $0x100] sm:$0xff]
        %v3223 = vld [vmem:[#allocation6 + $0x108] sm:$0xff]
        %v3224 = vld [vmem:[#allocation6 + $0x110] sm:$0xff]
        %v3225 = vld [vmem:[#allocation6 + $0x118] sm:$0xff]
        %v3226 = vld [vmem:[#allocation6 + $0x120] sm:$0xff]
        %v3227 = vld [vmem:[#allocation6 + $0x128] sm:$0xff]
        %v3228 = vld [vmem:[#allocation6 + $0x130] sm:$0xff]
        %v3229 = vld [vmem:[#allocation6 + $0x138] sm:$0xff]
        %v3230 = vld [vmem:[#allocation6 + $0x140] sm:$0xff]
        %v3231 = vld [vmem:[#allocation6 + $0x148] sm:$0xff]
        %v3232 = vld [vmem:[#allocation6 + $0x150] sm:$0xff]
        %v3233 = vld [vmem:[#allocation6 + $0x158] sm:$0xff]
        %v3234 = vld [vmem:[#allocation6 + $0x160] sm:$0xff]
        %v3235 = vld [vmem:[#allocation6 + $0x168] sm:$0xff]
        %v3236 = vld [vmem:[#allocation6 + $0x170] sm:$0xff]
        %v3237 = vld [vmem:[#allocation6 + $0x178] sm:$0xff]
        %v3238 = vld [vmem:[#allocation6 + $0x180] sm:$0xff]
        %v3239 = vld [vmem:[#allocation6 + $0x188] sm:$0xff]
        %v3240 = vld [vmem:[#allocation6 + $0x190] sm:$0xff]
        %v3241 = vld [vmem:[#allocation6 + $0x198] sm:$0xff]
        %v3242 = vld [vmem:[#allocation6 + $0x1a0] sm:$0xff]
        %v3243 = vld [vmem:[#allocation6 + $0x1a8] sm:$0xff]
        %v3244 = vld [vmem:[#allocation6 + $0x1b0] sm:$0xff]
        %v3245 = vld [vmem:[#allocation6 + $0x1b8] sm:$0xff]
        %v3246 = vld [vmem:[#allocation6 + $0x1c0] sm:$0xff]
        %v3247 = vld [vmem:[#allocation6 + $0x1c8] sm:$0xff]
        %v3248 = vld [vmem:[#allocation6 + $0x1d0] sm:$0xff]
        %v3249 = vld [vmem:[#allocation6 + $0x1d8] sm:$0xff]
        %v3250 = vld [vmem:[#allocation6 + $0x1e0] sm:$0xff]
        %v3251 = vld [vmem:[#allocation6 + $0x1e8] sm:$0xff]
        %v3252 = vld [vmem:[#allocation6 + $0x1f0] sm:$0xff]
        %v3253 = vld [vmem:[#allocation6 + $0x1f8] sm:$0xff]
        %v3254 = vld [vmem:[%s6] sm:$0x3]
        %v3256 = vperm.slane %v3254, 0
        %v3257 = vperm.slane %v3254, 1
        %v3324 = vunpack.c.l.b16 %v3190
        %v3325 = vunpack.c.h.b16 %v3190
        %v3326 = vunpack.c.l.b16 %v3191
        %v3327 = vunpack.c.h.b16 %v3191
        %v3328 = vunpack.c.l.b16 %v3192
        %v3329 = vunpack.c.h.b16 %v3192
        %v3330 = vunpack.c.l.b16 %v3193
        %v3331 = vunpack.c.h.b16 %v3193
        %v3332 = vunpack.c.l.b16 %v3194
        %v3333 = vunpack.c.h.b16 %v3194
        %v3334 = vunpack.c.l.b16 %v3195
        %v3335 = vunpack.c.h.b16 %v3195
        %v3336 = vunpack.c.l.b16 %v3196
        %v3337 = vunpack.c.h.b16 %v3196
        %v3338 = vunpack.c.l.b16 %v3197
        %v3339 = vunpack.c.h.b16 %v3197
        %v3340 = vunpack.c.l.b16 %v3198
        %v3341 = vunpack.c.h.b16 %v3198
        %v3342 = vunpack.c.l.b16 %v3199
        %v3343 = vunpack.c.h.b16 %v3199
        %v3344 = vunpack.c.l.b16 %v3200
        %v3345 = vunpack.c.h.b16 %v3200
        %v3346 = vunpack.c.l.b16 %v3201
        %v3347 = vunpack.c.h.b16 %v3201
        %v3348 = vunpack.c.l.b16 %v3202
        %v3349 = vunpack.c.h.b16 %v3202
        %v3350 = vunpack.c.l.b16 %v3203
        %v3351 = vunpack.c.h.b16 %v3203
        %v3352 = vunpack.c.l.b16 %v3204
        %v3353 = vunpack.c.h.b16 %v3204
        %v3354 = vunpack.c.l.b16 %v3205
        %v3355 = vunpack.c.h.b16 %v3205
        %v3356 = vunpack.c.l.b16 %v3206
        %v3357 = vunpack.c.h.b16 %v3206
        %v3358 = vunpack.c.l.b16 %v3207
        %v3359 = vunpack.c.h.b16 %v3207
        %v3360 = vunpack.c.l.b16 %v3208
        %v3361 = vunpack.c.h.b16 %v3208
        %v3362 = vunpack.c.l.b16 %v3209
        %v3363 = vunpack.c.h.b16 %v3209
        %v3364 = vunpack.c.l.b16 %v3210
        %v3365 = vunpack.c.h.b16 %v3210
        %v3366 = vunpack.c.l.b16 %v3211
        %v3367 = vunpack.c.h.b16 %v3211
        %v3368 = vunpack.c.l.b16 %v3212
        %v3369 = vunpack.c.h.b16 %v3212
        %v3370 = vunpack.c.l.b16 %v3213
        %v3371 = vunpack.c.h.b16 %v3213
        %v3372 = vunpack.c.l.b16 %v3214
        %v3373 = vunpack.c.h.b16 %v3214
        %v3374 = vunpack.c.l.b16 %v3215
        %v3375 = vunpack.c.h.b16 %v3215
        %v3376 = vunpack.c.l.b16 %v3216
        %v3377 = vunpack.c.h.b16 %v3216
        %v3378 = vunpack.c.l.b16 %v3217
        %v3379 = vunpack.c.h.b16 %v3217
        %v3380 = vunpack.c.l.b16 %v3218
        %v3381 = vunpack.c.h.b16 %v3218
        %v3382 = vunpack.c.l.b16 %v3219
        %v3383 = vunpack.c.h.b16 %v3219
        %v3384 = vunpack.c.l.b16 %v3220
        %v3385 = vunpack.c.h.b16 %v3220
        %v3386 = vunpack.c.l.b16 %v3221
        %v3387 = vunpack.c.h.b16 %v3221
        %v3388 = vunpack.c.l.b16 %v3222
        %v3389 = vunpack.c.h.b16 %v3222
        %v3390 = vunpack.c.l.b16 %v3223
        %v3391 = vunpack.c.h.b16 %v3223
        %v3392 = vunpack.c.l.b16 %v3224
        %v3393 = vunpack.c.h.b16 %v3224
        %v3394 = vunpack.c.l.b16 %v3225
        %v3395 = vunpack.c.h.b16 %v3225
        %v3396 = vunpack.c.l.b16 %v3226
        %v3397 = vunpack.c.h.b16 %v3226
        %v3398 = vunpack.c.l.b16 %v3227
        %v3399 = vunpack.c.h.b16 %v3227
        %v3400 = vunpack.c.l.b16 %v3228
        %v3401 = vunpack.c.h.b16 %v3228
        %v3402 = vunpack.c.l.b16 %v3229
        %v3403 = vunpack.c.h.b16 %v3229
        %v3404 = vunpack.c.l.b16 %v3230
        %v3405 = vunpack.c.h.b16 %v3230
        %v3406 = vunpack.c.l.b16 %v3231
        %v3407 = vunpack.c.h.b16 %v3231
        %v3408 = vunpack.c.l.b16 %v3232
        %v3409 = vunpack.c.h.b16 %v3232
        %v3410 = vunpack.c.l.b16 %v3233
        %v3411 = vunpack.c.h.b16 %v3233
        %v3412 = vunpack.c.l.b16 %v3234
        %v3413 = vunpack.c.h.b16 %v3234
        %v3414 = vunpack.c.l.b16 %v3235
        %v3415 = vunpack.c.h.b16 %v3235
        %v3416 = vunpack.c.l.b16 %v3236
        %v3417 = vunpack.c.h.b16 %v3236
        %v3418 = vunpack.c.l.b16 %v3237
        %v3419 = vunpack.c.h.b16 %v3237
        %v3420 = vunpack.c.l.b16 %v3238
        %v3421 = vunpack.c.h.b16 %v3238
        %v3422 = vunpack.c.l.b16 %v3239
        %v3423 = vunpack.c.h.b16 %v3239
        %v3424 = vunpack.c.l.b16 %v3240
        %v3425 = vunpack.c.h.b16 %v3240
        %v3426 = vunpack.c.l.b16 %v3241
        %v3427 = vunpack.c.h.b16 %v3241
        %v3428 = vunpack.c.l.b16 %v3242
        %v3429 = vunpack.c.h.b16 %v3242
        %v3430 = vunpack.c.l.b16 %v3243
        %v3431 = vunpack.c.h.b16 %v3243
        %v3432 = vunpack.c.l.b16 %v3244
        %v3433 = vunpack.c.h.b16 %v3244
        %v3434 = vunpack.c.l.b16 %v3245
        %v3435 = vunpack.c.h.b16 %v3245
        %v3436 = vunpack.c.l.b16 %v3246
        %v3437 = vunpack.c.h.b16 %v3246
        %v3438 = vunpack.c.l.b16 %v3247
        %v3439 = vunpack.c.h.b16 %v3247
        %v3440 = vunpack.c.l.b16 %v3248
        %v3441 = vunpack.c.h.b16 %v3248
        %v3442 = vunpack.c.l.b16 %v3249
        %v3443 = vunpack.c.h.b16 %v3249
        %v3444 = vunpack.c.l.b16 %v3250
        %v3445 = vunpack.c.h.b16 %v3250
        %v3446 = vunpack.c.l.b16 %v3251
        %v3447 = vunpack.c.h.b16 %v3251
        %v3448 = vunpack.c.l.b16 %v3252
        %v3449 = vunpack.c.h.b16 %v3252
        %v3450 = vunpack.c.l.b16 %v3253
        %v3451 = vunpack.c.h.b16 %v3253
        %v3452 = vpack.c.b16 %v3326, %v3324
        %v3453 = vpack.c.b16 %v3327, %v3325
        %v3454 = vpack.c.b16 %v3330, %v3328
        %v3455 = vpack.c.b16 %v3331, %v3329
        %v3456 = vpack.c.b16 %v3334, %v3332
        %v3457 = vpack.c.b16 %v3335, %v3333
        %v3458 = vpack.c.b16 %v3338, %v3336
        %v3459 = vpack.c.b16 %v3339, %v3337
        %v3460 = vpack.c.b16 %v3342, %v3340
        %v3461 = vpack.c.b16 %v3343, %v3341
        %v3462 = vpack.c.b16 %v3346, %v3344
        %v3463 = vpack.c.b16 %v3347, %v3345
        %v3464 = vpack.c.b16 %v3350, %v3348
        %v3465 = vpack.c.b16 %v3351, %v3349
        %v3466 = vpack.c.b16 %v3354, %v3352
        %v3467 = vpack.c.b16 %v3355, %v3353
        %v3468 = vpack.c.b16 %v3358, %v3356
        %v3469 = vpack.c.b16 %v3359, %v3357
        %v3470 = vpack.c.b16 %v3362, %v3360
        %v3471 = vpack.c.b16 %v3363, %v3361
        %v3472 = vpack.c.b16 %v3366, %v3364
        %v3473 = vpack.c.b16 %v3367, %v3365
        %v3474 = vpack.c.b16 %v3370, %v3368
        %v3475 = vpack.c.b16 %v3371, %v3369
        %v3476 = vpack.c.b16 %v3374, %v3372
        %v3477 = vpack.c.b16 %v3375, %v3373
        %v3478 = vpack.c.b16 %v3378, %v3376
        %v3479 = vpack.c.b16 %v3379, %v3377
        %v3480 = vpack.c.b16 %v3382, %v3380
        %v3481 = vpack.c.b16 %v3383, %v3381
        %v3482 = vpack.c.b16 %v3386, %v3384
        %v3483 = vpack.c.b16 %v3387, %v3385
        %v3484 = vpack.c.b16 %v3390, %v3388
        %v3485 = vpack.c.b16 %v3391, %v3389
        %v3486 = vpack.c.b16 %v3394, %v3392
        %v3487 = vpack.c.b16 %v3395, %v3393
        %v3488 = vpack.c.b16 %v3398, %v3396
        %v3489 = vpack.c.b16 %v3399, %v3397
        %v3490 = vpack.c.b16 %v3402, %v3400
        %v3491 = vpack.c.b16 %v3403, %v3401
        %v3492 = vpack.c.b16 %v3406, %v3404
        %v3493 = vpack.c.b16 %v3407, %v3405
        %v3494 = vpack.c.b16 %v3410, %v3408
        %v3495 = vpack.c.b16 %v3411, %v3409
        %v3496 = vpack.c.b16 %v3414, %v3412
        %v3497 = vpack.c.b16 %v3415, %v3413
        %v3498 = vpack.c.b16 %v3418, %v3416
        %v3499 = vpack.c.b16 %v3419, %v3417
        %v3500 = vpack.c.b16 %v3422, %v3420
        %v3501 = vpack.c.b16 %v3423, %v3421
        %v3502 = vpack.c.b16 %v3426, %v3424
        %v3503 = vpack.c.b16 %v3427, %v3425
        %v3504 = vpack.c.b16 %v3430, %v3428
        %v3505 = vpack.c.b16 %v3431, %v3429
        %v3506 = vpack.c.b16 %v3434, %v3432
        %v3507 = vpack.c.b16 %v3435, %v3433
        %v3508 = vpack.c.b16 %v3438, %v3436
        %v3509 = vpack.c.b16 %v3439, %v3437
        %v3510 = vpack.c.b16 %v3442, %v3440
        %v3511 = vpack.c.b16 %v3443, %v3441
        %v3512 = vpack.c.b16 %v3446, %v3444
        %v3513 = vpack.c.b16 %v3447, %v3445
        %v3514 = vpack.c.b16 %v3450, %v3448
        %v3515 = vpack.c.b16 %v3451, %v3449
        %3580 = vmatpush.bf16.msra.mxu0 %v3466
        %3581 = vmatpush.bf16.msra.mxu0 %v3464
        %3582 = vmatpush.bf16.msra.mxu0 %v3462
        %3583 = vmatpush.bf16.msra.mxu0 %v3460
        %3584 = vmatpush.bf16.msra.mxu0 %v3458
        %3585 = vmatpush.bf16.msra.mxu0 %v3456
        %3586 = vmatpush.bf16.msra.mxu0 %v3454
        %3587 = vmatpush.bf16.msra.mxu0 %v3452
        %3588 = vmatmul.bf16.gmra.mxu0 %v3186
        %v3589 = vpop.f32.mrf.mxu0
        %v3590 = vadd.f32 %v3256, %v3589
        %v3591 = vpop.f32.mrf.mxu0
        %v3592 = vadd.f32 %v3256, %v3591
        %3593 = vdwg.mxu0
        %3594 = vmatpush.bf16.msra.mxu0 %v3482
        %3595 = vmatpush.bf16.msra.mxu0 %v3480
        %3596 = vmatpush.bf16.msra.mxu0 %v3478
        %3597 = vmatpush.bf16.msra.mxu0 %v3476
        %3598 = vmatpush.bf16.msra.mxu0 %v3474
        %3599 = vmatpush.bf16.msra.mxu0 %v3472
        %3600 = vmatpush.bf16.msra.mxu0 %v3470
        %3601 = vmatpush.bf16.msra.mxu0 %v3468
        %3602 = vmatmul.bf16.gmra.mxu0 %v3187
        %v3603 = vpop.f32.mrf.mxu0
        %v3604 = vadd.f32 %v3590, %v3603
        %v3605 = vpop.f32.mrf.mxu0
        %v3606 = vadd.f32 %v3592, %v3605
        %3607 = vdwg.mxu0
        %3608 = vmatpush.bf16.msra.mxu0 %v3498
        %3609 = vmatpush.bf16.msra.mxu0 %v3496
        %3610 = vmatpush.bf16.msra.mxu0 %v3494
        %3611 = vmatpush.bf16.msra.mxu0 %v3492
        %3612 = vmatpush.bf16.msra.mxu0 %v3490
        %3613 = vmatpush.bf16.msra.mxu0 %v3488
        %3614 = vmatpush.bf16.msra.mxu0 %v3486
        %3615 = vmatpush.bf16.msra.mxu0 %v3484
        %3616 = vmatmul.bf16.gmra.mxu0 %v3188
        %v3617 = vpop.f32.mrf.mxu0
        %v3618 = vadd.f32 %v3604, %v3617
        %v3619 = vpop.f32.mrf.mxu0
        %v3620 = vadd.f32 %v3606, %v3619
        %3621 = vdwg.mxu0
        %3622 = vmatpush.bf16.msra.mxu0 %v3514
        %3623 = vmatpush.bf16.msra.mxu0 %v3512
        %3624 = vmatpush.bf16.msra.mxu0 %v3510
        %3625 = vmatpush.bf16.msra.mxu0 %v3508
        %3626 = vmatpush.bf16.msra.mxu0 %v3506
        %3627 = vmatpush.bf16.msra.mxu0 %v3504
        %3628 = vmatpush.bf16.msra.mxu0 %v3502
        %3629 = vmatpush.bf16.msra.mxu0 %v3500
        %3630 = vmatmul.bf16.gmra.mxu0 %v3189
        %v3631 = vpop.f32.mrf.mxu0
        %v3632 = vadd.f32 %v3618, %v3631
        %v3633 = vpop.f32.mrf.mxu0
        %v3634 = vadd.f32 %v3620, %v3633
        %3635 = vdwg.mxu0
        %3636 = vmatpush.bf16.msra.mxu0 %v3467
        %3637 = vmatpush.bf16.msra.mxu0 %v3465
        %3638 = vmatpush.bf16.msra.mxu0 %v3463
        %3639 = vmatpush.bf16.msra.mxu0 %v3461
        %3640 = vmatpush.bf16.msra.mxu0 %v3459
        %3641 = vmatpush.bf16.msra.mxu0 %v3457
        %3642 = vmatpush.bf16.msra.mxu0 %v3455
        %3643 = vmatpush.bf16.msra.mxu0 %v3453
        %3644 = vmatmul.bf16.gmra.mxu0 %v3186
        %v3645 = vpop.f32.mrf.mxu0
        %v3646 = vadd.f32 %v3257, %v3645
        %v3647 = vpop.f32.mrf.mxu0
        %v3648 = vadd.f32 %v3257, %v3647
        %3649 = vdwg.mxu0
        %3650 = vmatpush.bf16.msra.mxu0 %v3483
        %3651 = vmatpush.bf16.msra.mxu0 %v3481
        %3652 = vmatpush.bf16.msra.mxu0 %v3479
        %3653 = vmatpush.bf16.msra.mxu0 %v3477
        %3654 = vmatpush.bf16.msra.mxu0 %v3475
        %3655 = vmatpush.bf16.msra.mxu0 %v3473
        %3656 = vmatpush.bf16.msra.mxu0 %v3471
        %3657 = vmatpush.bf16.msra.mxu0 %v3469
        %3658 = vmatmul.bf16.gmra.mxu0 %v3187
        %v3659 = vpop.f32.mrf.mxu0
        %v3660 = vadd.f32 %v3646, %v3659
        %v3661 = vpop.f32.mrf.mxu0
        %v3662 = vadd.f32 %v3648, %v3661
        %3663 = vdwg.mxu0
        %3664 = vmatpush.bf16.msra.mxu0 %v3499
        %3665 = vmatpush.bf16.msra.mxu0 %v3497
        %3666 = vmatpush.bf16.msra.mxu0 %v3495
        %3667 = vmatpush.bf16.msra.mxu0 %v3493
        %3668 = vmatpush.bf16.msra.mxu0 %v3491
        %3669 = vmatpush.bf16.msra.mxu0 %v3489
        %3670 = vmatpush.bf16.msra.mxu0 %v3487
        %3671 = vmatpush.bf16.msra.mxu0 %v3485
        %3672 = vmatmul.bf16.gmra.mxu0 %v3188
        %v3673 = vpop.f32.mrf.mxu0
        %v3674 = vadd.f32 %v3660, %v3673
        %v3675 = vpop.f32.mrf.mxu0
        %v3676 = vadd.f32 %v3662, %v3675
        %3677 = vdwg.mxu0
        %3678 = vmatpush.bf16.msra.mxu0 %v3515
        %3679 = vmatpush.bf16.msra.mxu0 %v3513
        %3680 = vmatpush.bf16.msra.mxu0 %v3511
        %3681 = vmatpush.bf16.msra.mxu0 %v3509
        %3682 = vmatpush.bf16.msra.mxu0 %v3507
        %3683 = vmatpush.bf16.msra.mxu0 %v3505
        %3684 = vmatpush.bf16.msra.mxu0 %v3503
        %3685 = vmatpush.bf16.msra.mxu0 %v3501
        %3686 = vmatmul.bf16.gmra.mxu0 %v3189
        %v3687 = vpop.f32.mrf.mxu0
        %v3688 = vadd.f32 %v3674, %v3687
        %v3689 = vpop.f32.mrf.mxu0
        %v3690 = vadd.f32 %v3676, %v3689
        %3691 = vdwg.mxu0
        %v3692 = vmul.f32 %v3632, 0.2
        %v3693 = vmul.f32 %v3688, 0.2
        %v3694 = vmul.f32 %v3634, 0.2
        %v3695 = vmul.f32 %v3690, 0.2
        %v3696 = vmax.f32 %v3632, %v3692
        %v3697 = vmax.f32 %v3688, %v3693
        %v3698 = vmax.f32 %v3634, %v3694
        %v3699 = vmax.f32 %v3690, %v3695
        %v3700 = vpack.c.bf16 %v3698, %v3696
        %v3701 = vpack.c.bf16 %v3699, %v3697
        %v3702 = vld [vmem:[#allocation7] sm:$0xf]
        %v3703 = vld [vmem:[#allocation7 + $0x4] sm:$0xf]
        %v3704 = vld [vmem:[#allocation7 + $0x8] sm:$0xf]
        %v3705 = vld [vmem:[#allocation7 + $0xc] sm:$0xf]
        %v3706 = vld [vmem:[#allocation7 + $0x10] sm:$0xf]
        %v3707 = vld [vmem:[#allocation7 + $0x14] sm:$0xf]
        %v3708 = vld [vmem:[#allocation7 + $0x18] sm:$0xf]
        %v3709 = vld [vmem:[#allocation7 + $0x1c] sm:$0xf]
        %v3710 = vld [vmem:[#allocation7 + $0x20] sm:$0xf]
        %v3711 = vld [vmem:[#allocation7 + $0x24] sm:$0xf]
        %v3712 = vld [vmem:[#allocation7 + $0x28] sm:$0xf]
        %v3713 = vld [vmem:[#allocation7 + $0x2c] sm:$0xf]
        %v3714 = vld [vmem:[#allocation7 + $0x30] sm:$0xf]
        %v3715 = vld [vmem:[#allocation7 + $0x34] sm:$0xf]
        %v3716 = vld [vmem:[#allocation7 + $0x38] sm:$0xf]
        %v3717 = vld [vmem:[#allocation7 + $0x3c] sm:$0xf]
        %v3718 = vld [vmem:[#allocation7 + $0x40] sm:$0xf]
        %v3719 = vld [vmem:[#allocation7 + $0x44] sm:$0xf]
        %v3720 = vld [vmem:[#allocation7 + $0x48] sm:$0xf]
        %v3721 = vld [vmem:[#allocation7 + $0x4c] sm:$0xf]
        %v3722 = vld [vmem:[#allocation7 + $0x50] sm:$0xf]
        %v3723 = vld [vmem:[#allocation7 + $0x54] sm:$0xf]
        %v3724 = vld [vmem:[#allocation7 + $0x58] sm:$0xf]
        %v3725 = vld [vmem:[#allocation7 + $0x5c] sm:$0xf]
        %v3726 = vld [vmem:[#allocation7 + $0x60] sm:$0xf]
        %v3727 = vld [vmem:[#allocation7 + $0x64] sm:$0xf]
        %v3728 = vld [vmem:[#allocation7 + $0x68] sm:$0xf]
        %v3729 = vld [vmem:[#allocation7 + $0x6c] sm:$0xf]
        %v3730 = vld [vmem:[#allocation7 + $0x70] sm:$0xf]
        %v3731 = vld [vmem:[#allocation7 + $0x74] sm:$0xf]
        %v3732 = vld [vmem:[#allocation7 + $0x78] sm:$0xf]
        %v3733 = vld [vmem:[#allocation7 + $0x7c] sm:$0xf]
        %v3734 = vld [vmem:[%s8] sm:$0x1]
        %v3736 = vperm.slane %v3734, 0
        %v3770 = vunpack.c.l.b16 %v3702
        %v3771 = vunpack.c.l.b16 %v3703
        %v3772 = vunpack.c.l.b16 %v3704
        %v3773 = vunpack.c.l.b16 %v3705
        %v3774 = vunpack.c.l.b16 %v3706
        %v3775 = vunpack.c.l.b16 %v3707
        %v3776 = vunpack.c.l.b16 %v3708
        %v3777 = vunpack.c.l.b16 %v3709
        %v3778 = vunpack.c.l.b16 %v3710
        %v3779 = vunpack.c.l.b16 %v3711
        %v3780 = vunpack.c.l.b16 %v3712
        %v3781 = vunpack.c.l.b16 %v3713
        %v3782 = vunpack.c.l.b16 %v3714
        %v3783 = vunpack.c.l.b16 %v3715
        %v3784 = vunpack.c.l.b16 %v3716
        %v3785 = vunpack.c.l.b16 %v3717
        %v3786 = vunpack.c.l.b16 %v3718
        %v3787 = vunpack.c.l.b16 %v3719
        %v3788 = vunpack.c.l.b16 %v3720
        %v3789 = vunpack.c.l.b16 %v3721
        %v3790 = vunpack.c.l.b16 %v3722
        %v3791 = vunpack.c.l.b16 %v3723
        %v3792 = vunpack.c.l.b16 %v3724
        %v3793 = vunpack.c.l.b16 %v3725
        %v3794 = vunpack.c.l.b16 %v3726
        %v3795 = vunpack.c.l.b16 %v3727
        %v3796 = vunpack.c.l.b16 %v3728
        %v3797 = vunpack.c.l.b16 %v3729
        %v3798 = vunpack.c.l.b16 %v3730
        %v3799 = vunpack.c.l.b16 %v3731
        %v3800 = vunpack.c.l.b16 %v3732
        %v3801 = vunpack.c.l.b16 %v3733
        %v3802 = vpack.c.b16 %v3771, %v3770
        %v3803 = vpack.c.b16 %v3773, %v3772
        %v3804 = vpack.c.b16 %v3775, %v3774
        %v3805 = vpack.c.b16 %v3777, %v3776
        %v3806 = vpack.c.b16 %v3779, %v3778
        %v3807 = vpack.c.b16 %v3781, %v3780
        %v3808 = vpack.c.b16 %v3783, %v3782
        %v3809 = vpack.c.b16 %v3785, %v3784
        %v3810 = vpack.c.b16 %v3787, %v3786
        %v3811 = vpack.c.b16 %v3789, %v3788
        %v3812 = vpack.c.b16 %v3791, %v3790
        %v3813 = vpack.c.b16 %v3793, %v3792
        %v3814 = vpack.c.b16 %v3795, %v3794
        %v3815 = vpack.c.b16 %v3797, %v3796
        %v3816 = vpack.c.b16 %v3799, %v3798
        %v3817 = vpack.c.b16 %v3801, %v3800
        %3834 = vmatpush.bf16.msra.mxu0 %v3809
        %3835 = vmatpush.bf16.msra.mxu0 %v3808
        %3836 = vmatpush.bf16.msra.mxu0 %v3807
        %3837 = vmatpush.bf16.msra.mxu0 %v3806
        %3838 = vmatpush.bf16.msra.mxu0 %v3805
        %3839 = vmatpush.bf16.msra.mxu0 %v3804
        %3840 = vmatpush.bf16.msra.mxu0 %v3803
        %3841 = vmatpush.bf16.msra.mxu0 %v3802
        %3842 = vmatmul.bf16.gmra.mxu0 %v3700
        %v3843 = vpop.f32.mrf.mxu0
        %v3844 = vadd.f32 %v3736, %v3843
        %v3845 = vpop.f32.mrf.mxu0
        %v3846 = vadd.f32 %v3736, %v3845
        %3847 = vdwg.mxu0
        %3848 = vmatpush.bf16.msra.mxu0 %v3817
        %3849 = vmatpush.bf16.msra.mxu0 %v3816
        %3850 = vmatpush.bf16.msra.mxu0 %v3815
        %3851 = vmatpush.bf16.msra.mxu0 %v3814
        %3852 = vmatpush.bf16.msra.mxu0 %v3813
        %3853 = vmatpush.bf16.msra.mxu0 %v3812
        %3854 = vmatpush.bf16.msra.mxu0 %v3811
        %3855 = vmatpush.bf16.msra.mxu0 %v3810
        %3856 = vmatmul.bf16.gmra.mxu0 %v3701
        %v3857 = vpop.f32.mrf.mxu0
        %v3858 = vadd.f32 %v3844, %v3857
        %v3859 = vpop.f32.mrf.mxu0
        %v3860 = vadd.f32 %v3846, %v3859
        %3861 = vdwg.mxu0
        %v3862 = vmul.f32 %v3858, 0.2
        %v3863 = vmul.f32 %v3860, 0.2
        %v3864 = vmax.f32 %v3858, %v3862
        %v3865 = vmax.f32 %v3860, %v3863
        %v3866 = vpack.c.bf16 %v3865, %v3864
        %v3867 = vld [vmem:[#allocation9] sm:$0xf]
        %v3868 = vld [vmem:[#allocation9 + $0x4] sm:$0xf]
        %v3869 = vld [vmem:[#allocation9 + $0x8] sm:$0xf]
        %v3870 = vld [vmem:[#allocation9 + $0xc] sm:$0xf]
        %v3871 = vld [vmem:[#allocation9 + $0x10] sm:$0xf]
        %v3872 = vld [vmem:[#allocation9 + $0x14] sm:$0xf]
        %v3873 = vld [vmem:[#allocation9 + $0x18] sm:$0xf]
        %v3874 = vld [vmem:[#allocation9 + $0x1c] sm:$0xf]
        %v3875 = vld [vmem:[#allocation9 + $0x20] sm:$0xf]
        %v3876 = vld [vmem:[#allocation9 + $0x24] sm:$0xf]
        %v3877 = vld [vmem:[#allocation9 + $0x28] sm:$0xf]
        %v3878 = vld [vmem:[#allocation9 + $0x2c] sm:$0xf]
        %v3879 = vld [vmem:[#allocation9 + $0x30] sm:$0xf]
        %v3880 = vld [vmem:[#allocation9 + $0x34] sm:$0xf]
        %v3881 = vld [vmem:[#allocation9 + $0x38] sm:$0xf]
        %v3882 = vld [vmem:[#allocation9 + $0x3c] sm:$0xf]
        %v3883 = vld [vmem:[%s10] sm:$0x1]
        %v3885 = vperm.slane %v3883, 0
        %v3903 = vunpack.c.l.b16 %v3867
        %v3904 = vunpack.c.l.b16 %v3868
        %v3905 = vunpack.c.l.b16 %v3869
        %v3906 = vunpack.c.l.b16 %v3870
        %v3907 = vunpack.c.l.b16 %v3871
        %v3908 = vunpack.c.l.b16 %v3872
        %v3909 = vunpack.c.l.b16 %v3873
        %v3910 = vunpack.c.l.b16 %v3874
        %v3911 = vunpack.c.l.b16 %v3875
        %v3912 = vunpack.c.l.b16 %v3876
        %v3913 = vunpack.c.l.b16 %v3877
        %v3914 = vunpack.c.l.b16 %v3878
        %v3915 = vunpack.c.l.b16 %v3879
        %v3916 = vunpack.c.l.b16 %v3880
        %v3917 = vunpack.c.l.b16 %v3881
        %v3918 = vunpack.c.l.b16 %v3882
        %v3919 = vpack.c.b16 %v3904, %v3903
        %v3920 = vpack.c.b16 %v3906, %v3905
        %v3921 = vpack.c.b16 %v3908, %v3907
        %v3922 = vpack.c.b16 %v3910, %v3909
        %v3923 = vpack.c.b16 %v3912, %v3911
        %v3924 = vpack.c.b16 %v3914, %v3913
        %v3925 = vpack.c.b16 %v3916, %v3915
        %v3926 = vpack.c.b16 %v3918, %v3917
        %3935 = vmatpush.bf16.msra.mxu0 %v3926
        %3936 = vmatpush.bf16.msra.mxu0 %v3925
        %3937 = vmatpush.bf16.msra.mxu0 %v3924
        %3938 = vmatpush.bf16.msra.mxu0 %v3923
        %3939 = vmatpush.bf16.msra.mxu0 %v3922
        %3940 = vmatpush.bf16.msra.mxu0 %v3921
        %3941 = vmatpush.bf16.msra.mxu0 %v3920
        %3942 = vmatpush.bf16.msra.mxu0 %v3919
        %3943 = vmatmul.bf16.gmra.mxu0 %v3866
        %v3944 = vpop.f32.mrf.mxu0
        %v3945 = vadd.f32 %v3885, %v3944
        %v3946 = vpop.f32.mrf.mxu0
        %v3947 = vadd.f32 %v3885, %v3946
        %3948 = vdwg.mxu0
        %v3949 = vmul.f32 %v3945, 0.2
        %v3950 = vmul.f32 %v3947, 0.2
        %v3951 = vmax.f32 %v3945, %v3949
        %v3952 = vmax.f32 %v3947, %v3950
        %v3953 = vpack.c.bf16 %v3952, %v3951
        %v3954 = vld [vmem:[#allocation10] sm:$0xf]
        %v3955 = vld [vmem:[#allocation10 + $0x4] sm:$0xf]
        %v3956 = vld [vmem:[#allocation10 + $0x8] sm:$0xf]
        %v3957 = vld [vmem:[#allocation10 + $0xc] sm:$0xf]
        %v3958 = vld [vmem:[#allocation10 + $0x10] sm:$0xf]
        %v3959 = vld [vmem:[#allocation10 + $0x14] sm:$0xf]
        %v3960 = vld [vmem:[#allocation10 + $0x18] sm:$0xf]
        %v3961 = vld [vmem:[#allocation10 + $0x1c] sm:$0xf]
        %v3962 = vld [vmem:[#allocation10 + $0x20] sm:$0xf]
        %v3963 = vld [vmem:[#allocation10 + $0x24] sm:$0xf]
        %v3964 = vld [vmem:[#allocation10 + $0x28] sm:$0xf]
        %v3965 = vld [vmem:[#allocation10 + $0x2c] sm:$0xf]
        %v3966 = vld [vmem:[#allocation10 + $0x30] sm:$0xf]
        %v3967 = vld [vmem:[#allocation10 + $0x34] sm:$0xf]
        %v3968 = vld [vmem:[#allocation10 + $0x38] sm:$0xf]
        %v3969 = vld [vmem:[#allocation10 + $0x3c] sm:$0xf]
        %v3970 = vld [vmem:[%s12] sm:$0x1]
        %v3972 = vperm.slane %v3970, 0
        %v3990 = vunpack.c.l.b16 %v3954
        %v3991 = vunpack.c.l.b16 %v3955
        %v3992 = vunpack.c.l.b16 %v3956
        %v3993 = vunpack.c.l.b16 %v3957
        %v3994 = vunpack.c.l.b16 %v3958
        %v3995 = vunpack.c.l.b16 %v3959
        %v3996 = vunpack.c.l.b16 %v3960
        %v3997 = vunpack.c.l.b16 %v3961
        %v3998 = vunpack.c.l.b16 %v3962
        %v3999 = vunpack.c.l.b16 %v3963
        %v4000 = vunpack.c.l.b16 %v3964
        %v4001 = vunpack.c.l.b16 %v3965
        %v4002 = vunpack.c.l.b16 %v3966
        %v4003 = vunpack.c.l.b16 %v3967
        %v4004 = vunpack.c.l.b16 %v3968
        %v4005 = vunpack.c.l.b16 %v3969
        %v4006 = vpack.c.b16 %v3991, %v3990
        %v4007 = vpack.c.b16 %v3993, %v3992
        %v4008 = vpack.c.b16 %v3995, %v3994
        %v4009 = vpack.c.b16 %v3997, %v3996
        %v4010 = vpack.c.b16 %v3999, %v3998
        %v4011 = vpack.c.b16 %v4001, %v4000
        %v4012 = vpack.c.b16 %v4003, %v4002
        %v4013 = vpack.c.b16 %v4005, %v4004
        %4022 = vmatpush.bf16.msra.mxu0 %v4013
        %4023 = vmatpush.bf16.msra.mxu0 %v4012
        %4024 = vmatpush.bf16.msra.mxu0 %v4011
        %4025 = vmatpush.bf16.msra.mxu0 %v4010
        %4026 = vmatpush.bf16.msra.mxu0 %v4009
        %4027 = vmatpush.bf16.msra.mxu0 %v4008
        %4028 = vmatpush.bf16.msra.mxu0 %v4007
        %4029 = vmatpush.bf16.msra.mxu0 %v4006
        %4030 = vmatmul.bf16.gmra.mxu0 %v3953
        %v4031 = vpop.f32.mrf.mxu0
        %v4032 = vadd.f32 %v3972, %v4031
        %v4033 = vpop.f32.mrf.mxu0
        %v4034 = vadd.f32 %v3972, %v4033
        %4035 = vdwg.mxu0
        %v4036 = vmul.f32 %v4032, 0.2
        %v4037 = vmul.f32 %v4034, 0.2
        %v4038 = vmax.f32 %v4032, %v4036
        %v4039 = vmax.f32 %v4034, %v4037
        %v4040 = vpack.c.bf16 %v4039, %v4038
        %v4041 = vld [vmem:[#allocation12] sm:$0xf]
        %v4042 = vld [vmem:[#allocation12 + $0x4] sm:$0xf]
        %v4043 = vld [vmem:[#allocation12 + $0x8] sm:$0xf]
        %v4044 = vld [vmem:[#allocation12 + $0xc] sm:$0xf]
        %v4045 = vld [vmem:[#allocation12 + $0x10] sm:$0xf]
        %v4046 = vld [vmem:[#allocation12 + $0x14] sm:$0xf]
        %v4047 = vld [vmem:[#allocation12 + $0x18] sm:$0xf]
        %v4048 = vld [vmem:[#allocation12 + $0x1c] sm:$0xf]
        %v4049 = vld [vmem:[#allocation12 + $0x20] sm:$0xf]
        %v4050 = vld [vmem:[#allocation12 + $0x24] sm:$0xf]
        %v4051 = vld [vmem:[#allocation12 + $0x28] sm:$0xf]
        %v4052 = vld [vmem:[#allocation12 + $0x2c] sm:$0xf]
        %v4053 = vld [vmem:[#allocation12 + $0x30] sm:$0xf]
        %v4054 = vld [vmem:[#allocation12 + $0x34] sm:$0xf]
        %v4055 = vld [vmem:[#allocation12 + $0x38] sm:$0xf]
        %v4056 = vld [vmem:[#allocation12 + $0x3c] sm:$0xf]
        %v4057 = vld [vmem:[%s14] sm:$0x1]
        %v4059 = vperm.slane %v4057, 0
        %v4077 = vunpack.c.l.b16 %v4041
        %v4078 = vunpack.c.l.b16 %v4042
        %v4079 = vunpack.c.l.b16 %v4043
        %v4080 = vunpack.c.l.b16 %v4044
        %v4081 = vunpack.c.l.b16 %v4045
        %v4082 = vunpack.c.l.b16 %v4046
        %v4083 = vunpack.c.l.b16 %v4047
        %v4084 = vunpack.c.l.b16 %v4048
        %v4085 = vunpack.c.l.b16 %v4049
        %v4086 = vunpack.c.l.b16 %v4050
        %v4087 = vunpack.c.l.b16 %v4051
        %v4088 = vunpack.c.l.b16 %v4052
        %v4089 = vunpack.c.l.b16 %v4053
        %v4090 = vunpack.c.l.b16 %v4054
        %v4091 = vunpack.c.l.b16 %v4055
        %v4092 = vunpack.c.l.b16 %v4056
        %v4093 = vpack.c.b16 %v4078, %v4077
        %v4094 = vpack.c.b16 %v4080, %v4079
        %v4095 = vpack.c.b16 %v4082, %v4081
        %v4096 = vpack.c.b16 %v4084, %v4083
        %v4097 = vpack.c.b16 %v4086, %v4085
        %v4098 = vpack.c.b16 %v4088, %v4087
        %v4099 = vpack.c.b16 %v4090, %v4089
        %v4100 = vpack.c.b16 %v4092, %v4091
        %4109 = vmatpush.bf16.msra.mxu0 %v4100
        %4110 = vmatpush.bf16.msra.mxu0 %v4099
        %4111 = vmatpush.bf16.msra.mxu0 %v4098
        %4112 = vmatpush.bf16.msra.mxu0 %v4097
        %4113 = vmatpush.bf16.msra.mxu0 %v4096
        %4114 = vmatpush.bf16.msra.mxu0 %v4095
        %4115 = vmatpush.bf16.msra.mxu0 %v4094
        %4116 = vmatpush.bf16.msra.mxu0 %v4093
        %4117 = vmatmul.bf16.gmra.mxu0 %v4040
        %v4118 = vpop.f32.mrf.mxu0
        %v4119 = vadd.f32 %v4059, %v4118
        %v4120 = vpop.f32.mrf.mxu0
        %v4121 = vadd.f32 %v4059, %v4120
        %4122 = vdwg.mxu0
        %4123 = vst [vmem:[%s612] sm:$0xff] %v4119
        %4124 = vst [vmem:[%s612 + $0x8] sm:$0xff] %v4121
        %s4125 = smul.u32 2, %s30
        %p4126 = scmp.lt.s32.totalorder %s4125, 3
        %s4127 = scalar_select %p4126, %s4125, 3
        %s4128 = smul.addr %s4127, 8
        %s4129 = scalar_lea.vmem %s15, %s4128
        // Predicated region
        $region109: #{camera_classifier_forward.1} parent=79 // pred_check
          %p4130 = pneg %p368
        $region110: #{camera_classifier_forward.1} parent=79 // pred_check_branch
          %4132 = sbr.rel (%p4130) target = $region112
        $region111: #{camera_classifier_forward.1} parent=79 // pred_region
          %s4133 = smul.u32 2, %s30
        $region112: #{camera_classifier_forward.1} parent=79 // pred_fallthru
          _
      $region80: #{camera_classifier_forward.1} parent=5 // pred_fallthru
        _
      %p4134 = scmp.le.s32.totalorder 2, %s25
      // Predicated region
      $region113: #{camera_classifier_forward.1} parent=5 // pred_check
        %p4135 = pneg %p4134
      $region114: #{camera_classifier_forward.1} parent=5 // pred_check_branch
        %4137 = sbr.rel (%p4135) target = $region116
      $region115: #{camera_classifier_forward.1} parent=5 // pred_region
        %s4138 = ssub.s32 %s25, 2
        // Predicated region
        $region117: #{camera_classifier_forward.1} parent=115 // pred_check
          %p4139 = pneg %p374
        $region118: #{camera_classifier_forward.1} parent=115 // pred_check_branch
          %4141 = sbr.rel (%p4139) target = $region120
        $region119: #{camera_classifier_forward.1} parent=115 // pred_region
          %s4142 = smul.u32 2, %s31
          %p4143 = scmp.lt.s32.totalorder %s4142, 3
          %s4144 = scalar_select %p4143, %s4142, 3
          %s4145 = smul.addr %s4144, 8
          %s4146 = scalar_lea.vmem %s15, %s4145
        $region120: #{camera_classifier_forward.1} parent=115 // pred_fallthru
          _
      $region116: #{camera_classifier_forward.1} parent=5 // pred_fallthru
        _
    $region6: #{camera_classifier_forward.1} parent=1 // loop_footer
      %s29 = sadd.s32 1, %s25
    $region7: #{camera_classifier_forward.1} parent=1 // loop_footer_branch
      %24 = sbr.rel target = $region3
    $region8: #{camera_classifier_forward.1} parent=1 // loop_exit
      _
    %4147 = vsyncpa [#allocation3], 1
    %s4148 = scalar_lea.sflag [#allocation3], 1
    %4149 = vsyncpa %s4148, 1
    %4150 = vsyncpa [#allocation5], 1
    %4151 = vsyncpa [#allocation8], 1
    %4152 = vsyncpa [#allocation11], 1

</llo_original>
